<compile_context>
chip_gen: v7x
topology: tpu7x:2x2x1
jax: 0.10.0
libtpu: 0.0.40
codegen_flags: <defaults>
</compile_context>

<pallas_src>
import jax
import jax.numpy as jnp
import numpy as np
from jax import lax
from jax.experimental import pallas as pl
from jax.experimental.pallas import tpu as pltpu

# ---- module hyperparameters (from stt.py) ----
BLOCK_SIZE = 36          # causal mask buffer size (tril)
N_EMBD = 384
NUM_HEADS = 6
HEAD_SIZE = N_EMBD // NUM_HEADS   # 64

_MASK_VALUE = -1e30      # large finite negative: exp() underflows to 0, NaN-safe


def _mha_kernel(x_ref, wqkv_ref, wp_ref, bp_ref, o_ref):
    """One grid step = Bblk batch elements, full multi-head causal attention.

    x_ref    : (Bblk, T, C)  bf16  input slab (T already padded to 8-multiple)
    wqkv_ref : (C, 3*H*hs)   bf16  packed [Q | K | V] projection (Q pre-scaled)
    wp_ref   : (H*hs, C)     bf16  packed output projection
    bp_ref   : (1, C)        f32   output-projection bias
    o_ref    : (Bblk, T, C)  bf16  output slab
    """
    Bblk, T, C = x_ref.shape
    HHS = wp_ref.shape[0]                    # H * hs
    hs = HEAD_SIZE
    H = HHS // hs
    M = Bblk * T

    # ---- fused QKV projection: one lane-dense matmul, M = Bblk*T rows ----
    x2 = x_ref[...].astype(jnp.bfloat16).reshape(M, C)
    qkv = jnp.dot(x2, wqkv_ref[...], preferred_element_type=jnp.float32)
    # single downcast; all per-head slices read this bf16 buffer directly
    qkv = qkv.astype(jnp.bfloat16).reshape(Bblk, T, 3 * HHS)

    # causal (lower-triangular) mask; pad cols j >= T_valid are > any valid
    # row i < T_valid => masked; pad rows are sliced away in the wrapper.
    row = lax.broadcasted_iota(jnp.int32, (T, T), 0)
    col = lax.broadcasted_iota(jnp.int32, (T, T), 1)
    causal = (col <= row)[None]              # (1, T, T), broadcast over Bblk

    acc = None                               # (M, C) f32 projection accumulator
    for h in range(H):                       # H = 6, fully unrolled
        q = qkv[:, :, h * hs:(h + 1) * hs]                       # (Bblk, T, hs) bf16, pre-scaled
        k = qkv[:, :, HHS + h * hs:HHS + (h + 1) * hs]
        v = qkv[:, :, 2 * HHS + h * hs:2 * HHS + (h + 1) * hs]

        # scores: contract last dims directly (no explicit k.T relayout)
        s = lax.dot_general(
            q, k,
            dimension_numbers=(((2,), (2,)), ((0,), (0,))),
            preferred_element_type=jnp.float32)                  # (Bblk, T, T)
        s = jnp.where(causal, s, _MASK_VALUE)

        # numerically-stable softmax (f32 on VPU/EUP)
        s = s - jnp.max(s, axis=-1, keepdims=True)
        p = jnp.exp(s)
        p = p * pl.reciprocal(jnp.sum(p, axis=-1, keepdims=True), approx=True)

        oh = lax.dot_general(
            p.astype(jnp.bfloat16), v,
            dimension_numbers=(((2,), (1,)), ((0,), (0,))),
            preferred_element_type=jnp.float32)                  # (Bblk, T, hs)

        # output projection for this head accumulated in f32 (== concat+project)
        contrib = jnp.dot(oh.reshape(M, hs).astype(jnp.bfloat16),
                          wp_ref[h * hs:(h + 1) * hs, :],
                          preferred_element_type=jnp.float32)    # (M, C)
        acc = contrib if acc is None else acc + contrib

    out = acc + bp_ref[...]                                      # (M, C) + (1, C)
    o_ref[...] = out.reshape(Bblk, T, C).astype(o_ref.dtype)


def _num_tensorcores():
    """Best-effort TensorCores-per-chip detection (2 on v7x-class TPUs)."""
    try:
        dev = jax.devices()[0]
        if dev.platform != "tpu":
            return 1
        kind = str(getattr(dev, "device_kind", "")).lower()
        return 2 if "v7" in kind else 1
    except Exception:
        return 1


def multi_head_attention(x, wq, wk, wv, wp, bp):
    """x: (B, T, C);  wq/wk/wv: (H, C, hs);  wp: (H, hs, C);  bp: (1, C)."""
    B, T, C = x.shape
    H, _, hs = wq.shape
    assert T <= BLOCK_SIZE and C == N_EMBD and hs == HEAD_SIZE and H == NUM_HEADS

    # ---- host-side weight packing (lane-dense 2D, bf16 MXU operands) ----
    scale = float(hs) ** -0.5
    wq_p = jnp.transpose(wq * scale, (1, 0, 2)).reshape(C, H * hs)   # scale folded in
    wk_p = jnp.transpose(wk, (1, 0, 2)).reshape(C, H * hs)
    wv_p = jnp.transpose(wv, (1, 0, 2)).reshape(C, H * hs)
    wqkv = jnp.concatenate([wq_p, wk_p, wv_p], axis=-1).astype(jnp.bfloat16)  # (C, 3*H*hs)
    wp2 = wp.reshape(H * hs, C).astype(jnp.bfloat16)                          # (H*hs, C)
    bp2 = bp.astype(jnp.float32)                                              # (1, C)

    # ---- tiling: pad T to 8 sublanes; large batch tile per grid step ----
    t_pad = ((T + 7) // 8) * 8
    two_tc = _num_tensorcores() >= 2

    TARGET_ROWS = 1280   # ~1-2K matmul rows / step (multiple of 256 at t_pad=40)
    bblk = max(1, min(B, max(1, TARGET_ROWS // t_pad)))
    steps = pl.cdiv(B, bblk)
    # only force >=2 steps when the chip really has 2 TensorCores (v7x)
    if two_tc and B >= 2 and steps < 2:
        steps = 2
    bblk = pl.cdiv(B, steps)           # rebalance to minimize batch padding
    b_pad = steps * bblk

    # bf16 HBM I/O for x (kernel computed in bf16 anyway -> identical numerics)
    x_bf = x.astype(jnp.bfloat16)
    if (t_pad != T) or (b_pad != B):
        x_bf = jnp.pad(x_bf, ((0, b_pad - B), (0, t_pad - T), (0, 0)))

    grid = (b_pad // bblk,)

    def _call(dim_sem):
        return pl.pallas_call(
            _mha_kernel,
            out_shape=jax.ShapeDtypeStruct((b_pad, t_pad, C), jnp.bfloat16),
            grid_spec=pltpu.PrefetchScalarGridSpec(
                num_scalar_prefetch=0,
                grid=grid,
                in_specs=[
                    pl.BlockSpec((bblk, t_pad, C), lambda b: (b, 0, 0)),
                    pl.BlockSpec(wqkv.shape, lambda b: (0, 0)),   # constant across grid
                    pl.BlockSpec(wp2.shape, lambda b: (0, 0)),
                    pl.BlockSpec(bp2.shape, lambda b: (0, 0)),
                ],
                out_specs=pl.BlockSpec((bblk, t_pad, C), lambda b: (b, 0, 0)),
            ),
            compiler_params=pltpu.CompilerParams(dimension_semantics=dim_sem),
        )(x_bf, wqkv, wp2, bp2)

    out = None
    if two_tc and grid[0] >= 2:
        # shard the batch grid axis across both TensorCores on v7x-class chips
        try:
            out = jax.block_until_ready(_call((pltpu.CORE_PARALLEL,)))
        except Exception:
            out = None
    if out is None:
        out = _call(("parallel",))

    return out[:B, :T, :].astype(x.dtype)


def _reference(x, wq, wk, wv, wp, bp):
    """Pure-JAX f32 reference matching the PyTorch forward (dropout = identity)."""
    B, T, C = x.shape
    H, _, hs = wq.shape
    outs = []
    tril = jnp.tril(jnp.ones((T, T)))
    for h in range(H):
        q = x @ wq[h]
        k = x @ wk[h]
        v = x @ wv[h]
        wei = (q @ jnp.swapaxes(k, -2, -1)) * (hs ** -0.5)
        wei = jnp.where(tril == 0, -jnp.inf, wei)
        wei = jax.nn.softmax(wei, axis=-1)
        outs.append(wei @ v)
    cat = jnp.concatenate(outs, axis=-1)                # (B, T, H*hs)
    wp_flat = wp.reshape(H * hs, C)                     # (H*hs, C)
    return cat @ wp_flat + bp[0]


def _run_case(key, B, T):
    ks = jax.random.split(key, 6)
    x = jax.random.normal(ks[0], (B, T, N_EMBD), jnp.float32)
    wq = jax.random.normal(ks[1], (NUM_HEADS, N_EMBD, HEAD_SIZE), jnp.float32) * 0.02
    wk = jax.random.normal(ks[2], (NUM_HEADS, N_EMBD, HEAD_SIZE), jnp.float32) * 0.02
    wv = jax.random.normal(ks[3], (NUM_HEADS, N_EMBD, HEAD_SIZE), jnp.float32) * 0.02
    wp = jax.random.normal(ks[4], (NUM_HEADS, HEAD_SIZE, N_EMBD), jnp.float32) * 0.02
    bp = jax.random.normal(ks[5], (1, N_EMBD), jnp.float32) * 0.02

    out = jax.block_until_ready(multi_head_attention(x, wq, wk, wv, wp, bp))
    ref = jax.block_until_ready(_reference(x, wq, wk, wv, wp, bp))
    assert out.shape == (B, T, N_EMBD)
    # bf16 matmul operands / bf16 I/O in the kernel -> looser tolerance vs f32 ref
    np.testing.assert_allclose(np.asarray(out), np.asarray(ref),
                               rtol=2e-2, atol=2e-2)


if __name__ == "__main__":
    key = jax.random.PRNGKey(0)
    k1, k2, k3 = jax.random.split(key, 3)
    _run_case(k1, B=2, T=8)             # small seq, aligned, single grid step
    _run_case(k2, B=3, T=BLOCK_SIZE)    # exercises T-padding path
    _run_case(k3, B=40, T=BLOCK_SIZE)   # exercises large-tile + multi-step grid
    print("KERNEL_OK")
</pallas_src>

<mosaic_0001>
module attributes {stable_mosaic.version = 11 : i64} {
  func.func @_mha_kernel(%arg0: i32, %arg1: memref<2x8x384xbf16, #tpu.memory_space<vmem>>, %arg2: memref<384x1152xbf16, #tpu.memory_space<vmem>>, %arg3: memref<384x384xbf16, #tpu.memory_space<vmem>>, %arg4: memref<1x384xf32, #tpu.memory_space<vmem>>, %arg5: memref<2x8x384xbf16, #tpu.memory_space<vmem>>) attributes {dimension_semantics = [#tpu.dimension_semantics<parallel>], iteration_bounds = array<i64: 1>, scalar_prefetch = 0 : i64, scratch_operands = 0 : i64, tpu.core_type = #tpu.core_type<tc>, window_params = [{transform_indices = @transform_0, window_bounds = array<i64: 2, 8, 384>}, {pipeline_mode = #tpu.pipeline_mode<synchronous>, transform_indices = @transform_1, window_bounds = array<i64: 384, 1152>}, {pipeline_mode = #tpu.pipeline_mode<synchronous>, transform_indices = @transform_2, window_bounds = array<i64: 384, 384>}, {pipeline_mode = #tpu.pipeline_mode<synchronous>, transform_indices = @transform_3, window_bounds = array<i64: 1, 384>}, {transform_indices = @transform_4, window_bounds = array<i64: 2, 8, 384>}]} {
    %c0 = arith.constant 0 : index
    %c0_0 = arith.constant 0 : index
    %c0_1 = arith.constant 0 : index
    %0 = vector.load %arg1[%c0, %c0_0, %c0_1] : memref<2x8x384xbf16, #tpu.memory_space<vmem>>, vector<2x8x384xbf16>
    %1 = vector.shape_cast %0 : vector<2x8x384xbf16> to vector<16x384xbf16>
    %c0_2 = arith.constant 0 : index
    %c0_3 = arith.constant 0 : index
    %2 = vector.load %arg2[%c0_2, %c0_3] : memref<384x1152xbf16, #tpu.memory_space<vmem>>, vector<384x1152xbf16>
    %cst = arith.constant dense<0.000000e+00> : vector<16x1152xf32>
    %3 = tpu.matmul %1, %2, %cst {dimension_numbers = #tpu.dot_dimension_numbers<[1], [0], [0], [1], [0, 0, 1, 1], [], []>} : vector<16x384xbf16>, vector<384x1152xbf16>, vector<16x1152xf32> -> vector<16x1152xf32>
    %4 = arith.truncf %3 : vector<16x1152xf32> to vector<16x1152xbf16>
    %5 = vector.shape_cast %4 : vector<16x1152xbf16> to vector<2x8x1152xbf16>
    %6 = tpu.iota {dimensions = array<i32: 0>} : vector<8x8xi32>
    %7 = tpu.iota {dimensions = array<i32: 1>} : vector<8x8xi32>
    %8 = arith.cmpi sle, %7, %6 : vector<8x8xi32>
    %9 = vector.shape_cast %8 : vector<8x8xi1> to vector<1x8x8xi1>
    %10 = vector.extract_strided_slice %5 {offsets = [0, 0, 0], sizes = [2, 8, 64], strides = [1, 1, 1]} : vector<2x8x1152xbf16> to vector<2x8x64xbf16>
    %11 = vector.extract_strided_slice %5 {offsets = [0, 0, 384], sizes = [2, 8, 64], strides = [1, 1, 1]} : vector<2x8x1152xbf16> to vector<2x8x64xbf16>
    %12 = vector.extract_strided_slice %5 {offsets = [0, 0, 768], sizes = [2, 8, 64], strides = [1, 1, 1]} : vector<2x8x1152xbf16> to vector<2x8x64xbf16>
    %cst_4 = arith.constant dense<0.000000e+00> : vector<2x8x8xf32>
    %13 = tpu.matmul %10, %11, %cst_4 {dimension_numbers = #tpu.dot_dimension_numbers<[2], [2], [1], [1], [0, 0, 0, 1, 1, 1], [0], [0]>} : vector<2x8x64xbf16>, vector<2x8x64xbf16>, vector<2x8x8xf32> -> vector<2x8x8xf32>
    %cst_5 = arith.constant -1.000000e+30 : f32
    %14 = vector.shape_cast %9 : vector<1x8x8xi1> to vector<1x8x8xi1>
    %15 = vector.broadcast %14 : vector<1x8x8xi1> to vector<2x8x8xi1>
    %16 = vector.broadcast %cst_5 : f32 to vector<2x8x8xf32>
    %17 = arith.select %15, %13, %16 : vector<2x8x8xi1>, vector<2x8x8xf32>
    %cst_6 = arith.constant dense<0xFF800000> : vector<2x8xf32>
    %18 = vector.multi_reduction <maximumf>, %17, %cst_6 [2] : vector<2x8x8xf32> to vector<2x8xf32>
    %19 = vector.shape_cast %18 : vector<2x8xf32> to vector<2x8x1xf32>
    %20 = vector.broadcast %19 : vector<2x8x1xf32> to vector<2x8x8xf32>
    %21 = arith.subf %17, %20 : vector<2x8x8xf32>
    %22 = math.exp %21 : vector<2x8x8xf32>
    %cst_7 = arith.constant dense<0.000000e+00> : vector<2x8xf32>
    %23 = vector.multi_reduction <add>, %22, %cst_7 [2] : vector<2x8x8xf32> to vector<2x8xf32>
    %24 = vector.shape_cast %23 : vector<2x8xf32> to vector<2x8x1xf32>
    %25 = tpu.reciprocal %24 {approx = true} : vector<2x8x1xf32> -> vector<2x8x1xf32>
    %26 = vector.broadcast %25 : vector<2x8x1xf32> to vector<2x8x8xf32>
    %27 = arith.mulf %22, %26 : vector<2x8x8xf32>
    %28 = arith.truncf %27 : vector<2x8x8xf32> to vector<2x8x8xbf16>
    %cst_8 = arith.constant dense<0.000000e+00> : vector<2x8x64xf32>
    %29 = tpu.matmul %28, %12, %cst_8 {dimension_numbers = #tpu.dot_dimension_numbers<[2], [1], [1], [2], [0, 0, 0, 1, 1, 2], [0], [0]>} : vector<2x8x8xbf16>, vector<2x8x64xbf16>, vector<2x8x64xf32> -> vector<2x8x64xf32>
    %30 = vector.shape_cast %29 : vector<2x8x64xf32> to vector<16x64xf32>
    %31 = arith.truncf %30 : vector<16x64xf32> to vector<16x64xbf16>
    %c0_9 = arith.constant 0 : index
    %c0_10 = arith.constant 0 : index
    %32 = vector.load %arg3[%c0_9, %c0_10] : memref<384x384xbf16, #tpu.memory_space<vmem>>, vector<64x384xbf16>
    %cst_11 = arith.constant dense<0.000000e+00> : vector<16x384xf32>
    %33 = tpu.matmul %31, %32, %cst_11 {dimension_numbers = #tpu.dot_dimension_numbers<[1], [0], [0], [1], [0, 0, 1, 1], [], []>} : vector<16x64xbf16>, vector<64x384xbf16>, vector<16x384xf32> -> vector<16x384xf32>
    %34 = vector.extract_strided_slice %5 {offsets = [0, 0, 64], sizes = [2, 8, 64], strides = [1, 1, 1]} : vector<2x8x1152xbf16> to vector<2x8x64xbf16>
    %35 = vector.extract_strided_slice %5 {offsets = [0, 0, 448], sizes = [2, 8, 64], strides = [1, 1, 1]} : vector<2x8x1152xbf16> to vector<2x8x64xbf16>
    %36 = vector.extract_strided_slice %5 {offsets = [0, 0, 832], sizes = [2, 8, 64], strides = [1, 1, 1]} : vector<2x8x1152xbf16> to vector<2x8x64xbf16>
    %cst_12 = arith.constant dense<0.000000e+00> : vector<2x8x8xf32>
    %37 = tpu.matmul %34, %35, %cst_12 {dimension_numbers = #tpu.dot_dimension_numbers<[2], [2], [1], [1], [0, 0, 0, 1, 1, 1], [0], [0]>} : vector<2x8x64xbf16>, vector<2x8x64xbf16>, vector<2x8x8xf32> -> vector<2x8x8xf32>
    %cst_13 = arith.constant -1.000000e+30 : f32
    %38 = vector.shape_cast %9 : vector<1x8x8xi1> to vector<1x8x8xi1>
    %39 = vector.broadcast %38 : vector<1x8x8xi1> to vector<2x8x8xi1>
    %40 = vector.broadcast %cst_13 : f32 to vector<2x8x8xf32>
    %41 = arith.select %39, %37, %40 : vector<2x8x8xi1>, vector<2x8x8xf32>
    %cst_14 = arith.constant dense<0xFF800000> : vector<2x8xf32>
    %42 = vector.multi_reduction <maximumf>, %41, %cst_14 [2] : vector<2x8x8xf32> to vector<2x8xf32>
    %43 = vector.shape_cast %42 : vector<2x8xf32> to vector<2x8x1xf32>
    %44 = vector.broadcast %43 : vector<2x8x1xf32> to vector<2x8x8xf32>
    %45 = arith.subf %41, %44 : vector<2x8x8xf32>
    %46 = math.exp %45 : vector<2x8x8xf32>
    %cst_15 = arith.constant dense<0.000000e+00> : vector<2x8xf32>
    %47 = vector.multi_reduction <add>, %46, %cst_15 [2] : vector<2x8x8xf32> to vector<2x8xf32>
    %48 = vector.shape_cast %47 : vector<2x8xf32> to vector<2x8x1xf32>
    %49 = tpu.reciprocal %48 {approx = true} : vector<2x8x1xf32> -> vector<2x8x1xf32>
    %50 = vector.broadcast %49 : vector<2x8x1xf32> to vector<2x8x8xf32>
    %51 = arith.mulf %46, %50 : vector<2x8x8xf32>
    %52 = arith.truncf %51 : vector<2x8x8xf32> to vector<2x8x8xbf16>
    %cst_16 = arith.constant dense<0.000000e+00> : vector<2x8x64xf32>
    %53 = tpu.matmul %52, %36, %cst_16 {dimension_numbers = #tpu.dot_dimension_numbers<[2], [1], [1], [2], [0, 0, 0, 1, 1, 2], [0], [0]>} : vector<2x8x8xbf16>, vector<2x8x64xbf16>, vector<2x8x64xf32> -> vector<2x8x64xf32>
    %54 = vector.shape_cast %53 : vector<2x8x64xf32> to vector<16x64xf32>
    %55 = arith.truncf %54 : vector<16x64xf32> to vector<16x64xbf16>
    %c64 = arith.constant 64 : index
    %c0_17 = arith.constant 0 : index
    %56 = vector.load %arg3[%c64, %c0_17] : memref<384x384xbf16, #tpu.memory_space<vmem>>, vector<64x384xbf16>
    %cst_18 = arith.constant dense<0.000000e+00> : vector<16x384xf32>
    %57 = tpu.matmul %55, %56, %cst_18 {dimension_numbers = #tpu.dot_dimension_numbers<[1], [0], [0], [1], [0, 0, 1, 1], [], []>} : vector<16x64xbf16>, vector<64x384xbf16>, vector<16x384xf32> -> vector<16x384xf32>
    %58 = arith.addf %33, %57 : vector<16x384xf32>
    %59 = vector.extract_strided_slice %5 {offsets = [0, 0, 128], sizes = [2, 8, 64], strides = [1, 1, 1]} : vector<2x8x1152xbf16> to vector<2x8x64xbf16>
    %60 = vector.extract_strided_slice %5 {offsets = [0, 0, 512], sizes = [2, 8, 64], strides = [1, 1, 1]} : vector<2x8x1152xbf16> to vector<2x8x64xbf16>
    %61 = vector.extract_strided_slice %5 {offsets = [0, 0, 896], sizes = [2, 8, 64], strides = [1, 1, 1]} : vector<2x8x1152xbf16> to vector<2x8x64xbf16>
    %cst_19 = arith.constant dense<0.000000e+00> : vector<2x8x8xf32>
    %62 = tpu.matmul %59, %60, %cst_19 {dimension_numbers = #tpu.dot_dimension_numbers<[2], [2], [1], [1], [0, 0, 0, 1, 1, 1], [0], [0]>} : vector<2x8x64xbf16>, vector<2x8x64xbf16>, vector<2x8x8xf32> -> vector<2x8x8xf32>
    %cst_20 = arith.constant -1.000000e+30 : f32
    %63 = vector.shape_cast %9 : vector<1x8x8xi1> to vector<1x8x8xi1>
    %64 = vector.broadcast %63 : vector<1x8x8xi1> to vector<2x8x8xi1>
    %65 = vector.broadcast %cst_20 : f32 to vector<2x8x8xf32>
    %66 = arith.select %64, %62, %65 : vector<2x8x8xi1>, vector<2x8x8xf32>
    %cst_21 = arith.constant dense<0xFF800000> : vector<2x8xf32>
    %67 = vector.multi_reduction <maximumf>, %66, %cst_21 [2] : vector<2x8x8xf32> to vector<2x8xf32>
    %68 = vector.shape_cast %67 : vector<2x8xf32> to vector<2x8x1xf32>
    %69 = vector.broadcast %68 : vector<2x8x1xf32> to vector<2x8x8xf32>
    %70 = arith.subf %66, %69 : vector<2x8x8xf32>
    %71 = math.exp %70 : vector<2x8x8xf32>
    %cst_22 = arith.constant dense<0.000000e+00> : vector<2x8xf32>
    %72 = vector.multi_reduction <add>, %71, %cst_22 [2] : vector<2x8x8xf32> to vector<2x8xf32>
    %73 = vector.shape_cast %72 : vector<2x8xf32> to vector<2x8x1xf32>
    %74 = tpu.reciprocal %73 {approx = true} : vector<2x8x1xf32> -> vector<2x8x1xf32>
    %75 = vector.broadcast %74 : vector<2x8x1xf32> to vector<2x8x8xf32>
    %76 = arith.mulf %71, %75 : vector<2x8x8xf32>
    %77 = arith.truncf %76 : vector<2x8x8xf32> to vector<2x8x8xbf16>
    %cst_23 = arith.constant dense<0.000000e+00> : vector<2x8x64xf32>
    %78 = tpu.matmul %77, %61, %cst_23 {dimension_numbers = #tpu.dot_dimension_numbers<[2], [1], [1], [2], [0, 0, 0, 1, 1, 2], [0], [0]>} : vector<2x8x8xbf16>, vector<2x8x64xbf16>, vector<2x8x64xf32> -> vector<2x8x64xf32>
    %79 = vector.shape_cast %78 : vector<2x8x64xf32> to vector<16x64xf32>
    %80 = arith.truncf %79 : vector<16x64xf32> to vector<16x64xbf16>
    %c128 = arith.constant 128 : index
    %c0_24 = arith.constant 0 : index
    %81 = vector.load %arg3[%c128, %c0_24] : memref<384x384xbf16, #tpu.memory_space<vmem>>, vector<64x384xbf16>
    %cst_25 = arith.constant dense<0.000000e+00> : vector<16x384xf32>
    %82 = tpu.matmul %80, %81, %cst_25 {dimension_numbers = #tpu.dot_dimension_numbers<[1], [0], [0], [1], [0, 0, 1, 1], [], []>} : vector<16x64xbf16>, vector<64x384xbf16>, vector<16x384xf32> -> vector<16x384xf32>
    %83 = arith.addf %58, %82 : vector<16x384xf32>
    %84 = vector.extract_strided_slice %5 {offsets = [0, 0, 192], sizes = [2, 8, 64], strides = [1, 1, 1]} : vector<2x8x1152xbf16> to vector<2x8x64xbf16>
    %85 = vector.extract_strided_slice %5 {offsets = [0, 0, 576], sizes = [2, 8, 64], strides = [1, 1, 1]} : vector<2x8x1152xbf16> to vector<2x8x64xbf16>
    %86 = vector.extract_strided_slice %5 {offsets = [0, 0, 960], sizes = [2, 8, 64], strides = [1, 1, 1]} : vector<2x8x1152xbf16> to vector<2x8x64xbf16>
    %cst_26 = arith.constant dense<0.000000e+00> : vector<2x8x8xf32>
    %87 = tpu.matmul %84, %85, %cst_26 {dimension_numbers = #tpu.dot_dimension_numbers<[2], [2], [1], [1], [0, 0, 0, 1, 1, 1], [0], [0]>} : vector<2x8x64xbf16>, vector<2x8x64xbf16>, vector<2x8x8xf32> -> vector<2x8x8xf32>
    %cst_27 = arith.constant -1.000000e+30 : f32
    %88 = vector.shape_cast %9 : vector<1x8x8xi1> to vector<1x8x8xi1>
    %89 = vector.broadcast %88 : vector<1x8x8xi1> to vector<2x8x8xi1>
    %90 = vector.broadcast %cst_27 : f32 to vector<2x8x8xf32>
    %91 = arith.select %89, %87, %90 : vector<2x8x8xi1>, vector<2x8x8xf32>
    %cst_28 = arith.constant dense<0xFF800000> : vector<2x8xf32>
    %92 = vector.multi_reduction <maximumf>, %91, %cst_28 [2] : vector<2x8x8xf32> to vector<2x8xf32>
    %93 = vector.shape_cast %92 : vector<2x8xf32> to vector<2x8x1xf32>
    %94 = vector.broadcast %93 : vector<2x8x1xf32> to vector<2x8x8xf32>
    %95 = arith.subf %91, %94 : vector<2x8x8xf32>
    %96 = math.exp %95 : vector<2x8x8xf32>
    %cst_29 = arith.constant dense<0.000000e+00> : vector<2x8xf32>
    %97 = vector.multi_reduction <add>, %96, %cst_29 [2] : vector<2x8x8xf32> to vector<2x8xf32>
    %98 = vector.shape_cast %97 : vector<2x8xf32> to vector<2x8x1xf32>
    %99 = tpu.reciprocal %98 {approx = true} : vector<2x8x1xf32> -> vector<2x8x1xf32>
    %100 = vector.broadcast %99 : vector<2x8x1xf32> to vector<2x8x8xf32>
    %101 = arith.mulf %96, %100 : vector<2x8x8xf32>
    %102 = arith.truncf %101 : vector<2x8x8xf32> to vector<2x8x8xbf16>
    %cst_30 = arith.constant dense<0.000000e+00> : vector<2x8x64xf32>
    %103 = tpu.matmul %102, %86, %cst_30 {dimension_numbers = #tpu.dot_dimension_numbers<[2], [1], [1], [2], [0, 0, 0, 1, 1, 2], [0], [0]>} : vector<2x8x8xbf16>, vector<2x8x64xbf16>, vector<2x8x64xf32> -> vector<2x8x64xf32>
    %104 = vector.shape_cast %103 : vector<2x8x64xf32> to vector<16x64xf32>
    %105 = arith.truncf %104 : vector<16x64xf32> to vector<16x64xbf16>
    %c192 = arith.constant 192 : index
    %c0_31 = arith.constant 0 : index
    %106 = vector.load %arg3[%c192, %c0_31] : memref<384x384xbf16, #tpu.memory_space<vmem>>, vector<64x384xbf16>
    %cst_32 = arith.constant dense<0.000000e+00> : vector<16x384xf32>
    %107 = tpu.matmul %105, %106, %cst_32 {dimension_numbers = #tpu.dot_dimension_numbers<[1], [0], [0], [1], [0, 0, 1, 1], [], []>} : vector<16x64xbf16>, vector<64x384xbf16>, vector<16x384xf32> -> vector<16x384xf32>
    %108 = arith.addf %83, %107 : vector<16x384xf32>
    %109 = vector.extract_strided_slice %5 {offsets = [0, 0, 256], sizes = [2, 8, 64], strides = [1, 1, 1]} : vector<2x8x1152xbf16> to vector<2x8x64xbf16>
    %110 = vector.extract_strided_slice %5 {offsets = [0, 0, 640], sizes = [2, 8, 64], strides = [1, 1, 1]} : vector<2x8x1152xbf16> to vector<2x8x64xbf16>
    %111 = vector.extract_strided_slice %5 {offsets = [0, 0, 1024], sizes = [2, 8, 64], strides = [1, 1, 1]} : vector<2x8x1152xbf16> to vector<2x8x64xbf16>
    %cst_33 = arith.constant dense<0.000000e+00> : vector<2x8x8xf32>
    %112 = tpu.matmul %109, %110, %cst_33 {dimension_numbers = #tpu.dot_dimension_numbers<[2], [2], [1], [1], [0, 0, 0, 1, 1, 1], [0], [0]>} : vector<2x8x64xbf16>, vector<2x8x64xbf16>, vector<2x8x8xf32> -> vector<2x8x8xf32>
    %cst_34 = arith.constant -1.000000e+30 : f32
    %113 = vector.shape_cast %9 : vector<1x8x8xi1> to vector<1x8x8xi1>
    %114 = vector.broadcast %113 : vector<1x8x8xi1> to vector<2x8x8xi1>
    %115 = vector.broadcast %cst_34 : f32 to vector<2x8x8xf32>
    %116 = arith.select %114, %112, %115 : vector<2x8x8xi1>, vector<2x8x8xf32>
    %cst_35 = arith.constant dense<0xFF800000> : vector<2x8xf32>
    %117 = vector.multi_reduction <maximumf>, %116, %cst_35 [2] : vector<2x8x8xf32> to vector<2x8xf32>
    %118 = vector.shape_cast %117 : vector<2x8xf32> to vector<2x8x1xf32>
    %119 = vector.broadcast %118 : vector<2x8x1xf32> to vector<2x8x8xf32>
    %120 = arith.subf %116, %119 : vector<2x8x8xf32>
    %121 = math.exp %120 : vector<2x8x8xf32>
    %cst_36 = arith.constant dense<0.000000e+00> : vector<2x8xf32>
    %122 = vector.multi_reduction <add>, %121, %cst_36 [2] : vector<2x8x8xf32> to vector<2x8xf32>
    %123 = vector.shape_cast %122 : vector<2x8xf32> to vector<2x8x1xf32>
    %124 = tpu.reciprocal %123 {approx = true} : vector<2x8x1xf32> -> vector<2x8x1xf32>
    %125 = vector.broadcast %124 : vector<2x8x1xf32> to vector<2x8x8xf32>
    %126 = arith.mulf %121, %125 : vector<2x8x8xf32>
    %127 = arith.truncf %126 : vector<2x8x8xf32> to vector<2x8x8xbf16>
    %cst_37 = arith.constant dense<0.000000e+00> : vector<2x8x64xf32>
    %128 = tpu.matmul %127, %111, %cst_37 {dimension_numbers = #tpu.dot_dimension_numbers<[2], [1], [1], [2], [0, 0, 0, 1, 1, 2], [0], [0]>} : vector<2x8x8xbf16>, vector<2x8x64xbf16>, vector<2x8x64xf32> -> vector<2x8x64xf32>
    %129 = vector.shape_cast %128 : vector<2x8x64xf32> to vector<16x64xf32>
    %130 = arith.truncf %129 : vector<16x64xf32> to vector<16x64xbf16>
    %c256 = arith.constant 256 : index
    %c0_38 = arith.constant 0 : index
    %131 = vector.load %arg3[%c256, %c0_38] : memref<384x384xbf16, #tpu.memory_space<vmem>>, vector<64x384xbf16>
    %cst_39 = arith.constant dense<0.000000e+00> : vector<16x384xf32>
    %132 = tpu.matmul %130, %131, %cst_39 {dimension_numbers = #tpu.dot_dimension_numbers<[1], [0], [0], [1], [0, 0, 1, 1], [], []>} : vector<16x64xbf16>, vector<64x384xbf16>, vector<16x384xf32> -> vector<16x384xf32>
    %133 = arith.addf %108, %132 : vector<16x384xf32>
    %134 = vector.extract_strided_slice %5 {offsets = [0, 0, 320], sizes = [2, 8, 64], strides = [1, 1, 1]} : vector<2x8x1152xbf16> to vector<2x8x64xbf16>
    %135 = vector.extract_strided_slice %5 {offsets = [0, 0, 704], sizes = [2, 8, 64], strides = [1, 1, 1]} : vector<2x8x1152xbf16> to vector<2x8x64xbf16>
    %136 = vector.extract_strided_slice %5 {offsets = [0, 0, 1088], sizes = [2, 8, 64], strides = [1, 1, 1]} : vector<2x8x1152xbf16> to vector<2x8x64xbf16>
    %cst_40 = arith.constant dense<0.000000e+00> : vector<2x8x8xf32>
    %137 = tpu.matmul %134, %135, %cst_40 {dimension_numbers = #tpu.dot_dimension_numbers<[2], [2], [1], [1], [0, 0, 0, 1, 1, 1], [0], [0]>} : vector<2x8x64xbf16>, vector<2x8x64xbf16>, vector<2x8x8xf32> -> vector<2x8x8xf32>
    %cst_41 = arith.constant -1.000000e+30 : f32
    %138 = vector.shape_cast %9 : vector<1x8x8xi1> to vector<1x8x8xi1>
    %139 = vector.broadcast %138 : vector<1x8x8xi1> to vector<2x8x8xi1>
    %140 = vector.broadcast %cst_41 : f32 to vector<2x8x8xf32>
    %141 = arith.select %139, %137, %140 : vector<2x8x8xi1>, vector<2x8x8xf32>
    %cst_42 = arith.constant dense<0xFF800000> : vector<2x8xf32>
    %142 = vector.multi_reduction <maximumf>, %141, %cst_42 [2] : vector<2x8x8xf32> to vector<2x8xf32>
    %143 = vector.shape_cast %142 : vector<2x8xf32> to vector<2x8x1xf32>
    %144 = vector.broadcast %143 : vector<2x8x1xf32> to vector<2x8x8xf32>
    %145 = arith.subf %141, %144 : vector<2x8x8xf32>
    %146 = math.exp %145 : vector<2x8x8xf32>
    %cst_43 = arith.constant dense<0.000000e+00> : vector<2x8xf32>
    %147 = vector.multi_reduction <add>, %146, %cst_43 [2] : vector<2x8x8xf32> to vector<2x8xf32>
    %148 = vector.shape_cast %147 : vector<2x8xf32> to vector<2x8x1xf32>
    %149 = tpu.reciprocal %148 {approx = true} : vector<2x8x1xf32> -> vector<2x8x1xf32>
    %150 = vector.broadcast %149 : vector<2x8x1xf32> to vector<2x8x8xf32>
    %151 = arith.mulf %146, %150 : vector<2x8x8xf32>
    %152 = arith.truncf %151 : vector<2x8x8xf32> to vector<2x8x8xbf16>
    %cst_44 = arith.constant dense<0.000000e+00> : vector<2x8x64xf32>
    %153 = tpu.matmul %152, %136, %cst_44 {dimension_numbers = #tpu.dot_dimension_numbers<[2], [1], [1], [2], [0, 0, 0, 1, 1, 2], [0], [0]>} : vector<2x8x8xbf16>, vector<2x8x64xbf16>, vector<2x8x64xf32> -> vector<2x8x64xf32>
    %154 = vector.shape_cast %153 : vector<2x8x64xf32> to vector<16x64xf32>
    %155 = arith.truncf %154 : vector<16x64xf32> to vector<16x64xbf16>
    %c320 = arith.constant 320 : index
    %c0_45 = arith.constant 0 : index
    %156 = vector.load %arg3[%c320, %c0_45] : memref<384x384xbf16, #tpu.memory_space<vmem>>, vector<64x384xbf16>
    %cst_46 = arith.constant dense<0.000000e+00> : vector<16x384xf32>
    %157 = tpu.matmul %155, %156, %cst_46 {dimension_numbers = #tpu.dot_dimension_numbers<[1], [0], [0], [1], [0, 0, 1, 1], [], []>} : vector<16x64xbf16>, vector<64x384xbf16>, vector<16x384xf32> -> vector<16x384xf32>
    %158 = arith.addf %133, %157 : vector<16x384xf32>
    %c0_47 = arith.constant 0 : index
    %c0_48 = arith.constant 0 : index
    %159 = vector.load %arg4[%c0_47, %c0_48] : memref<1x384xf32, #tpu.memory_space<vmem>>, vector<1x384xf32>
    %160 = vector.broadcast %159 : vector<1x384xf32> to vector<16x384xf32>
    %161 = arith.addf %158, %160 : vector<16x384xf32>
    %162 = vector.shape_cast %161 : vector<16x384xf32> to vector<2x8x384xf32>
    %163 = arith.truncf %162 : vector<2x8x384xf32> to vector<2x8x384xbf16>
    %c0_49 = arith.constant 0 : index
    %c0_50 = arith.constant 0 : index
    %c0_51 = arith.constant 0 : index
    %164 = vector.load %arg5[%c0_49, %c0_50, %c0_51] : memref<2x8x384xbf16, #tpu.memory_space<vmem>>, vector<2x8x384xbf16>
    tpu.vector_store %arg5[%c0_49, %c0_50, %c0_51], %163 {strides = array<i32>} : memref<2x8x384xbf16, #tpu.memory_space<vmem>>, vector<2x8x384xbf16>,
    return
  }
  func.func @transform_0(%arg0: i32) -> (i32, i32, i32) {
    %c0_i32 = arith.constant 0 : i32
    %c0_i32_0 = arith.constant 0 : i32
    %c0_i32_1 = arith.constant 0 : i32
    return %arg0, %c0_i32, %c0_i32_0 : i32, i32, i32
  }
  func.func @transform_1(%arg0: i32) -> (i32, i32) {
    %c0_i32 = arith.constant 0 : i32
    %c0_i32_0 = arith.constant 0 : i32
    %c0_i32_1 = arith.constant 0 : i32
    return %c0_i32, %c0_i32_0 : i32, i32
  }
  func.func @transform_2(%arg0: i32) -> (i32, i32) {
    %c0_i32 = arith.constant 0 : i32
    %c0_i32_0 = arith.constant 0 : i32
    %c0_i32_1 = arith.constant 0 : i32
    return %c0_i32, %c0_i32_0 : i32, i32
  }
  func.func @transform_3(%arg0: i32) -> (i32, i32) {
    %c0_i32 = arith.constant 0 : i32
    %c0_i32_0 = arith.constant 0 : i32
    %c0_i32_1 = arith.constant 0 : i32
    return %c0_i32, %c0_i32_0 : i32, i32
  }
  func.func @transform_4(%arg0: i32) -> (i32, i32, i32) {
    %c0_i32 = arith.constant 0 : i32
    %c0_i32_0 = arith.constant 0 : i32
    %c0_i32_1 = arith.constant 0 : i32
    return %arg0, %c0_i32, %c0_i32_0 : i32, i32, i32
  }
}

</mosaic_0001>

<llo_original>
// kernel: tpu_custom_call.1
$region0: #{tpu_custom_call.1}
  #allocation0 [shape = 'u32[]', space=smem, size = 0x4, offset = 0x4, fixed_abs, tag = 'smem constant byte address 0x4 - core index']
  #allocation1 [shape = 'u32[144,128]{1,0:T(1,128)}', space=vmem, size = 0x12000, scoped, tag = 'internal scratch']
  %s0 = inlined_call_operand.hbm [shape: bf16[2,8,384], index: 0, kind: input, shape index: {}]
  %s1 = inlined_call_operand.hbm [shape: bf16[384,1152], index: 1, kind: input, shape index: {}]
  %s2 = inlined_call_operand.hbm [shape: bf16[384,384], index: 2, kind: input, shape index: {}]
  %s3 = inlined_call_operand.vmem [shape: f32[1,384], index: 3, kind: input, shape index: {}]
  %s4 = inlined_call_operand.hbm [shape: bf16[2,8,384], index: 4, kind: output, shape index: {}]
  %s5 = sld [smem:[#allocation0]]
  $region38: #{tpu_custom_call.1} parent=0
    _
  %s7 = ssub.s32 1, %s5
  %s8 = scalar_select 0, %s7, %s5
  $region1: #{tpu_custom_call.1} parent=0
    #allocation2 [shape = 'u8[12288]{0}', space=vmem, size = 0x3000, scoped, tag = 'input window, operand 0, single buffered']
    #allocation3 [shape = 's32[1]{0}', space=sflag, size = 0x4, scoped, tag = 'scoped memory for tpu_custom_call.1']
    #allocation4 [shape = 's32[1]{0}', space=sflag, size = 0x4, scoped, tag = 'scoped memory for tpu_custom_call.1']
    #allocation5 [shape = 'u8[884736]{0}', space=vmem, size = 0xd8000, scoped, tag = 'input window, operand 1, single buffered']
    #allocation6 [shape = 's32[1]{0}', space=sflag, size = 0x4, scoped, tag = 'scoped memory for tpu_custom_call.1']
    #allocation7 [shape = 'u8[294912]{0}', space=vmem, size = 0x48000, scoped, tag = 'input window, operand 2, single buffered']
    #allocation8 [shape = 'u8[12288]{0}', space=vmem, size = 0x3000, scoped, tag = 'output window, operand 0, single buffered']
    %9 = vsyncpa [#allocation3], 0
    %10 = vsyncpa [#allocation6], 0
    %11 = vsyncpa [#allocation4], 0
    // Predicated region
    $region2: #{tpu_custom_call.1} parent=1 // pred_check
      _
    $region3: #{tpu_custom_call.1} parent=1 // pred_check_branch
      %13 = sbr.rel (0) target = $region5
    $region4: #{tpu_custom_call.1} parent=1 // pred_region
      %s15 = ssub.s32 384, 384
      %16 = vsyncadd [#allocation3], %s15
      %s17 = sshll.u32 [#allocation2], 4
      %s18 = int_to_ptr.vmem [resolvable:$true] %s17
      %23 = dma.hbm_to_vmem [thread:$0]  %s0, 384, %s18, [#allocation3], 192, 192, 12
    $region5: #{tpu_custom_call.1} parent=1 // pred_fallthru
      _
    // Predicated region
    $region6: #{tpu_custom_call.1} parent=1 // pred_check
      _
    $region7: #{tpu_custom_call.1} parent=1 // pred_check_branch
      %25 = sbr.rel (0) target = $region9
    $region8: #{tpu_custom_call.1} parent=1 // pred_region
      %s27 = ssub.s32 27648, 27648
      %28 = vsyncadd [#allocation6], %s27
      %s29 = sshll.u32 [#allocation5], 4
      %s30 = int_to_ptr.vmem [resolvable:$true] %s29
      %35 = dma.hbm_to_vmem [thread:$0]  %s1, 27648, %s30, [#allocation6], 576, 576, 36
    $region9: #{tpu_custom_call.1} parent=1 // pred_fallthru
      _
    // Predicated region
    $region10: #{tpu_custom_call.1} parent=1 // pred_check
      _
    $region11: #{tpu_custom_call.1} parent=1 // pred_check_branch
      %37 = sbr.rel (0) target = $region13
    $region12: #{tpu_custom_call.1} parent=1 // pred_region
      %s39 = ssub.s32 9216, 9216
      %40 = vsyncadd [#allocation6], %s39
      %s41 = sshll.u32 [#allocation7], 4
      %s42 = int_to_ptr.vmem [resolvable:$true] %s41
      %47 = dma.hbm_to_vmem [thread:$0]  %s2, 9216, %s42, [#allocation6], 192, 192, 12
    $region13: #{tpu_custom_call.1} parent=1 // pred_fallthru
      _
    // Predicated region
    $region14: #{tpu_custom_call.1} parent=1 // pred_check
      _
    $region15: #{tpu_custom_call.1} parent=1 // pred_check_branch
      %49 = sbr.rel (0) target = $region17
    $region16: #{tpu_custom_call.1} parent=1 // pred_region
      _
    $region17: #{tpu_custom_call.1} parent=1 // pred_fallthru
      _
    // Predicated region
    $region18: #{tpu_custom_call.1} parent=1 // pred_check
      _
    $region19: #{tpu_custom_call.1} parent=1 // pred_check_branch
      %51 = sbr.rel (0) target = $region21
    $region20: #{tpu_custom_call.1} parent=1 // pred_region
      %52 = dma.done [#allocation3], 384
    $region21: #{tpu_custom_call.1} parent=1 // pred_fallthru
      _
    // Predicated region
    $region22: #{tpu_custom_call.1} parent=1 // pred_check
      _
    $region23: #{tpu_custom_call.1} parent=1 // pred_check_branch
      %54 = sbr.rel (0) target = $region25
    $region24: #{tpu_custom_call.1} parent=1 // pred_region
      %55 = dma.done [#allocation6], 27648
    $region25: #{tpu_custom_call.1} parent=1 // pred_fallthru
      _
    // Predicated region
    $region26: #{tpu_custom_call.1} parent=1 // pred_check
      _
    $region27: #{tpu_custom_call.1} parent=1 // pred_check_branch
      %57 = sbr.rel (0) target = $region29
    $region28: #{tpu_custom_call.1} parent=1 // pred_region
      %58 = dma.done [#allocation6], 9216
    $region29: #{tpu_custom_call.1} parent=1 // pred_fallthru
      _
    %v60 = vld [vmem:[#allocation2] sm:$0xff]
    %v61 = vld [vmem:[#allocation2 + $0x8] sm:$0xf]
    %v62 = vld [vmem:[#allocation2 + $0xc] sm:$0xff]
    %v63 = vld [vmem:[#allocation2 + $0x14] sm:$0xf]
    %v64 = vld [vmem:[#allocation5] sm:$0xff]
    %v65 = vld [vmem:[#allocation5 + $0x8] sm:$0xff]
    %v66 = vld [vmem:[#allocation5 + $0x10] sm:$0xff]
    %v67 = vld [vmem:[#allocation5 + $0x18] sm:$0xff]
    %v68 = vld [vmem:[#allocation5 + $0x20] sm:$0xf]
    %v69 = vld [vmem:[#allocation5 + $0x24] sm:$0xff]
    %v70 = vld [vmem:[#allocation5 + $0x2c] sm:$0xff]
    %v71 = vld [vmem:[#allocation5 + $0x34] sm:$0xff]
    %v72 = vld [vmem:[#allocation5 + $0x3c] sm:$0xff]
    %v73 = vld [vmem:[#allocation5 + $0x44] sm:$0xf]
    %v74 = vld [vmem:[#allocation5 + $0x48] sm:$0xff]
    %v75 = vld [vmem:[#allocation5 + $0x50] sm:$0xff]
    %v76 = vld [vmem:[#allocation5 + $0x58] sm:$0xff]
    %v77 = vld [vmem:[#allocation5 + $0x60] sm:$0xff]
    %v78 = vld [vmem:[#allocation5 + $0x68] sm:$0xf]
    %v79 = vld [vmem:[#allocation5 + $0x6c] sm:$0xff]
    %v80 = vld [vmem:[#allocation5 + $0x74] sm:$0xff]
    %v81 = vld [vmem:[#allocation5 + $0x7c] sm:$0xff]
    %v82 = vld [vmem:[#allocation5 + $0x84] sm:$0xff]
    %v83 = vld [vmem:[#allocation5 + $0x8c] sm:$0xf]
    %v84 = vld [vmem:[#allocation5 + $0x90] sm:$0xff]
    %v85 = vld [vmem:[#allocation5 + $0x98] sm:$0xff]
    %v86 = vld [vmem:[#allocation5 + $0xa0] sm:$0xff]
    %v87 = vld [vmem:[#allocation5 + $0xa8] sm:$0xff]
    %v88 = vld [vmem:[#allocation5 + $0xb0] sm:$0xf]
    %v89 = vld [vmem:[#allocation5 + $0xb4] sm:$0xff]
    %v90 = vld [vmem:[#allocation5 + $0xbc] sm:$0xff]
    %v91 = vld [vmem:[#allocation5 + $0xc4] sm:$0xff]
    %v92 = vld [vmem:[#allocation5 + $0xcc] sm:$0xff]
    %v93 = vld [vmem:[#allocation5 + $0xd4] sm:$0xf]
    %v94 = vld [vmem:[#allocation5 + $0xd8] sm:$0xff]
    %v95 = vld [vmem:[#allocation5 + $0xe0] sm:$0xff]
    %v96 = vld [vmem:[#allocation5 + $0xe8] sm:$0xff]
    %v97 = vld [vmem:[#allocation5 + $0xf0] sm:$0xff]
    %v98 = vld [vmem:[#allocation5 + $0xf8] sm:$0xf]
    %v99 = vld [vmem:[#allocation5 + $0xfc] sm:$0xff]
    %v100 = vld [vmem:[#allocation5 + $0x104] sm:$0xff]
    %v101 = vld [vmem:[#allocation5 + $0x10c] sm:$0xff]
    %v102 = vld [vmem:[#allocation5 + $0x114] sm:$0xff]
    %v103 = vld [vmem:[#allocation5 + $0x11c] sm:$0xf]
    %v104 = vld [vmem:[#allocation5 + $0x120] sm:$0xff]
    %v105 = vld [vmem:[#allocation5 + $0x128] sm:$0xff]
    %v106 = vld [vmem:[#allocation5 + $0x130] sm:$0xff]
    %v107 = vld [vmem:[#allocation5 + $0x138] sm:$0xff]
    %v108 = vld [vmem:[#allocation5 + $0x140] sm:$0xf]
    %v109 = vld [vmem:[#allocation5 + $0x144] sm:$0xff]
    %v110 = vld [vmem:[#allocation5 + $0x14c] sm:$0xff]
    %v111 = vld [vmem:[#allocation5 + $0x154] sm:$0xff]
    %v112 = vld [vmem:[#allocation5 + $0x15c] sm:$0xff]
    %v113 = vld [vmem:[#allocation5 + $0x164] sm:$0xf]
    %v114 = vld [vmem:[#allocation5 + $0x168] sm:$0xff]
    %v115 = vld [vmem:[#allocation5 + $0x170] sm:$0xff]
    %v116 = vld [vmem:[#allocation5 + $0x178] sm:$0xff]
    %v117 = vld [vmem:[#allocation5 + $0x180] sm:$0xff]
    %v118 = vld [vmem:[#allocation5 + $0x188] sm:$0xf]
    %v119 = vld [vmem:[#allocation5 + $0x18c] sm:$0xff]
    %v120 = vld [vmem:[#allocation5 + $0x194] sm:$0xff]
    %v121 = vld [vmem:[#allocation5 + $0x19c] sm:$0xff]
    %v122 = vld [vmem:[#allocation5 + $0x1a4] sm:$0xff]
    %v123 = vld [vmem:[#allocation5 + $0x1ac] sm:$0xf]
    %v124 = vld [vmem:[#allocation5 + $0x1b0] sm:$0xff]
    %v125 = vld [vmem:[#allocation5 + $0x1b8] sm:$0xff]
    %v126 = vld [vmem:[#allocation5 + $0x1c0] sm:$0xff]
    %v127 = vld [vmem:[#allocation5 + $0x1c8] sm:$0xff]
    %v128 = vld [vmem:[#allocation5 + $0x1d0] sm:$0xf]
    %v129 = vld [vmem:[#allocation5 + $0x1d4] sm:$0xff]
    %v130 = vld [vmem:[#allocation5 + $0x1dc] sm:$0xff]
    %v131 = vld [vmem:[#allocation5 + $0x1e4] sm:$0xff]
    %v132 = vld [vmem:[#allocation5 + $0x1ec] sm:$0xff]
    %v133 = vld [vmem:[#allocation5 + $0x1f4] sm:$0xf]
    %v134 = vld [vmem:[#allocation5 + $0x1f8] sm:$0xff]
    %v135 = vld [vmem:[#allocation5 + $0x200] sm:$0xff]
    %v136 = vld [vmem:[#allocation5 + $0x208] sm:$0xff]
    %v137 = vld [vmem:[#allocation5 + $0x210] sm:$0xff]
    %v138 = vld [vmem:[#allocation5 + $0x218] sm:$0xf]
    %v139 = vld [vmem:[#allocation5 + $0x21c] sm:$0xff]
    %v140 = vld [vmem:[#allocation5 + $0x224] sm:$0xff]
    %v141 = vld [vmem:[#allocation5 + $0x22c] sm:$0xff]
    %v142 = vld [vmem:[#allocation5 + $0x234] sm:$0xff]
    %v143 = vld [vmem:[#allocation5 + $0x23c] sm:$0xf]
    %v144 = vld [vmem:[#allocation5 + $0x240] sm:$0xff]
    %v145 = vld [vmem:[#allocation5 + $0x248] sm:$0xff]
    %v146 = vld [vmem:[#allocation5 + $0x250] sm:$0xff]
    %v147 = vld [vmem:[#allocation5 + $0x258] sm:$0xff]
    %v148 = vld [vmem:[#allocation5 + $0x260] sm:$0xf]
    %v149 = vld [vmem:[#allocation5 + $0x264] sm:$0xff]
    %v150 = vld [vmem:[#allocation5 + $0x26c] sm:$0xff]
    %v151 = vld [vmem:[#allocation5 + $0x274] sm:$0xff]
    %v152 = vld [vmem:[#allocation5 + $0x27c] sm:$0xff]
    %v153 = vld [vmem:[#allocation5 + $0x284] sm:$0xf]
    %v154 = vld [vmem:[#allocation5 + $0x288] sm:$0xff]
    %v155 = vld [vmem:[#allocation5 + $0x290] sm:$0xff]
    %v156 = vld [vmem:[#allocation5 + $0x298] sm:$0xff]
    %v157 = vld [vmem:[#allocation5 + $0x2a0] sm:$0xff]
    %v158 = vld [vmem:[#allocation5 + $0x2a8] sm:$0xf]
    %v159 = vld [vmem:[#allocation5 + $0x2ac] sm:$0xff]
    %v160 = vld [vmem:[#allocation5 + $0x2b4] sm:$0xff]
    %v161 = vld [vmem:[#allocation5 + $0x2bc] sm:$0xff]
    %v162 = vld [vmem:[#allocation5 + $0x2c4] sm:$0xff]
    %v163 = vld [vmem:[#allocation5 + $0x2cc] sm:$0xf]
    %v164 = vld [vmem:[#allocation5 + $0x2d0] sm:$0xff]
    %v165 = vld [vmem:[#allocation5 + $0x2d8] sm:$0xff]
    %v166 = vld [vmem:[#allocation5 + $0x2e0] sm:$0xff]
    %v167 = vld [vmem:[#allocation5 + $0x2e8] sm:$0xff]
    %v168 = vld [vmem:[#allocation5 + $0x2f0] sm:$0xf]
    %v169 = vld [vmem:[#allocation5 + $0x2f4] sm:$0xff]
    %v170 = vld [vmem:[#allocation5 + $0x2fc] sm:$0xff]
    %v171 = vld [vmem:[#allocation5 + $0x304] sm:$0xff]
    %v172 = vld [vmem:[#allocation5 + $0x30c] sm:$0xff]
    %v173 = vld [vmem:[#allocation5 + $0x314] sm:$0xf]
    %v174 = vld [vmem:[#allocation5 + $0x318] sm:$0xff]
    %v175 = vld [vmem:[#allocation5 + $0x320] sm:$0xff]
    %v176 = vld [vmem:[#allocation5 + $0x328] sm:$0xff]
    %v177 = vld [vmem:[#allocation5 + $0x330] sm:$0xff]
    %v178 = vld [vmem:[#allocation5 + $0x338] sm:$0xf]
    %v179 = vld [vmem:[#allocation5 + $0x33c] sm:$0xff]
    %v180 = vld [vmem:[#allocation5 + $0x344] sm:$0xff]
    %v181 = vld [vmem:[#allocation5 + $0x34c] sm:$0xff]
    %v182 = vld [vmem:[#allocation5 + $0x354] sm:$0xff]
    %v183 = vld [vmem:[#allocation5 + $0x35c] sm:$0xf]
    %v184 = vld [vmem:[#allocation5 + $0x360] sm:$0xff]
    %v185 = vld [vmem:[#allocation5 + $0x368] sm:$0xff]
    %v186 = vld [vmem:[#allocation5 + $0x370] sm:$0xff]
    %v187 = vld [vmem:[#allocation5 + $0x378] sm:$0xff]
    %v188 = vld [vmem:[#allocation5 + $0x380] sm:$0xf]
    %v189 = vld [vmem:[#allocation5 + $0x384] sm:$0xff]
    %v190 = vld [vmem:[#allocation5 + $0x38c] sm:$0xff]
    %v191 = vld [vmem:[#allocation5 + $0x394] sm:$0xff]
    %v192 = vld [vmem:[#allocation5 + $0x39c] sm:$0xff]
    %v193 = vld [vmem:[#allocation5 + $0x3a4] sm:$0xf]
    %v194 = vld [vmem:[#allocation5 + $0x3a8] sm:$0xff]
    %v195 = vld [vmem:[#allocation5 + $0x3b0] sm:$0xff]
    %v196 = vld [vmem:[#allocation5 + $0x3b8] sm:$0xff]
    %v197 = vld [vmem:[#allocation5 + $0x3c0] sm:$0xff]
    %v198 = vld [vmem:[#allocation5 + $0x3c8] sm:$0xf]
    %v199 = vld [vmem:[#allocation5 + $0x3cc] sm:$0xff]
    %v200 = vld [vmem:[#allocation5 + $0x3d4] sm:$0xff]
    %v201 = vld [vmem:[#allocation5 + $0x3dc] sm:$0xff]
    %v202 = vld [vmem:[#allocation5 + $0x3e4] sm:$0xff]
    %v203 = vld [vmem:[#allocation5 + $0x3ec] sm:$0xf]
    %v204 = vld [vmem:[#allocation5 + $0x3f0] sm:$0xff]
    %v205 = vld [vmem:[#allocation5 + $0x3f8] sm:$0xff]
    %v206 = vld [vmem:[#allocation5 + $0x400] sm:$0xff]
    %v207 = vld [vmem:[#allocation5 + $0x408] sm:$0xff]
    %v208 = vld [vmem:[#allocation5 + $0x410] sm:$0xf]
    %v209 = vld [vmem:[#allocation5 + $0x414] sm:$0xff]
    %v210 = vld [vmem:[#allocation5 + $0x41c] sm:$0xff]
    %v211 = vld [vmem:[#allocation5 + $0x424] sm:$0xff]
    %v212 = vld [vmem:[#allocation5 + $0x42c] sm:$0xff]
    %v213 = vld [vmem:[#allocation5 + $0x434] sm:$0xf]
    %v214 = vld [vmem:[#allocation5 + $0x438] sm:$0xff]
    %v215 = vld [vmem:[#allocation5 + $0x440] sm:$0xff]
    %v216 = vld [vmem:[#allocation5 + $0x448] sm:$0xff]
    %v217 = vld [vmem:[#allocation5 + $0x450] sm:$0xff]
    %v218 = vld [vmem:[#allocation5 + $0x458] sm:$0xf]
    %v219 = vld [vmem:[#allocation5 + $0x45c] sm:$0xff]
    %v220 = vld [vmem:[#allocation5 + $0x464] sm:$0xff]
    %v221 = vld [vmem:[#allocation5 + $0x46c] sm:$0xff]
    %v222 = vld [vmem:[#allocation5 + $0x474] sm:$0xff]
    %v223 = vld [vmem:[#allocation5 + $0x47c] sm:$0xf]
    %v224 = vld [vmem:[#allocation5 + $0x480] sm:$0xff]
    %v225 = vld [vmem:[#allocation5 + $0x488] sm:$0xff]
    %v226 = vld [vmem:[#allocation5 + $0x490] sm:$0xff]
    %v227 = vld [vmem:[#allocation5 + $0x498] sm:$0xff]
    %v228 = vld [vmem:[#allocation5 + $0x4a0] sm:$0xf]
    %v229 = vld [vmem:[#allocation5 + $0x4a4] sm:$0xff]
    %v230 = vld [vmem:[#allocation5 + $0x4ac] sm:$0xff]
    %v231 = vld [vmem:[#allocation5 + $0x4b4] sm:$0xff]
    %v232 = vld [vmem:[#allocation5 + $0x4bc] sm:$0xff]
    %v233 = vld [vmem:[#allocation5 + $0x4c4] sm:$0xf]
    %v234 = vld [vmem:[#allocation5 + $0x4c8] sm:$0xff]
    %v235 = vld [vmem:[#allocation5 + $0x4d0] sm:$0xff]
    %v236 = vld [vmem:[#allocation5 + $0x4d8] sm:$0xff]
    %v237 = vld [vmem:[#allocation5 + $0x4e0] sm:$0xff]
    %v238 = vld [vmem:[#allocation5 + $0x4e8] sm:$0xf]
    %v239 = vld [vmem:[#allocation5 + $0x4ec] sm:$0xff]
    %v240 = vld [vmem:[#allocation5 + $0x4f4] sm:$0xff]
    %v241 = vld [vmem:[#allocation5 + $0x4fc] sm:$0xff]
    %v242 = vld [vmem:[#allocation5 + $0x504] sm:$0xff]
    %v243 = vld [vmem:[#allocation5 + $0x50c] sm:$0xf]
    %v244 = vld [vmem:[#allocation5 + $0x510] sm:$0xff]
    %v245 = vld [vmem:[#allocation5 + $0x518] sm:$0xff]
    %v246 = vld [vmem:[#allocation5 + $0x520] sm:$0xff]
    %v247 = vld [vmem:[#allocation5 + $0x528] sm:$0xff]
    %v248 = vld [vmem:[#allocation5 + $0x530] sm:$0xf]
    %v249 = vld [vmem:[#allocation5 + $0x534] sm:$0xff]
    %v250 = vld [vmem:[#allocation5 + $0x53c] sm:$0xff]
    %v251 = vld [vmem:[#allocation5 + $0x544] sm:$0xff]
    %v252 = vld [vmem:[#allocation5 + $0x54c] sm:$0xff]
    %v253 = vld [vmem:[#allocation5 + $0x554] sm:$0xf]
    %v254 = vld [vmem:[#allocation5 + $0x558] sm:$0xff]
    %v255 = vld [vmem:[#allocation5 + $0x560] sm:$0xff]
    %v256 = vld [vmem:[#allocation5 + $0x568] sm:$0xff]
    %v257 = vld [vmem:[#allocation5 + $0x570] sm:$0xff]
    %v258 = vld [vmem:[#allocation5 + $0x578] sm:$0xf]
    %v259 = vld [vmem:[#allocation5 + $0x57c] sm:$0xff]
    %v260 = vld [vmem:[#allocation5 + $0x584] sm:$0xff]
    %v261 = vld [vmem:[#allocation5 + $0x58c] sm:$0xff]
    %v262 = vld [vmem:[#allocation5 + $0x594] sm:$0xff]
    %v263 = vld [vmem:[#allocation5 + $0x59c] sm:$0xf]
    %v264 = vld [vmem:[#allocation5 + $0x5a0] sm:$0xff]
    %v265 = vld [vmem:[#allocation5 + $0x5a8] sm:$0xff]
    %v266 = vld [vmem:[#allocation5 + $0x5b0] sm:$0xff]
    %v267 = vld [vmem:[#allocation5 + $0x5b8] sm:$0xff]
    %v268 = vld [vmem:[#allocation5 + $0x5c0] sm:$0xf]
    %v269 = vld [vmem:[#allocation5 + $0x5c4] sm:$0xff]
    %v270 = vld [vmem:[#allocation5 + $0x5cc] sm:$0xff]
    %v271 = vld [vmem:[#allocation5 + $0x5d4] sm:$0xff]
    %v272 = vld [vmem:[#allocation5 + $0x5dc] sm:$0xff]
    %v273 = vld [vmem:[#allocation5 + $0x5e4] sm:$0xf]
    %v274 = vld [vmem:[#allocation5 + $0x5e8] sm:$0xff]
    %v275 = vld [vmem:[#allocation5 + $0x5f0] sm:$0xff]
    %v276 = vld [vmem:[#allocation5 + $0x5f8] sm:$0xff]
    %v277 = vld [vmem:[#allocation5 + $0x600] sm:$0xff]
    %v278 = vld [vmem:[#allocation5 + $0x608] sm:$0xf]
    %v279 = vld [vmem:[#allocation5 + $0x60c] sm:$0xff]
    %v280 = vld [vmem:[#allocation5 + $0x614] sm:$0xff]
    %v281 = vld [vmem:[#allocation5 + $0x61c] sm:$0xff]
    %v282 = vld [vmem:[#allocation5 + $0x624] sm:$0xff]
    %v283 = vld [vmem:[#allocation5 + $0x62c] sm:$0xf]
    %v284 = vld [vmem:[#allocation5 + $0x630] sm:$0xff]
    %v285 = vld [vmem:[#allocation5 + $0x638] sm:$0xff]
    %v286 = vld [vmem:[#allocation5 + $0x640] sm:$0xff]
    %v287 = vld [vmem:[#allocation5 + $0x648] sm:$0xff]
    %v288 = vld [vmem:[#allocation5 + $0x650] sm:$0xf]
    %v289 = vld [vmem:[#allocation5 + $0x654] sm:$0xff]
    %v290 = vld [vmem:[#allocation5 + $0x65c] sm:$0xff]
    %v291 = vld [vmem:[#allocation5 + $0x664] sm:$0xff]
    %v292 = vld [vmem:[#allocation5 + $0x66c] sm:$0xff]
    %v293 = vld [vmem:[#allocation5 + $0x674] sm:$0xf]
    %v294 = vld [vmem:[#allocation5 + $0x678] sm:$0xff]
    %v295 = vld [vmem:[#allocation5 + $0x680] sm:$0xff]
    %v296 = vld [vmem:[#allocation5 + $0x688] sm:$0xff]
    %v297 = vld [vmem:[#allocation5 + $0x690] sm:$0xff]
    %v298 = vld [vmem:[#allocation5 + $0x698] sm:$0xf]
    %v299 = vld [vmem:[#allocation5 + $0x69c] sm:$0xff]
    %v300 = vld [vmem:[#allocation5 + $0x6a4] sm:$0xff]
    %v301 = vld [vmem:[#allocation5 + $0x6ac] sm:$0xff]
    %v302 = vld [vmem:[#allocation5 + $0x6b4] sm:$0xff]
    %v303 = vld [vmem:[#allocation5 + $0x6bc] sm:$0xf]
    %v308 = vunpack.c.l.b16 %v60
    %v309 = vunpack.c.h.b16 %v60
    %v310 = vunpack.c.l.b16 %v61
    %v311 = vunpack.c.l.b16 %v62
    %v312 = vunpack.c.h.b16 %v62
    %v313 = vunpack.c.l.b16 %v63
    %v314 = vpack.c.b16 %v311, %v308
    %v315 = vpack.c.b16 %v312, %v309
    %v316 = vpack.c.b16 %v313, %v310
    %v560 = vunpack.c.l.b16 %v64
    %v561 = vunpack.c.h.b16 %v64
    %v562 = vunpack.c.l.b16 %v65
    %v563 = vunpack.c.h.b16 %v65
    %v564 = vunpack.c.l.b16 %v66
    %v565 = vunpack.c.h.b16 %v66
    %v566 = vunpack.c.l.b16 %v67
    %v567 = vunpack.c.h.b16 %v67
    %v568 = vunpack.c.l.b16 %v68
    %v569 = vunpack.c.l.b16 %v69
    %v570 = vunpack.c.h.b16 %v69
    %v571 = vunpack.c.l.b16 %v70
    %v572 = vunpack.c.h.b16 %v70
    %v573 = vunpack.c.l.b16 %v71
    %v574 = vunpack.c.h.b16 %v71
    %v575 = vunpack.c.l.b16 %v72
    %v576 = vunpack.c.h.b16 %v72
    %v577 = vunpack.c.l.b16 %v73
    %v578 = vunpack.c.l.b16 %v74
    %v579 = vunpack.c.h.b16 %v74
    %v580 = vunpack.c.l.b16 %v75
    %v581 = vunpack.c.h.b16 %v75
    %v582 = vunpack.c.l.b16 %v76
    %v583 = vunpack.c.h.b16 %v76
    %v584 = vunpack.c.l.b16 %v77
    %v585 = vunpack.c.h.b16 %v77
    %v586 = vunpack.c.l.b16 %v78
    %v587 = vunpack.c.l.b16 %v79
    %v588 = vunpack.c.h.b16 %v79
    %v589 = vunpack.c.l.b16 %v80
    %v590 = vunpack.c.h.b16 %v80
    %v591 = vunpack.c.l.b16 %v81
    %v592 = vunpack.c.h.b16 %v81
    %v593 = vunpack.c.l.b16 %v82
    %v594 = vunpack.c.h.b16 %v82
    %v595 = vunpack.c.l.b16 %v83
    %v596 = vunpack.c.l.b16 %v84
    %v597 = vunpack.c.h.b16 %v84
    %v598 = vunpack.c.l.b16 %v85
    %v599 = vunpack.c.h.b16 %v85
    %v600 = vunpack.c.l.b16 %v86
    %v601 = vunpack.c.h.b16 %v86
    %v602 = vunpack.c.l.b16 %v87
    %v603 = vunpack.c.h.b16 %v87
    %v604 = vunpack.c.l.b16 %v88
    %v605 = vunpack.c.l.b16 %v89
    %v606 = vunpack.c.h.b16 %v89
    %v607 = vunpack.c.l.b16 %v90
    %v608 = vunpack.c.h.b16 %v90
    %v609 = vunpack.c.l.b16 %v91
    %v610 = vunpack.c.h.b16 %v91
    %v611 = vunpack.c.l.b16 %v92
    %v612 = vunpack.c.h.b16 %v92
    %v613 = vunpack.c.l.b16 %v93
    %v614 = vunpack.c.l.b16 %v94
    %v615 = vunpack.c.h.b16 %v94
    %v616 = vunpack.c.l.b16 %v95
    %v617 = vunpack.c.h.b16 %v95
    %v618 = vunpack.c.l.b16 %v96
    %v619 = vunpack.c.h.b16 %v96
    %v620 = vunpack.c.l.b16 %v97
    %v621 = vunpack.c.h.b16 %v97
    %v622 = vunpack.c.l.b16 %v98
    %v623 = vunpack.c.l.b16 %v99
    %v624 = vunpack.c.h.b16 %v99
    %v625 = vunpack.c.l.b16 %v100
    %v626 = vunpack.c.h.b16 %v100
    %v627 = vunpack.c.l.b16 %v101
    %v628 = vunpack.c.h.b16 %v101
    %v629 = vunpack.c.l.b16 %v102
    %v630 = vunpack.c.h.b16 %v102
    %v631 = vunpack.c.l.b16 %v103
    %v632 = vunpack.c.l.b16 %v104
    %v633 = vunpack.c.h.b16 %v104
    %v634 = vunpack.c.l.b16 %v105
    %v635 = vunpack.c.h.b16 %v105
    %v636 = vunpack.c.l.b16 %v106
    %v637 = vunpack.c.h.b16 %v106
    %v638 = vunpack.c.l.b16 %v107
    %v639 = vunpack.c.h.b16 %v107
    %v640 = vunpack.c.l.b16 %v108
    %v641 = vunpack.c.l.b16 %v109
    %v642 = vunpack.c.h.b16 %v109
    %v643 = vunpack.c.l.b16 %v110
    %v644 = vunpack.c.h.b16 %v110
    %v645 = vunpack.c.l.b16 %v111
    %v646 = vunpack.c.h.b16 %v111
    %v647 = vunpack.c.l.b16 %v112
    %v648 = vunpack.c.h.b16 %v112
    %v649 = vunpack.c.l.b16 %v113
    %v650 = vunpack.c.l.b16 %v114
    %v651 = vunpack.c.h.b16 %v114
    %v652 = vunpack.c.l.b16 %v115
    %v653 = vunpack.c.h.b16 %v115
    %v654 = vunpack.c.l.b16 %v116
    %v655 = vunpack.c.h.b16 %v116
    %v656 = vunpack.c.l.b16 %v117
    %v657 = vunpack.c.h.b16 %v117
    %v658 = vunpack.c.l.b16 %v118
    %v659 = vunpack.c.l.b16 %v119
    %v660 = vunpack.c.h.b16 %v119
    %v661 = vunpack.c.l.b16 %v120
    %v662 = vunpack.c.h.b16 %v120
    %v663 = vunpack.c.l.b16 %v121
    %v664 = vunpack.c.h.b16 %v121
    %v665 = vunpack.c.l.b16 %v122
    %v666 = vunpack.c.h.b16 %v122
    %v667 = vunpack.c.l.b16 %v123
    %v668 = vunpack.c.l.b16 %v124
    %v669 = vunpack.c.h.b16 %v124
    %v670 = vunpack.c.l.b16 %v125
    %v671 = vunpack.c.h.b16 %v125
    %v672 = vunpack.c.l.b16 %v126
    %v673 = vunpack.c.h.b16 %v126
    %v674 = vunpack.c.l.b16 %v127
    %v675 = vunpack.c.h.b16 %v127
    %v676 = vunpack.c.l.b16 %v128
    %v677 = vunpack.c.l.b16 %v129
    %v678 = vunpack.c.h.b16 %v129
    %v679 = vunpack.c.l.b16 %v130
    %v680 = vunpack.c.h.b16 %v130
    %v681 = vunpack.c.l.b16 %v131
    %v682 = vunpack.c.h.b16 %v131
    %v683 = vunpack.c.l.b16 %v132
    %v684 = vunpack.c.h.b16 %v132
    %v685 = vunpack.c.l.b16 %v133
    %v686 = vunpack.c.l.b16 %v134
    %v687 = vunpack.c.h.b16 %v134
    %v688 = vunpack.c.l.b16 %v135
    %v689 = vunpack.c.h.b16 %v135
    %v690 = vunpack.c.l.b16 %v136
    %v691 = vunpack.c.h.b16 %v136
    %v692 = vunpack.c.l.b16 %v137
    %v693 = vunpack.c.h.b16 %v137
    %v694 = vunpack.c.l.b16 %v138
    %v695 = vunpack.c.l.b16 %v139
    %v696 = vunpack.c.h.b16 %v139
    %v697 = vunpack.c.l.b16 %v140
    %v698 = vunpack.c.h.b16 %v140
    %v699 = vunpack.c.l.b16 %v141
    %v700 = vunpack.c.h.b16 %v141
    %v701 = vunpack.c.l.b16 %v142
    %v702 = vunpack.c.h.b16 %v142
    %v703 = vunpack.c.l.b16 %v143
    %v704 = vunpack.c.l.b16 %v144
    %v705 = vunpack.c.h.b16 %v144
    %v706 = vunpack.c.l.b16 %v145
    %v707 = vunpack.c.h.b16 %v145
    %v708 = vunpack.c.l.b16 %v146
    %v709 = vunpack.c.h.b16 %v146
    %v710 = vunpack.c.l.b16 %v147
    %v711 = vunpack.c.h.b16 %v147
    %v712 = vunpack.c.l.b16 %v148
    %v713 = vunpack.c.l.b16 %v149
    %v714 = vunpack.c.h.b16 %v149
    %v715 = vunpack.c.l.b16 %v150
    %v716 = vunpack.c.h.b16 %v150
    %v717 = vunpack.c.l.b16 %v151
    %v718 = vunpack.c.h.b16 %v151
    %v719 = vunpack.c.l.b16 %v152
    %v720 = vunpack.c.h.b16 %v152
    %v721 = vunpack.c.l.b16 %v153
    %v722 = vunpack.c.l.b16 %v154
    %v723 = vunpack.c.h.b16 %v154
    %v724 = vunpack.c.l.b16 %v155
    %v725 = vunpack.c.h.b16 %v155
    %v726 = vunpack.c.l.b16 %v156
    %v727 = vunpack.c.h.b16 %v156
    %v728 = vunpack.c.l.b16 %v157
    %v729 = vunpack.c.h.b16 %v157
    %v730 = vunpack.c.l.b16 %v158
    %v731 = vunpack.c.l.b16 %v159
    %v732 = vunpack.c.h.b16 %v159
    %v733 = vunpack.c.l.b16 %v160
    %v734 = vunpack.c.h.b16 %v160
    %v735 = vunpack.c.l.b16 %v161
    %v736 = vunpack.c.h.b16 %v161
    %v737 = vunpack.c.l.b16 %v162
    %v738 = vunpack.c.h.b16 %v162
    %v739 = vunpack.c.l.b16 %v163
    %v740 = vunpack.c.l.b16 %v164
    %v741 = vunpack.c.h.b16 %v164
    %v742 = vunpack.c.l.b16 %v165
    %v743 = vunpack.c.h.b16 %v165
    %v744 = vunpack.c.l.b16 %v166
    %v745 = vunpack.c.h.b16 %v166
    %v746 = vunpack.c.l.b16 %v167
    %v747 = vunpack.c.h.b16 %v167
    %v748 = vunpack.c.l.b16 %v168
    %v749 = vunpack.c.l.b16 %v169
    %v750 = vunpack.c.h.b16 %v169
    %v751 = vunpack.c.l.b16 %v170
    %v752 = vunpack.c.h.b16 %v170
    %v753 = vunpack.c.l.b16 %v171
    %v754 = vunpack.c.h.b16 %v171
    %v755 = vunpack.c.l.b16 %v172
    %v756 = vunpack.c.h.b16 %v172
    %v757 = vunpack.c.l.b16 %v173
    %v758 = vunpack.c.l.b16 %v174
    %v759 = vunpack.c.h.b16 %v174
    %v760 = vunpack.c.l.b16 %v175
    %v761 = vunpack.c.h.b16 %v175
    %v762 = vunpack.c.l.b16 %v176
    %v763 = vunpack.c.h.b16 %v176
    %v764 = vunpack.c.l.b16 %v177
    %v765 = vunpack.c.h.b16 %v177
    %v766 = vunpack.c.l.b16 %v178
    %v767 = vunpack.c.l.b16 %v179
    %v768 = vunpack.c.h.b16 %v179
    %v769 = vunpack.c.l.b16 %v180
    %v770 = vunpack.c.h.b16 %v180
    %v771 = vunpack.c.l.b16 %v181
    %v772 = vunpack.c.h.b16 %v181
    %v773 = vunpack.c.l.b16 %v182
    %v774 = vunpack.c.h.b16 %v182
    %v775 = vunpack.c.l.b16 %v183
    %v776 = vunpack.c.l.b16 %v184
    %v777 = vunpack.c.h.b16 %v184
    %v778 = vunpack.c.l.b16 %v185
    %v779 = vunpack.c.h.b16 %v185
    %v780 = vunpack.c.l.b16 %v186
    %v781 = vunpack.c.h.b16 %v186
    %v782 = vunpack.c.l.b16 %v187
    %v783 = vunpack.c.h.b16 %v187
    %v784 = vunpack.c.l.b16 %v188
    %v785 = vunpack.c.l.b16 %v189
    %v786 = vunpack.c.h.b16 %v189
    %v787 = vunpack.c.l.b16 %v190
    %v788 = vunpack.c.h.b16 %v190
    %v789 = vunpack.c.l.b16 %v191
    %v790 = vunpack.c.h.b16 %v191
    %v791 = vunpack.c.l.b16 %v192
    %v792 = vunpack.c.h.b16 %v192
    %v793 = vunpack.c.l.b16 %v193
    %v794 = vunpack.c.l.b16 %v194
    %v795 = vunpack.c.h.b16 %v194
    %v796 = vunpack.c.l.b16 %v195
    %v797 = vunpack.c.h.b16 %v195
    %v798 = vunpack.c.l.b16 %v196
    %v799 = vunpack.c.h.b16 %v196
    %v800 = vunpack.c.l.b16 %v197
    %v801 = vunpack.c.h.b16 %v197
    %v802 = vunpack.c.l.b16 %v198
    %v803 = vunpack.c.l.b16 %v199
    %v804 = vunpack.c.h.b16 %v199
    %v805 = vunpack.c.l.b16 %v200
    %v806 = vunpack.c.h.b16 %v200
    %v807 = vunpack.c.l.b16 %v201
    %v808 = vunpack.c.h.b16 %v201
    %v809 = vunpack.c.l.b16 %v202
    %v810 = vunpack.c.h.b16 %v202
    %v811 = vunpack.c.l.b16 %v203
    %v812 = vunpack.c.l.b16 %v204
    %v813 = vunpack.c.h.b16 %v204
    %v814 = vunpack.c.l.b16 %v205
    %v815 = vunpack.c.h.b16 %v205
    %v816 = vunpack.c.l.b16 %v206
    %v817 = vunpack.c.h.b16 %v206
    %v818 = vunpack.c.l.b16 %v207
    %v819 = vunpack.c.h.b16 %v207
    %v820 = vunpack.c.l.b16 %v208
    %v821 = vunpack.c.l.b16 %v209
    %v822 = vunpack.c.h.b16 %v209
    %v823 = vunpack.c.l.b16 %v210
    %v824 = vunpack.c.h.b16 %v210
    %v825 = vunpack.c.l.b16 %v211
    %v826 = vunpack.c.h.b16 %v211
    %v827 = vunpack.c.l.b16 %v212
    %v828 = vunpack.c.h.b16 %v212
    %v829 = vunpack.c.l.b16 %v213
    %v830 = vunpack.c.l.b16 %v214
    %v831 = vunpack.c.h.b16 %v214
    %v832 = vunpack.c.l.b16 %v215
    %v833 = vunpack.c.h.b16 %v215
    %v834 = vunpack.c.l.b16 %v216
    %v835 = vunpack.c.h.b16 %v216
    %v836 = vunpack.c.l.b16 %v217
    %v837 = vunpack.c.h.b16 %v217
    %v838 = vunpack.c.l.b16 %v218
    %v839 = vunpack.c.l.b16 %v219
    %v840 = vunpack.c.h.b16 %v219
    %v841 = vunpack.c.l.b16 %v220
    %v842 = vunpack.c.h.b16 %v220
    %v843 = vunpack.c.l.b16 %v221
    %v844 = vunpack.c.h.b16 %v221
    %v845 = vunpack.c.l.b16 %v222
    %v846 = vunpack.c.h.b16 %v222
    %v847 = vunpack.c.l.b16 %v223
    %v848 = vunpack.c.l.b16 %v224
    %v849 = vunpack.c.h.b16 %v224
    %v850 = vunpack.c.l.b16 %v225
    %v851 = vunpack.c.h.b16 %v225
    %v852 = vunpack.c.l.b16 %v226
    %v853 = vunpack.c.h.b16 %v226
    %v854 = vunpack.c.l.b16 %v227
    %v855 = vunpack.c.h.b16 %v227
    %v856 = vunpack.c.l.b16 %v228
    %v857 = vunpack.c.l.b16 %v229
    %v858 = vunpack.c.h.b16 %v229
    %v859 = vunpack.c.l.b16 %v230
    %v860 = vunpack.c.h.b16 %v230
    %v861 = vunpack.c.l.b16 %v231
    %v862 = vunpack.c.h.b16 %v231
    %v863 = vunpack.c.l.b16 %v232
    %v864 = vunpack.c.h.b16 %v232
    %v865 = vunpack.c.l.b16 %v233
    %v866 = vunpack.c.l.b16 %v234
    %v867 = vunpack.c.h.b16 %v234
    %v868 = vunpack.c.l.b16 %v235
    %v869 = vunpack.c.h.b16 %v235
    %v870 = vunpack.c.l.b16 %v236
    %v871 = vunpack.c.h.b16 %v236
    %v872 = vunpack.c.l.b16 %v237
    %v873 = vunpack.c.h.b16 %v237
    %v874 = vunpack.c.l.b16 %v238
    %v875 = vunpack.c.l.b16 %v239
    %v876 = vunpack.c.h.b16 %v239
    %v877 = vunpack.c.l.b16 %v240
    %v878 = vunpack.c.h.b16 %v240
    %v879 = vunpack.c.l.b16 %v241
    %v880 = vunpack.c.h.b16 %v241
    %v881 = vunpack.c.l.b16 %v242
    %v882 = vunpack.c.h.b16 %v242
    %v883 = vunpack.c.l.b16 %v243
    %v884 = vunpack.c.l.b16 %v244
    %v885 = vunpack.c.h.b16 %v244
    %v886 = vunpack.c.l.b16 %v245
    %v887 = vunpack.c.h.b16 %v245
    %v888 = vunpack.c.l.b16 %v246
    %v889 = vunpack.c.h.b16 %v246
    %v890 = vunpack.c.l.b16 %v247
    %v891 = vunpack.c.h.b16 %v247
    %v892 = vunpack.c.l.b16 %v248
    %v893 = vunpack.c.l.b16 %v249
    %v894 = vunpack.c.h.b16 %v249
    %v895 = vunpack.c.l.b16 %v250
    %v896 = vunpack.c.h.b16 %v250
    %v897 = vunpack.c.l.b16 %v251
    %v898 = vunpack.c.h.b16 %v251
    %v899 = vunpack.c.l.b16 %v252
    %v900 = vunpack.c.h.b16 %v252
    %v901 = vunpack.c.l.b16 %v253
    %v902 = vunpack.c.l.b16 %v254
    %v903 = vunpack.c.h.b16 %v254
    %v904 = vunpack.c.l.b16 %v255
    %v905 = vunpack.c.h.b16 %v255
    %v906 = vunpack.c.l.b16 %v256
    %v907 = vunpack.c.h.b16 %v256
    %v908 = vunpack.c.l.b16 %v257
    %v909 = vunpack.c.h.b16 %v257
    %v910 = vunpack.c.l.b16 %v258
    %v911 = vunpack.c.l.b16 %v259
    %v912 = vunpack.c.h.b16 %v259
    %v913 = vunpack.c.l.b16 %v260
    %v914 = vunpack.c.h.b16 %v260
    %v915 = vunpack.c.l.b16 %v261
    %v916 = vunpack.c.h.b16 %v261
    %v917 = vunpack.c.l.b16 %v262
    %v918 = vunpack.c.h.b16 %v262
    %v919 = vunpack.c.l.b16 %v263
    %v920 = vunpack.c.l.b16 %v264
    %v921 = vunpack.c.h.b16 %v264
    %v922 = vunpack.c.l.b16 %v265
    %v923 = vunpack.c.h.b16 %v265
    %v924 = vunpack.c.l.b16 %v266
    %v925 = vunpack.c.h.b16 %v266
    %v926 = vunpack.c.l.b16 %v267
    %v927 = vunpack.c.h.b16 %v267
    %v928 = vunpack.c.l.b16 %v268
    %v929 = vunpack.c.l.b16 %v269
    %v930 = vunpack.c.h.b16 %v269
    %v931 = vunpack.c.l.b16 %v270
    %v932 = vunpack.c.h.b16 %v270
    %v933 = vunpack.c.l.b16 %v271
    %v934 = vunpack.c.h.b16 %v271
    %v935 = vunpack.c.l.b16 %v272
    %v936 = vunpack.c.h.b16 %v272
    %v937 = vunpack.c.l.b16 %v273
    %v938 = vunpack.c.l.b16 %v274
    %v939 = vunpack.c.h.b16 %v274
    %v940 = vunpack.c.l.b16 %v275
    %v941 = vunpack.c.h.b16 %v275
    %v942 = vunpack.c.l.b16 %v276
    %v943 = vunpack.c.h.b16 %v276
    %v944 = vunpack.c.l.b16 %v277
    %v945 = vunpack.c.h.b16 %v277
    %v946 = vunpack.c.l.b16 %v278
    %v947 = vunpack.c.l.b16 %v279
    %v948 = vunpack.c.h.b16 %v279
    %v949 = vunpack.c.l.b16 %v280
    %v950 = vunpack.c.h.b16 %v280
    %v951 = vunpack.c.l.b16 %v281
    %v952 = vunpack.c.h.b16 %v281
    %v953 = vunpack.c.l.b16 %v282
    %v954 = vunpack.c.h.b16 %v282
    %v955 = vunpack.c.l.b16 %v283
    %v956 = vunpack.c.l.b16 %v284
    %v957 = vunpack.c.h.b16 %v284
    %v958 = vunpack.c.l.b16 %v285
    %v959 = vunpack.c.h.b16 %v285
    %v960 = vunpack.c.l.b16 %v286
    %v961 = vunpack.c.h.b16 %v286
    %v962 = vunpack.c.l.b16 %v287
    %v963 = vunpack.c.h.b16 %v287
    %v964 = vunpack.c.l.b16 %v288
    %v965 = vunpack.c.l.b16 %v289
    %v966 = vunpack.c.h.b16 %v289
    %v967 = vunpack.c.l.b16 %v290
    %v968 = vunpack.c.h.b16 %v290
    %v969 = vunpack.c.l.b16 %v291
    %v970 = vunpack.c.h.b16 %v291
    %v971 = vunpack.c.l.b16 %v292
    %v972 = vunpack.c.h.b16 %v292
    %v973 = vunpack.c.l.b16 %v293
    %v974 = vunpack.c.l.b16 %v294
    %v975 = vunpack.c.h.b16 %v294
    %v976 = vunpack.c.l.b16 %v295
    %v977 = vunpack.c.h.b16 %v295
    %v978 = vunpack.c.l.b16 %v296
    %v979 = vunpack.c.h.b16 %v296
    %v980 = vunpack.c.l.b16 %v297
    %v981 = vunpack.c.h.b16 %v297
    %v982 = vunpack.c.l.b16 %v298
    %v983 = vunpack.c.l.b16 %v299
    %v984 = vunpack.c.h.b16 %v299
    %v985 = vunpack.c.l.b16 %v300
    %v986 = vunpack.c.h.b16 %v300
    %v987 = vunpack.c.l.b16 %v301
    %v988 = vunpack.c.h.b16 %v301
    %v989 = vunpack.c.l.b16 %v302
    %v990 = vunpack.c.h.b16 %v302
    %v991 = vunpack.c.l.b16 %v303
    %v992 = vpack.c.b16 %v569, %v560
    %v993 = vpack.c.b16 %v570, %v561
    %v994 = vpack.c.b16 %v571, %v562
    %v995 = vpack.c.b16 %v572, %v563
    %v996 = vpack.c.b16 %v573, %v564
    %v997 = vpack.c.b16 %v574, %v565
    %v998 = vpack.c.b16 %v575, %v566
    %v999 = vpack.c.b16 %v576, %v567
    %v1000 = vpack.c.b16 %v577, %v568
    %v1001 = vpack.c.b16 %v587, %v578
    %v1002 = vpack.c.b16 %v588, %v579
    %v1003 = vpack.c.b16 %v589, %v580
    %v1004 = vpack.c.b16 %v590, %v581
    %v1005 = vpack.c.b16 %v591, %v582
    %v1006 = vpack.c.b16 %v592, %v583
    %v1007 = vpack.c.b16 %v593, %v584
    %v1008 = vpack.c.b16 %v594, %v585
    %v1009 = vpack.c.b16 %v595, %v586
    %v1010 = vpack.c.b16 %v605, %v596
    %v1011 = vpack.c.b16 %v606, %v597
    %v1012 = vpack.c.b16 %v607, %v598
    %v1013 = vpack.c.b16 %v608, %v599
    %v1014 = vpack.c.b16 %v609, %v600
    %v1015 = vpack.c.b16 %v610, %v601
    %v1016 = vpack.c.b16 %v611, %v602
    %v1017 = vpack.c.b16 %v612, %v603
    %v1018 = vpack.c.b16 %v613, %v604
    %v1019 = vpack.c.b16 %v623, %v614
    %v1020 = vpack.c.b16 %v624, %v615
    %v1021 = vpack.c.b16 %v625, %v616
    %v1022 = vpack.c.b16 %v626, %v617
    %v1023 = vpack.c.b16 %v627, %v618
    %v1024 = vpack.c.b16 %v628, %v619
    %v1025 = vpack.c.b16 %v629, %v620
    %v1026 = vpack.c.b16 %v630, %v621
    %v1027 = vpack.c.b16 %v631, %v622
    %v1028 = vpack.c.b16 %v641, %v632
    %v1029 = vpack.c.b16 %v642, %v633
    %v1030 = vpack.c.b16 %v643, %v634
    %v1031 = vpack.c.b16 %v644, %v635
    %v1032 = vpack.c.b16 %v645, %v636
    %v1033 = vpack.c.b16 %v646, %v637
    %v1034 = vpack.c.b16 %v647, %v638
    %v1035 = vpack.c.b16 %v648, %v639
    %v1036 = vpack.c.b16 %v649, %v640
    %v1037 = vpack.c.b16 %v659, %v650
    %v1038 = vpack.c.b16 %v660, %v651
    %v1039 = vpack.c.b16 %v661, %v652
    %v1040 = vpack.c.b16 %v662, %v653
    %v1041 = vpack.c.b16 %v663, %v654
    %v1042 = vpack.c.b16 %v664, %v655
    %v1043 = vpack.c.b16 %v665, %v656
    %v1044 = vpack.c.b16 %v666, %v657
    %v1045 = vpack.c.b16 %v667, %v658
    %v1046 = vpack.c.b16 %v677, %v668
    %v1047 = vpack.c.b16 %v678, %v669
    %v1048 = vpack.c.b16 %v679, %v670
    %v1049 = vpack.c.b16 %v680, %v671
    %v1050 = vpack.c.b16 %v681, %v672
    %v1051 = vpack.c.b16 %v682, %v673
    %v1052 = vpack.c.b16 %v683, %v674
    %v1053 = vpack.c.b16 %v684, %v675
    %v1054 = vpack.c.b16 %v685, %v676
    %v1055 = vpack.c.b16 %v695, %v686
    %v1056 = vpack.c.b16 %v696, %v687
    %v1057 = vpack.c.b16 %v697, %v688
    %v1058 = vpack.c.b16 %v698, %v689
    %v1059 = vpack.c.b16 %v699, %v690
    %v1060 = vpack.c.b16 %v700, %v691
    %v1061 = vpack.c.b16 %v701, %v692
    %v1062 = vpack.c.b16 %v702, %v693
    %v1063 = vpack.c.b16 %v703, %v694
    %v1064 = vpack.c.b16 %v713, %v704
    %v1065 = vpack.c.b16 %v714, %v705
    %v1066 = vpack.c.b16 %v715, %v706
    %v1067 = vpack.c.b16 %v716, %v707
    %v1068 = vpack.c.b16 %v717, %v708
    %v1069 = vpack.c.b16 %v718, %v709
    %v1070 = vpack.c.b16 %v719, %v710
    %v1071 = vpack.c.b16 %v720, %v711
    %v1072 = vpack.c.b16 %v721, %v712
    %v1073 = vpack.c.b16 %v731, %v722
    %v1074 = vpack.c.b16 %v732, %v723
    %v1075 = vpack.c.b16 %v733, %v724
    %v1076 = vpack.c.b16 %v734, %v725
    %v1077 = vpack.c.b16 %v735, %v726
    %v1078 = vpack.c.b16 %v736, %v727
    %v1079 = vpack.c.b16 %v737, %v728
    %v1080 = vpack.c.b16 %v738, %v729
    %v1081 = vpack.c.b16 %v739, %v730
    %v1082 = vpack.c.b16 %v749, %v740
    %v1083 = vpack.c.b16 %v750, %v741
    %v1084 = vpack.c.b16 %v751, %v742
    %v1085 = vpack.c.b16 %v752, %v743
    %v1086 = vpack.c.b16 %v753, %v744
    %v1087 = vpack.c.b16 %v754, %v745
    %v1088 = vpack.c.b16 %v755, %v746
    %v1089 = vpack.c.b16 %v756, %v747
    %v1090 = vpack.c.b16 %v757, %v748
    %v1091 = vpack.c.b16 %v767, %v758
    %v1092 = vpack.c.b16 %v768, %v759
    %v1093 = vpack.c.b16 %v769, %v760
    %v1094 = vpack.c.b16 %v770, %v761
    %v1095 = vpack.c.b16 %v771, %v762
    %v1096 = vpack.c.b16 %v772, %v763
    %v1097 = vpack.c.b16 %v773, %v764
    %v1098 = vpack.c.b16 %v774, %v765
    %v1099 = vpack.c.b16 %v775, %v766
    %v1100 = vpack.c.b16 %v785, %v776
    %v1101 = vpack.c.b16 %v786, %v777
    %v1102 = vpack.c.b16 %v787, %v778
    %v1103 = vpack.c.b16 %v788, %v779
    %v1104 = vpack.c.b16 %v789, %v780
    %v1105 = vpack.c.b16 %v790, %v781
    %v1106 = vpack.c.b16 %v791, %v782
    %v1107 = vpack.c.b16 %v792, %v783
    %v1108 = vpack.c.b16 %v793, %v784
    %v1109 = vpack.c.b16 %v803, %v794
    %v1110 = vpack.c.b16 %v804, %v795
    %v1111 = vpack.c.b16 %v805, %v796
    %v1112 = vpack.c.b16 %v806, %v797
    %v1113 = vpack.c.b16 %v807, %v798
    %v1114 = vpack.c.b16 %v808, %v799
    %v1115 = vpack.c.b16 %v809, %v800
    %v1116 = vpack.c.b16 %v810, %v801
    %v1117 = vpack.c.b16 %v811, %v802
    %v1118 = vpack.c.b16 %v821, %v812
    %v1119 = vpack.c.b16 %v822, %v813
    %v1120 = vpack.c.b16 %v823, %v814
    %v1121 = vpack.c.b16 %v824, %v815
    %v1122 = vpack.c.b16 %v825, %v816
    %v1123 = vpack.c.b16 %v826, %v817
    %v1124 = vpack.c.b16 %v827, %v818
    %v1125 = vpack.c.b16 %v828, %v819
    %v1126 = vpack.c.b16 %v829, %v820
    %v1127 = vpack.c.b16 %v839, %v830
    %v1128 = vpack.c.b16 %v840, %v831
    %v1129 = vpack.c.b16 %v841, %v832
    %v1130 = vpack.c.b16 %v842, %v833
    %v1131 = vpack.c.b16 %v843, %v834
    %v1132 = vpack.c.b16 %v844, %v835
    %v1133 = vpack.c.b16 %v845, %v836
    %v1134 = vpack.c.b16 %v846, %v837
    %v1135 = vpack.c.b16 %v847, %v838
    %v1136 = vpack.c.b16 %v857, %v848
    %v1137 = vpack.c.b16 %v858, %v849
    %v1138 = vpack.c.b16 %v859, %v850
    %v1139 = vpack.c.b16 %v860, %v851
    %v1140 = vpack.c.b16 %v861, %v852
    %v1141 = vpack.c.b16 %v862, %v853
    %v1142 = vpack.c.b16 %v863, %v854
    %v1143 = vpack.c.b16 %v864, %v855
    %v1144 = vpack.c.b16 %v865, %v856
    %v1145 = vpack.c.b16 %v875, %v866
    %v1146 = vpack.c.b16 %v876, %v867
    %v1147 = vpack.c.b16 %v877, %v868
    %v1148 = vpack.c.b16 %v878, %v869
    %v1149 = vpack.c.b16 %v879, %v870
    %v1150 = vpack.c.b16 %v880, %v871
    %v1151 = vpack.c.b16 %v881, %v872
    %v1152 = vpack.c.b16 %v882, %v873
    %v1153 = vpack.c.b16 %v883, %v874
    %v1154 = vpack.c.b16 %v893, %v884
    %v1155 = vpack.c.b16 %v894, %v885
    %v1156 = vpack.c.b16 %v895, %v886
    %v1157 = vpack.c.b16 %v896, %v887
    %v1158 = vpack.c.b16 %v897, %v888
    %v1159 = vpack.c.b16 %v898, %v889
    %v1160 = vpack.c.b16 %v899, %v890
    %v1161 = vpack.c.b16 %v900, %v891
    %v1162 = vpack.c.b16 %v901, %v892
    %v1163 = vpack.c.b16 %v911, %v902
    %v1164 = vpack.c.b16 %v912, %v903
    %v1165 = vpack.c.b16 %v913, %v904
    %v1166 = vpack.c.b16 %v914, %v905
    %v1167 = vpack.c.b16 %v915, %v906
    %v1168 = vpack.c.b16 %v916, %v907
    %v1169 = vpack.c.b16 %v917, %v908
    %v1170 = vpack.c.b16 %v918, %v909
    %v1171 = vpack.c.b16 %v919, %v910
    %v1172 = vpack.c.b16 %v929, %v920
    %v1173 = vpack.c.b16 %v930, %v921
    %v1174 = vpack.c.b16 %v931, %v922
    %v1175 = vpack.c.b16 %v932, %v923
    %v1176 = vpack.c.b16 %v933, %v924
    %v1177 = vpack.c.b16 %v934, %v925
    %v1178 = vpack.c.b16 %v935, %v926
    %v1179 = vpack.c.b16 %v936, %v927
    %v1180 = vpack.c.b16 %v937, %v928
    %v1181 = vpack.c.b16 %v947, %v938
    %v1182 = vpack.c.b16 %v948, %v939
    %v1183 = vpack.c.b16 %v949, %v940
    %v1184 = vpack.c.b16 %v950, %v941
    %v1185 = vpack.c.b16 %v951, %v942
    %v1186 = vpack.c.b16 %v952, %v943
    %v1187 = vpack.c.b16 %v953, %v944
    %v1188 = vpack.c.b16 %v954, %v945
    %v1189 = vpack.c.b16 %v955, %v946
    %v1190 = vpack.c.b16 %v965, %v956
    %v1191 = vpack.c.b16 %v966, %v957
    %v1192 = vpack.c.b16 %v967, %v958
    %v1193 = vpack.c.b16 %v968, %v959
    %v1194 = vpack.c.b16 %v969, %v960
    %v1195 = vpack.c.b16 %v970, %v961
    %v1196 = vpack.c.b16 %v971, %v962
    %v1197 = vpack.c.b16 %v972, %v963
    %v1198 = vpack.c.b16 %v973, %v964
    %v1199 = vpack.c.b16 %v983, %v974
    %v1200 = vpack.c.b16 %v984, %v975
    %v1201 = vpack.c.b16 %v985, %v976
    %v1202 = vpack.c.b16 %v986, %v977
    %v1203 = vpack.c.b16 %v987, %v978
    %v1204 = vpack.c.b16 %v988, %v979
    %v1205 = vpack.c.b16 %v989, %v980
    %v1206 = vpack.c.b16 %v990, %v981
    %v1207 = vpack.c.b16 %v991, %v982
    %1424 = vmatprep.subr.bf16.mxu0 %v993
    %1425 = vmatpush1.bf16.msra.mxu0 %v992
    %1426 = vmatprep.subr.bf16.mxu0 %v1002
    %1427 = vmatpush1.bf16.msra.mxu0 %v1001
    %1428 = vmatprep.subr.bf16.mxu0 %v1011
    %1429 = vmatpush1.bf16.msra.mxu0 %v1010
    %1430 = vmatprep.subr.bf16.mxu0 %v1020
    %1431 = vmatpush1.bf16.msra.mxu0 %v1019
    %1432 = vmatprep.subr.bf16.mxu0 %v1029
    %1433 = vmatpush1.bf16.msra.mxu0 %v1028
    %1434 = vmatprep.subr.bf16.mxu0 %v1038
    %1435 = vmatpush1.bf16.msra.mxu0 %v1037
    %1436 = vmatprep.subr.bf16.mxu0 %v1047
    %1437 = vmatpush1.bf16.msra.mxu0 %v1046
    %1438 = vmatprep.subr.bf16.mxu0 %v1056
    %1439 = vmatpush1.bf16.msra.mxu0 %v1055
    %1440 = vmatprep.subr.bf16.mxu0 %v1065
    %1441 = vmatpush1.bf16.msra.mxu0 %v1064
    %1442 = vmatprep.subr.bf16.mxu0 %v1074
    %1443 = vmatpush1.bf16.msra.mxu0 %v1073
    %1444 = vmatprep.subr.bf16.mxu0 %v1083
    %1445 = vmatpush1.bf16.msra.mxu0 %v1082
    %1446 = vmatprep.subr.bf16.mxu0 %v1092
    %1447 = vmatpush1.bf16.msra.mxu0 %v1091
    %1448 = vmatprep.subr.bf16.mxu0 %v1101
    %1449 = vmatpush1.bf16.msra.mxu0 %v1100
    %1450 = vmatprep.subr.bf16.mxu0 %v1110
    %1451 = vmatpush1.bf16.msra.mxu0 %v1109
    %1452 = vmatprep.subr.bf16.mxu0 %v1119
    %1453 = vmatpush1.bf16.msra.mxu0 %v1118
    %1454 = vmatprep.subr.bf16.mxu0 %v1128
    %1455 = vmatpush1.bf16.msra.mxu0 %v1127
    %1456 = vmatprep.mubr.bf16.mxu0 %v315
    %1457 = vmatmul.mubr.bf16.gmra.mrb[0].mxu0 %v314
    %v1458 = vpop.f32.mrb[0].mxu0
    %v1459 = vadd.f32 0.0, %v1458
    %v1460 = vpop.f32.mrb[0].mxu0
    %v1461 = vadd.f32 0.0, %v1460
    %v1462 = vpop.f32.mrb[0].mxu0
    %v1463 = vadd.f32 0.0, %v1462
    %v1464 = vpop.f32.mrb[0].mxu0
    %v1465 = vadd.f32 0.0, %v1464
    %1466 = vdwg.mxu0
    %1467 = vmatprep.subr.bf16.mxu0 %v1137
    %1468 = vmatpush1.bf16.msra.mxu0 %v1136
    %1469 = vmatprep.subr.bf16.mxu0 %v1146
    %1470 = vmatpush1.bf16.msra.mxu0 %v1145
    %1471 = vmatprep.subr.bf16.mxu0 %v1155
    %1472 = vmatpush1.bf16.msra.mxu0 %v1154
    %1473 = vmatprep.subr.bf16.mxu0 %v1164
    %1474 = vmatpush1.bf16.msra.mxu0 %v1163
    %1475 = vmatprep.subr.bf16.mxu0 %v1173
    %1476 = vmatpush1.bf16.msra.mxu0 %v1172
    %1477 = vmatprep.subr.bf16.mxu0 %v1182
    %1478 = vmatpush1.bf16.msra.mxu0 %v1181
    %1479 = vmatprep.subr.bf16.mxu0 %v1191
    %1480 = vmatpush1.bf16.msra.mxu0 %v1190
    %1481 = vmatprep.subr.bf16.mxu0 %v1200
    %1482 = vmatpush1.bf16.msra.mxu0 %v1199
    %1483 = vmatprep.subr.bf16.mxu0 0
    %1484 = vmatpush1.bf16.msra.mxu0 0
    %1485 = vmatprep.subr.bf16.mxu0 0
    %1486 = vmatpush1.bf16.msra.mxu0 0
    %1487 = vmatprep.subr.bf16.mxu0 0
    %1488 = vmatpush1.bf16.msra.mxu0 0
    %1489 = vmatprep.subr.bf16.mxu0 0
    %1490 = vmatpush1.bf16.msra.mxu0 0
    %1491 = vmatprep.subr.bf16.mxu0 0
    %1492 = vmatpush1.bf16.msra.mxu0 0
    %1493 = vmatprep.subr.bf16.mxu0 0
    %1494 = vmatpush1.bf16.msra.mxu0 0
    %1495 = vmatprep.subr.bf16.mxu0 0
    %1496 = vmatpush1.bf16.msra.mxu0 0
    %1497 = vmatprep.subr.bf16.mxu0 0
    %1498 = vmatpush1.bf16.msra.mxu0 0
    %1499 = vmatprep.mubr.bf16.mxu0 0
    %1500 = vmatmul.mubr.bf16.gmra.mrb[0].mxu0 %v316
    %v1501 = vpop.f32.mrb[0].mxu0
    %v1502 = vadd.f32 %v1459, %v1501
    %v1503 = vpop.f32.mrb[0].mxu0
    %v1504 = vadd.f32 %v1461, %v1503
    %v1505 = vpop.f32.mrb[0].mxu0
    %v1506 = vadd.f32 %v1463, %v1505
    %v1507 = vpop.f32.mrb[0].mxu0
    %v1508 = vadd.f32 %v1465, %v1507
    %1509 = vdwg.mxu0
    %1510 = vmatprep.subr.bf16.mxu0 %v995
    %1511 = vmatpush1.bf16.msra.mxu0 %v994
    %1512 = vmatprep.subr.bf16.mxu0 %v1004
    %1513 = vmatpush1.bf16.msra.mxu0 %v1003
    %1514 = vmatprep.subr.bf16.mxu0 %v1013
    %1515 = vmatpush1.bf16.msra.mxu0 %v1012
    %1516 = vmatprep.subr.bf16.mxu0 %v1022
    %1517 = vmatpush1.bf16.msra.mxu0 %v1021
    %1518 = vmatprep.subr.bf16.mxu0 %v1031
    %1519 = vmatpush1.bf16.msra.mxu0 %v1030
    %1520 = vmatprep.subr.bf16.mxu0 %v1040
    %1521 = vmatpush1.bf16.msra.mxu0 %v1039
    %1522 = vmatprep.subr.bf16.mxu0 %v1049
    %1523 = vmatpush1.bf16.msra.mxu0 %v1048
    %1524 = vmatprep.subr.bf16.mxu0 %v1058
    %1525 = vmatpush1.bf16.msra.mxu0 %v1057
    %1526 = vmatprep.subr.bf16.mxu0 %v1067
    %1527 = vmatpush1.bf16.msra.mxu0 %v1066
    %1528 = vmatprep.subr.bf16.mxu0 %v1076
    %1529 = vmatpush1.bf16.msra.mxu0 %v1075
    %1530 = vmatprep.subr.bf16.mxu0 %v1085
    %1531 = vmatpush1.bf16.msra.mxu0 %v1084
    %1532 = vmatprep.subr.bf16.mxu0 %v1094
    %1533 = vmatpush1.bf16.msra.mxu0 %v1093
    %1534 = vmatprep.subr.bf16.mxu0 %v1103
    %1535 = vmatpush1.bf16.msra.mxu0 %v1102
    %1536 = vmatprep.subr.bf16.mxu0 %v1112
    %1537 = vmatpush1.bf16.msra.mxu0 %v1111
    %1538 = vmatprep.subr.bf16.mxu0 %v1121
    %1539 = vmatpush1.bf16.msra.mxu0 %v1120
    %1540 = vmatprep.subr.bf16.mxu0 %v1130
    %1541 = vmatpush1.bf16.msra.mxu0 %v1129
    %1542 = vmatprep.mubr.bf16.mxu0 %v315
    %1543 = vmatmul.mubr.bf16.gmra.mrb[0].mxu0 %v314
    %v1544 = vpop.f32.mrb[0].mxu0
    %v1545 = vadd.f32 0.0, %v1544
    %v1546 = vpop.f32.mrb[0].mxu0
    %v1547 = vadd.f32 0.0, %v1546
    %v1548 = vpop.f32.mrb[0].mxu0
    %v1549 = vadd.f32 0.0, %v1548
    %v1550 = vpop.f32.mrb[0].mxu0
    %v1551 = vadd.f32 0.0, %v1550
    %1552 = vdwg.mxu0
    %1553 = vmatprep.subr.bf16.mxu0 %v1139
    %1554 = vmatpush1.bf16.msra.mxu0 %v1138
    %1555 = vmatprep.subr.bf16.mxu0 %v1148
    %1556 = vmatpush1.bf16.msra.mxu0 %v1147
    %1557 = vmatprep.subr.bf16.mxu0 %v1157
    %1558 = vmatpush1.bf16.msra.mxu0 %v1156
    %1559 = vmatprep.subr.bf16.mxu0 %v1166
    %1560 = vmatpush1.bf16.msra.mxu0 %v1165
    %1561 = vmatprep.subr.bf16.mxu0 %v1175
    %1562 = vmatpush1.bf16.msra.mxu0 %v1174
    %1563 = vmatprep.subr.bf16.mxu0 %v1184
    %1564 = vmatpush1.bf16.msra.mxu0 %v1183
    %1565 = vmatprep.subr.bf16.mxu0 %v1193
    %1566 = vmatpush1.bf16.msra.mxu0 %v1192
    %1567 = vmatprep.subr.bf16.mxu0 %v1202
    %1568 = vmatpush1.bf16.msra.mxu0 %v1201
    %1569 = vmatprep.subr.bf16.mxu0 0
    %1570 = vmatpush1.bf16.msra.mxu0 0
    %1571 = vmatprep.subr.bf16.mxu0 0
    %1572 = vmatpush1.bf16.msra.mxu0 0
    %1573 = vmatprep.subr.bf16.mxu0 0
    %1574 = vmatpush1.bf16.msra.mxu0 0
    %1575 = vmatprep.subr.bf16.mxu0 0
    %1576 = vmatpush1.bf16.msra.mxu0 0
    %1577 = vmatprep.subr.bf16.mxu0 0
    %1578 = vmatpush1.bf16.msra.mxu0 0
    %1579 = vmatprep.subr.bf16.mxu0 0
    %1580 = vmatpush1.bf16.msra.mxu0 0
    %1581 = vmatprep.subr.bf16.mxu0 0
    %1582 = vmatpush1.bf16.msra.mxu0 0
    %1583 = vmatprep.subr.bf16.mxu0 0
    %1584 = vmatpush1.bf16.msra.mxu0 0
    %1585 = vmatprep.mubr.bf16.mxu0 0
    %1586 = vmatmul.mubr.bf16.gmra.mrb[0].mxu0 %v316
    %v1587 = vpop.f32.mrb[0].mxu0
    %v1588 = vadd.f32 %v1545, %v1587
    %v1589 = vpop.f32.mrb[0].mxu0
    %v1590 = vadd.f32 %v1547, %v1589
    %v1591 = vpop.f32.mrb[0].mxu0
    %v1592 = vadd.f32 %v1549, %v1591
    %v1593 = vpop.f32.mrb[0].mxu0
    %v1594 = vadd.f32 %v1551, %v1593
    %1595 = vdwg.mxu0
    %1596 = vmatprep.subr.bf16.mxu0 %v997
    %1597 = vmatpush1.bf16.msra.mxu0 %v996
    %1598 = vmatprep.subr.bf16.mxu0 %v1006
    %1599 = vmatpush1.bf16.msra.mxu0 %v1005
    %1600 = vmatprep.subr.bf16.mxu0 %v1015
    %1601 = vmatpush1.bf16.msra.mxu0 %v1014
    %1602 = vmatprep.subr.bf16.mxu0 %v1024
    %1603 = vmatpush1.bf16.msra.mxu0 %v1023
    %1604 = vmatprep.subr.bf16.mxu0 %v1033
    %1605 = vmatpush1.bf16.msra.mxu0 %v1032
    %1606 = vmatprep.subr.bf16.mxu0 %v1042
    %1607 = vmatpush1.bf16.msra.mxu0 %v1041
    %1608 = vmatprep.subr.bf16.mxu0 %v1051
    %1609 = vmatpush1.bf16.msra.mxu0 %v1050
    %1610 = vmatprep.subr.bf16.mxu0 %v1060
    %1611 = vmatpush1.bf16.msra.mxu0 %v1059
    %1612 = vmatprep.subr.bf16.mxu0 %v1069
    %1613 = vmatpush1.bf16.msra.mxu0 %v1068
    %1614 = vmatprep.subr.bf16.mxu0 %v1078
    %1615 = vmatpush1.bf16.msra.mxu0 %v1077
    %1616 = vmatprep.subr.bf16.mxu0 %v1087
    %1617 = vmatpush1.bf16.msra.mxu0 %v1086
    %1618 = vmatprep.subr.bf16.mxu0 %v1096
    %1619 = vmatpush1.bf16.msra.mxu0 %v1095
    %1620 = vmatprep.subr.bf16.mxu0 %v1105
    %1621 = vmatpush1.bf16.msra.mxu0 %v1104
    %1622 = vmatprep.subr.bf16.mxu0 %v1114
    %1623 = vmatpush1.bf16.msra.mxu0 %v1113
    %1624 = vmatprep.subr.bf16.mxu0 %v1123
    %1625 = vmatpush1.bf16.msra.mxu0 %v1122
    %1626 = vmatprep.subr.bf16.mxu0 %v1132
    %1627 = vmatpush1.bf16.msra.mxu0 %v1131
    %1628 = vmatprep.mubr.bf16.mxu0 %v315
    %1629 = vmatmul.mubr.bf16.gmra.mrb[0].mxu0 %v314
    %v1630 = vpop.f32.mrb[0].mxu0
    %v1631 = vadd.f32 0.0, %v1630
    %v1632 = vpop.f32.mrb[0].mxu0
    %v1633 = vadd.f32 0.0, %v1632
    %v1634 = vpop.f32.mrb[0].mxu0
    %v1635 = vadd.f32 0.0, %v1634
    %v1636 = vpop.f32.mrb[0].mxu0
    %v1637 = vadd.f32 0.0, %v1636
    %1638 = vdwg.mxu0
    %1639 = vmatprep.subr.bf16.mxu0 %v1141
    %1640 = vmatpush1.bf16.msra.mxu0 %v1140
    %1641 = vmatprep.subr.bf16.mxu0 %v1150
    %1642 = vmatpush1.bf16.msra.mxu0 %v1149
    %1643 = vmatprep.subr.bf16.mxu0 %v1159
    %1644 = vmatpush1.bf16.msra.mxu0 %v1158
    %1645 = vmatprep.subr.bf16.mxu0 %v1168
    %1646 = vmatpush1.bf16.msra.mxu0 %v1167
    %1647 = vmatprep.subr.bf16.mxu0 %v1177
    %1648 = vmatpush1.bf16.msra.mxu0 %v1176
    %1649 = vmatprep.subr.bf16.mxu0 %v1186
    %1650 = vmatpush1.bf16.msra.mxu0 %v1185
    %1651 = vmatprep.subr.bf16.mxu0 %v1195
    %1652 = vmatpush1.bf16.msra.mxu0 %v1194
    %1653 = vmatprep.subr.bf16.mxu0 %v1204
    %1654 = vmatpush1.bf16.msra.mxu0 %v1203
    %1655 = vmatprep.subr.bf16.mxu0 0
    %1656 = vmatpush1.bf16.msra.mxu0 0
    %1657 = vmatprep.subr.bf16.mxu0 0
    %1658 = vmatpush1.bf16.msra.mxu0 0
    %1659 = vmatprep.subr.bf16.mxu0 0
    %1660 = vmatpush1.bf16.msra.mxu0 0
    %1661 = vmatprep.subr.bf16.mxu0 0
    %1662 = vmatpush1.bf16.msra.mxu0 0
    %1663 = vmatprep.subr.bf16.mxu0 0
    %1664 = vmatpush1.bf16.msra.mxu0 0
    %1665 = vmatprep.subr.bf16.mxu0 0
    %1666 = vmatpush1.bf16.msra.mxu0 0
    %1667 = vmatprep.subr.bf16.mxu0 0
    %1668 = vmatpush1.bf16.msra.mxu0 0
    %1669 = vmatprep.subr.bf16.mxu0 0
    %1670 = vmatpush1.bf16.msra.mxu0 0
    %1671 = vmatprep.mubr.bf16.mxu0 0
    %1672 = vmatmul.mubr.bf16.gmra.mrb[0].mxu0 %v316
    %v1673 = vpop.f32.mrb[0].mxu0
    %v1674 = vadd.f32 %v1631, %v1673
    %v1675 = vpop.f32.mrb[0].mxu0
    %v1676 = vadd.f32 %v1633, %v1675
    %v1677 = vpop.f32.mrb[0].mxu0
    %v1678 = vadd.f32 %v1635, %v1677
    %v1679 = vpop.f32.mrb[0].mxu0
    %v1680 = vadd.f32 %v1637, %v1679
    %1681 = vdwg.mxu0
    %1682 = vmatprep.subr.bf16.mxu0 %v999
    %1683 = vmatpush1.bf16.msra.mxu0 %v998
    %1684 = vmatprep.subr.bf16.mxu0 %v1008
    %1685 = vmatpush1.bf16.msra.mxu0 %v1007
    %1686 = vmatprep.subr.bf16.mxu0 %v1017
    %1687 = vmatpush1.bf16.msra.mxu0 %v1016
    %1688 = vmatprep.subr.bf16.mxu0 %v1026
    %1689 = vmatpush1.bf16.msra.mxu0 %v1025
    %1690 = vmatprep.subr.bf16.mxu0 %v1035
    %1691 = vmatpush1.bf16.msra.mxu0 %v1034
    %1692 = vmatprep.subr.bf16.mxu0 %v1044
    %1693 = vmatpush1.bf16.msra.mxu0 %v1043
    %1694 = vmatprep.subr.bf16.mxu0 %v1053
    %1695 = vmatpush1.bf16.msra.mxu0 %v1052
    %1696 = vmatprep.subr.bf16.mxu0 %v1062
    %1697 = vmatpush1.bf16.msra.mxu0 %v1061
    %1698 = vmatprep.subr.bf16.mxu0 %v1071
    %1699 = vmatpush1.bf16.msra.mxu0 %v1070
    %1700 = vmatprep.subr.bf16.mxu0 %v1080
    %1701 = vmatpush1.bf16.msra.mxu0 %v1079
    %1702 = vmatprep.subr.bf16.mxu0 %v1089
    %1703 = vmatpush1.bf16.msra.mxu0 %v1088
    %1704 = vmatprep.subr.bf16.mxu0 %v1098
    %1705 = vmatpush1.bf16.msra.mxu0 %v1097
    %1706 = vmatprep.subr.bf16.mxu0 %v1107
    %1707 = vmatpush1.bf16.msra.mxu0 %v1106
    %1708 = vmatprep.subr.bf16.mxu0 %v1116
    %1709 = vmatpush1.bf16.msra.mxu0 %v1115
    %1710 = vmatprep.subr.bf16.mxu0 %v1125
    %1711 = vmatpush1.bf16.msra.mxu0 %v1124
    %1712 = vmatprep.subr.bf16.mxu0 %v1134
    %1713 = vmatpush1.bf16.msra.mxu0 %v1133
    %1714 = vmatprep.mubr.bf16.mxu0 %v315
    %1715 = vmatmul.mubr.bf16.gmra.mrb[0].mxu0 %v314
    %v1716 = vpop.f32.mrb[0].mxu0
    %v1717 = vadd.f32 0.0, %v1716
    %v1718 = vpop.f32.mrb[0].mxu0
    %v1719 = vadd.f32 0.0, %v1718
    %v1720 = vpop.f32.mrb[0].mxu0
    %v1721 = vadd.f32 0.0, %v1720
    %v1722 = vpop.f32.mrb[0].mxu0
    %v1723 = vadd.f32 0.0, %v1722
    %1724 = vdwg.mxu0
    %1725 = vmatprep.subr.bf16.mxu0 %v1143
    %1726 = vmatpush1.bf16.msra.mxu0 %v1142
    %1727 = vmatprep.subr.bf16.mxu0 %v1152
    %1728 = vmatpush1.bf16.msra.mxu0 %v1151
    %1729 = vmatprep.subr.bf16.mxu0 %v1161
    %1730 = vmatpush1.bf16.msra.mxu0 %v1160
    %1731 = vmatprep.subr.bf16.mxu0 %v1170
    %1732 = vmatpush1.bf16.msra.mxu0 %v1169
    %1733 = vmatprep.subr.bf16.mxu0 %v1179
    %1734 = vmatpush1.bf16.msra.mxu0 %v1178
    %1735 = vmatprep.subr.bf16.mxu0 %v1188
    %1736 = vmatpush1.bf16.msra.mxu0 %v1187
    %1737 = vmatprep.subr.bf16.mxu0 %v1197
    %1738 = vmatpush1.bf16.msra.mxu0 %v1196
    %1739 = vmatprep.subr.bf16.mxu0 %v1206
    %1740 = vmatpush1.bf16.msra.mxu0 %v1205
    %1741 = vmatprep.subr.bf16.mxu0 0
    %1742 = vmatpush1.bf16.msra.mxu0 0
    %1743 = vmatprep.subr.bf16.mxu0 0
    %1744 = vmatpush1.bf16.msra.mxu0 0
    %1745 = vmatprep.subr.bf16.mxu0 0
    %1746 = vmatpush1.bf16.msra.mxu0 0
    %1747 = vmatprep.subr.bf16.mxu0 0
    %1748 = vmatpush1.bf16.msra.mxu0 0
    %1749 = vmatprep.subr.bf16.mxu0 0
    %1750 = vmatpush1.bf16.msra.mxu0 0
    %1751 = vmatprep.subr.bf16.mxu0 0
    %1752 = vmatpush1.bf16.msra.mxu0 0
    %1753 = vmatprep.subr.bf16.mxu0 0
    %1754 = vmatpush1.bf16.msra.mxu0 0
    %1755 = vmatprep.subr.bf16.mxu0 0
    %1756 = vmatpush1.bf16.msra.mxu0 0
    %1757 = vmatprep.mubr.bf16.mxu0 0
    %1758 = vmatmul.mubr.bf16.gmra.mrb[0].mxu0 %v316
    %v1759 = vpop.f32.mrb[0].mxu0
    %v1760 = vadd.f32 %v1717, %v1759
    %v1761 = vpop.f32.mrb[0].mxu0
    %v1762 = vadd.f32 %v1719, %v1761
    %v1763 = vpop.f32.mrb[0].mxu0
    %v1764 = vadd.f32 %v1721, %v1763
    %v1765 = vpop.f32.mrb[0].mxu0
    %v1766 = vadd.f32 %v1723, %v1765
    %1767 = vdwg.mxu0
    %1768 = vmatprep.subr.bf16.mxu0 0
    %1769 = vmatpush1.bf16.msra.mxu0 %v1000
    %1770 = vmatprep.subr.bf16.mxu0 0
    %1771 = vmatpush1.bf16.msra.mxu0 %v1009
    %1772 = vmatprep.subr.bf16.mxu0 0
    %1773 = vmatpush1.bf16.msra.mxu0 %v1018
    %1774 = vmatprep.subr.bf16.mxu0 0
    %1775 = vmatpush1.bf16.msra.mxu0 %v1027
    %1776 = vmatprep.subr.bf16.mxu0 0
    %1777 = vmatpush1.bf16.msra.mxu0 %v1036
    %1778 = vmatprep.subr.bf16.mxu0 0
    %1779 = vmatpush1.bf16.msra.mxu0 %v1045
    %1780 = vmatprep.subr.bf16.mxu0 0
    %1781 = vmatpush1.bf16.msra.mxu0 %v1054
    %1782 = vmatprep.subr.bf16.mxu0 0
    %1783 = vmatpush1.bf16.msra.mxu0 %v1063
    %1784 = vmatprep.subr.bf16.mxu0 0
    %1785 = vmatpush1.bf16.msra.mxu0 %v1072
    %1786 = vmatprep.subr.bf16.mxu0 0
    %1787 = vmatpush1.bf16.msra.mxu0 %v1081
    %1788 = vmatprep.subr.bf16.mxu0 0
    %1789 = vmatpush1.bf16.msra.mxu0 %v1090
    %1790 = vmatprep.subr.bf16.mxu0 0
    %1791 = vmatpush1.bf16.msra.mxu0 %v1099
    %1792 = vmatprep.subr.bf16.mxu0 0
    %1793 = vmatpush1.bf16.msra.mxu0 %v1108
    %1794 = vmatprep.subr.bf16.mxu0 0
    %1795 = vmatpush1.bf16.msra.mxu0 %v1117
    %1796 = vmatprep.subr.bf16.mxu0 0
    %1797 = vmatpush1.bf16.msra.mxu0 %v1126
    %1798 = vmatprep.subr.bf16.mxu0 0
    %1799 = vmatpush1.bf16.msra.mxu0 %v1135
    %1800 = vmatprep.mubr.bf16.mxu0 %v315
    %1801 = vmatmul.mubr.bf16.gmra.mrb[0].mxu0 %v314
    %v1802 = vpop.f32.mrb[0].mxu0
    %v1803 = vadd.f32 0.0, %v1802
    %v1804 = vpop.f32.mrb[0].mxu0
    %v1805 = vpop.f32.mrb[0].mxu0
    %v1806 = vadd.f32 0.0, %v1805
    %v1807 = vpop.f32.mrb[0].mxu0
    %1808 = vdwg.mxu0
    %1809 = vmatprep.subr.bf16.mxu0 0
    %1810 = vmatpush1.bf16.msra.mxu0 %v1144
    %1811 = vmatprep.subr.bf16.mxu0 0
    %1812 = vmatpush1.bf16.msra.mxu0 %v1153
    %1813 = vmatprep.subr.bf16.mxu0 0
    %1814 = vmatpush1.bf16.msra.mxu0 %v1162
    %1815 = vmatprep.subr.bf16.mxu0 0
    %1816 = vmatpush1.bf16.msra.mxu0 %v1171
    %1817 = vmatprep.subr.bf16.mxu0 0
    %1818 = vmatpush1.bf16.msra.mxu0 %v1180
    %1819 = vmatprep.subr.bf16.mxu0 0
    %1820 = vmatpush1.bf16.msra.mxu0 %v1189
    %1821 = vmatprep.subr.bf16.mxu0 0
    %1822 = vmatpush1.bf16.msra.mxu0 %v1198
    %1823 = vmatprep.subr.bf16.mxu0 0
    %1824 = vmatpush1.bf16.msra.mxu0 %v1207
    %1825 = vmatprep.subr.bf16.mxu0 0
    %1826 = vmatpush1.bf16.msra.mxu0 0
    %1827 = vmatprep.subr.bf16.mxu0 0
    %1828 = vmatpush1.bf16.msra.mxu0 0
    %1829 = vmatprep.subr.bf16.mxu0 0
    %1830 = vmatpush1.bf16.msra.mxu0 0
    %1831 = vmatprep.subr.bf16.mxu0 0
    %1832 = vmatpush1.bf16.msra.mxu0 0
    %1833 = vmatprep.subr.bf16.mxu0 0
    %1834 = vmatpush1.bf16.msra.mxu0 0
    %1835 = vmatprep.subr.bf16.mxu0 0
    %1836 = vmatpush1.bf16.msra.mxu0 0
    %1837 = vmatprep.subr.bf16.mxu0 0
    %1838 = vmatpush1.bf16.msra.mxu0 0
    %1839 = vmatprep.subr.bf16.mxu0 0
    %1840 = vmatpush1.bf16.msra.mxu0 0
    %1841 = vmatprep.mubr.bf16.mxu0 0
    %1842 = vmatmul.mubr.bf16.gmra.mrb[0].mxu0 %v316
    %v1843 = vpop.f32.mrb[0].mxu0
    %v1844 = vadd.f32 %v1803, %v1843
    %v1845 = vpop.f32.mrb[0].mxu0
    %v1846 = vpop.f32.mrb[0].mxu0
    %v1847 = vadd.f32 %v1806, %v1846
    %v1848 = vpop.f32.mrb[0].mxu0
    %1849 = vdwg.mxu0
    %v1850 = vpack.c.bf16 %v1506, %v1502
    %v1851 = vpack.c.bf16 %v1508, %v1504
    %v1852 = vpack.c.bf16 %v1592, %v1588
    %v1853 = vpack.c.bf16 %v1594, %v1590
    %v1854 = vpack.c.bf16 %v1678, %v1674
    %v1855 = vpack.c.bf16 %v1680, %v1676
    %v1856 = vpack.c.bf16 %v1764, %v1760
    %v1857 = vpack.c.bf16 %v1766, %v1762
    %v1858 = vpack.c.bf16 %v1847, %v1844
    %v1868 = vunpack.c.l.b16 %v1850
    %v1869 = vunpack.c.l.b16 %v1851
    %v1870 = vunpack.c.l.b16 %v1852
    %v1871 = vunpack.c.l.b16 %v1853
    %v1872 = vunpack.c.l.b16 %v1854
    %v1873 = vunpack.c.l.b16 %v1855
    %v1874 = vunpack.c.l.b16 %v1856
    %v1875 = vunpack.c.l.b16 %v1857
    %v1876 = vunpack.c.l.b16 %v1858
    %v1877 = vunpack.c.h.b16 %v1850
    %v1878 = vunpack.c.h.b16 %v1851
    %v1879 = vunpack.c.h.b16 %v1852
    %v1880 = vunpack.c.h.b16 %v1853
    %v1881 = vunpack.c.h.b16 %v1854
    %v1882 = vunpack.c.h.b16 %v1855
    %v1883 = vunpack.c.h.b16 %v1856
    %v1884 = vunpack.c.h.b16 %v1857
    %v1885 = vunpack.c.h.b16 %v1858
    %v1886 = vpack.c.b16 %v1869, %v1868
    %v1887 = vpack.c.b16 %v1871, %v1870
    %v1888 = vpack.c.b16 %v1873, %v1872
    %v1889 = vpack.c.b16 %v1875, %v1874
    %v1890 = vpack.c.b16 %v1876, %v1876
    %v1891 = vpack.c.b16 %v1878, %v1877
    %v1892 = vpack.c.b16 %v1880, %v1879
    %v1893 = vpack.c.b16 %v1882, %v1881
    %v1894 = vpack.c.b16 %v1884, %v1883
    %v1895 = vpack.c.b16 %v1885, %v1885
    %v1896 = vlaneseq
    %v1897 = vshrl.u32 %v1896, 7
    %v1898 = vlaneseq
    %v1899 = vand.u32 %v1898, 127
    %vm1900 = vcmp.le.s32.totalorder %v1899, %v1897
    %v1901 = vrot.slane %v1887, 4
    %vm1902 = vcmask 523264
    %v1904 = vsel %vm1902, %v1886, 0
    %v1907 = vsel %vm1902, %v1901, 0
    %1909 = vmatprep.subr.bf16.mxu0 0
    %1910 = vmatpush1.bf16.xpose.msra.mxu0 %v1907
    %1911 = vmatprep.subr.bf16.mxu0 0
    %1912 = vmatpush1.bf16.xpose.msra.mxu0 0
    %1913 = vmatprep.subr.bf16.mxu0 0
    %1914 = vmatpush1.bf16.xpose.msra.mxu0 0
    %1915 = vmatprep.subr.bf16.mxu0 0
    %1916 = vmatpush1.bf16.xpose.msra.mxu0 0
    %1917 = vmatprep.subr.bf16.mxu0 0
    %1918 = vmatpush1.bf16.xpose.msra.mxu0 0
    %1919 = vmatprep.subr.bf16.mxu0 0
    %1920 = vmatpush1.bf16.xpose.msra.mxu0 0
    %1921 = vmatprep.subr.bf16.mxu0 0
    %1922 = vmatpush1.bf16.xpose.msra.mxu0 0
    %1923 = vmatprep.subr.bf16.mxu0 0
    %1924 = vmatpush1.bf16.xpose.msra.mxu0 0
    %1925 = vmatprep.subr.bf16.mxu0 0
    %1926 = vmatpush1.bf16.xpose.msra.mxu0 0
    %1927 = vmatprep.subr.bf16.mxu0 0
    %1928 = vmatpush1.bf16.xpose.msra.mxu0 0
    %1929 = vmatprep.subr.bf16.mxu0 0
    %1930 = vmatpush1.bf16.xpose.msra.mxu0 0
    %1931 = vmatprep.subr.bf16.mxu0 0
    %1932 = vmatpush1.bf16.xpose.msra.mxu0 0
    %1933 = vmatprep.subr.bf16.mxu0 0
    %1934 = vmatpush1.bf16.xpose.msra.mxu0 0
    %1935 = vmatprep.subr.bf16.mxu0 0
    %1936 = vmatpush1.bf16.xpose.msra.mxu0 0
    %1937 = vmatprep.subr.bf16.mxu0 0
    %1938 = vmatpush1.bf16.xpose.msra.mxu0 0
    %1939 = vmatprep.subr.bf16.mxu0 0
    %1940 = vmatpush1.bf16.xpose.msra.mxu0 0
    %1941 = vmatprep.mubr.bf16.mxu0 0
    %1942 = vmatmul.mubr.bf16.gmra.mrb[0].mxu0 %v1904
    %v1943 = vpop.f32.mrb[0].mxu0
    %v1944 = vadd.f32 0.0, %v1943
    %v1945 = vpop.f32.mrb[0].mxu0
    %v1946 = vpop.f32.mrb[0].mxu0
    %v1947 = vpop.f32.mrb[0].mxu0
    %1948 = vdwg.mxu0
    %v1949 = vrot.slane %v1892, 4
    %v1951 = vsel %vm1902, %v1891, 0
    %v1954 = vsel %vm1902, %v1949, 0
    %1956 = vmatprep.subr.bf16.mxu0 0
    %1957 = vmatpush1.bf16.xpose.msra.mxu0 %v1954
    %1958 = vmatprep.subr.bf16.mxu0 0
    %1959 = vmatpush1.bf16.xpose.msra.mxu0 0
    %1960 = vmatprep.subr.bf16.mxu0 0
    %1961 = vmatpush1.bf16.xpose.msra.mxu0 0
    %1962 = vmatprep.subr.bf16.mxu0 0
    %1963 = vmatpush1.bf16.xpose.msra.mxu0 0
    %1964 = vmatprep.subr.bf16.mxu0 0
    %1965 = vmatpush1.bf16.xpose.msra.mxu0 0
    %1966 = vmatprep.subr.bf16.mxu0 0
    %1967 = vmatpush1.bf16.xpose.msra.mxu0 0
    %1968 = vmatprep.subr.bf16.mxu0 0
    %1969 = vmatpush1.bf16.xpose.msra.mxu0 0
    %1970 = vmatprep.subr.bf16.mxu0 0
    %1971 = vmatpush1.bf16.xpose.msra.mxu0 0
    %1972 = vmatprep.subr.bf16.mxu0 0
    %1973 = vmatpush1.bf16.xpose.msra.mxu0 0
    %1974 = vmatprep.subr.bf16.mxu0 0
    %1975 = vmatpush1.bf16.xpose.msra.mxu0 0
    %1976 = vmatprep.subr.bf16.mxu0 0
    %1977 = vmatpush1.bf16.xpose.msra.mxu0 0
    %1978 = vmatprep.subr.bf16.mxu0 0
    %1979 = vmatpush1.bf16.xpose.msra.mxu0 0
    %1980 = vmatprep.subr.bf16.mxu0 0
    %1981 = vmatpush1.bf16.xpose.msra.mxu0 0
    %1982 = vmatprep.subr.bf16.mxu0 0
    %1983 = vmatpush1.bf16.xpose.msra.mxu0 0
    %1984 = vmatprep.subr.bf16.mxu0 0
    %1985 = vmatpush1.bf16.xpose.msra.mxu0 0
    %1986 = vmatprep.subr.bf16.mxu0 0
    %1987 = vmatpush1.bf16.xpose.msra.mxu0 0
    %1988 = vmatprep.mubr.bf16.mxu0 0
    %1989 = vmatmul.mubr.bf16.gmra.mrb[0].mxu0 %v1951
    %v1990 = vpop.f32.mrb[0].mxu0
    %v1991 = vadd.f32 0.0, %v1990
    %v1992 = vpop.f32.mrb[0].mxu0
    %v1993 = vpop.f32.mrb[0].mxu0
    %v1994 = vpop.f32.mrb[0].mxu0
    %1995 = vdwg.mxu0
    %v1996 = vsel %vm1900, 1, 0
    %vm1997 = vcmp.eq.s32.totalorder %v1996, 1
    %v1998 = vsel %vm1997, %v1944, -1e+30
    %v1999 = vsel %vm1997, %v1991, -1e+30
    %vm2000 = vcmask 64512
    %v2001 = vsel %vm2000, %v1998, -inf
    %2002 = vmax.xlane.f32.xlu0 %v2001
    %v2003 = vpop.xlane.xlu0 %2002
    %v2004 = vsel %vm2000, %v1999, -inf
    %2005 = vmax.xlane.f32.xlu0 %v2004
    %v2006 = vpop.xlane.xlu0 %2005
    %v2007 = vsub.f32 %v1998, %v2003
    %v2008 = vsub.f32 %v1999, %v2006
    %v2009 = vmul.f32 %v2007, 1.442695
    %v2010 = vpow.pop %v2009
    %v2011 = vmul.f32 %v2008, 1.442695
    %v2012 = vpow.pop %v2011
    %v2013 = vsel %vm2000, %v2010, 0.0
    %2014 = vadd.xlane.f32.xlu0 %v2013
    %v2015 = vpop.xlane.xlu0 %2014
    %v2016 = vsel %vm2000, %v2012, 0.0
    %2017 = vadd.xlane.f32.xlu0 %v2016
    %v2018 = vpop.xlane.xlu0 %2017
    %v2019 = vrcp.pop %v2015
    %v2020 = vrcp.pop %v2018
    %v2021 = vmul.f32 %v2010, %v2019
    %v2022 = vmul.f32 %v2012, %v2020
    %v2023 = vpack.c.bf16 %v2021, %v2021
    %v2024 = vpack.c.bf16 %v2022, %v2022
    %v2026 = vsel %vm2000, %v2023, 0
    %vm2028 = vcmask 1043456
    %v2030 = vsel %vm2028, %v1889, 0
    %2032 = vmatprep.subr.bf16.mxu0 0
    %2033 = vmatpush1.bf16.msra.mxu0 %v2030
    %2034 = vmatprep.subr.bf16.mxu0 0
    %2035 = vmatpush1.bf16.msra.mxu0 0
    %2036 = vmatprep.subr.bf16.mxu0 0
    %2037 = vmatpush1.bf16.msra.mxu0 0
    %2038 = vmatprep.subr.bf16.mxu0 0
    %2039 = vmatpush1.bf16.msra.mxu0 0
    %2040 = vmatprep.subr.bf16.mxu0 0
    %2041 = vmatpush1.bf16.msra.mxu0 0
    %2042 = vmatprep.subr.bf16.mxu0 0
    %2043 = vmatpush1.bf16.msra.mxu0 0
    %2044 = vmatprep.subr.bf16.mxu0 0
    %2045 = vmatpush1.bf16.msra.mxu0 0
    %2046 = vmatprep.subr.bf16.mxu0 0
    %2047 = vmatpush1.bf16.msra.mxu0 0
    %2048 = vmatprep.subr.bf16.mxu0 0
    %2049 = vmatpush1.bf16.msra.mxu0 0
    %2050 = vmatprep.subr.bf16.mxu0 0
    %2051 = vmatpush1.bf16.msra.mxu0 0
    %2052 = vmatprep.subr.bf16.mxu0 0
    %2053 = vmatpush1.bf16.msra.mxu0 0
    %2054 = vmatprep.subr.bf16.mxu0 0
    %2055 = vmatpush1.bf16.msra.mxu0 0
    %2056 = vmatprep.subr.bf16.mxu0 0
    %2057 = vmatpush1.bf16.msra.mxu0 0
    %2058 = vmatprep.subr.bf16.mxu0 0
    %2059 = vmatpush1.bf16.msra.mxu0 0
    %2060 = vmatprep.subr.bf16.mxu0 0
    %2061 = vmatpush1.bf16.msra.mxu0 0
    %2062 = vmatprep.subr.bf16.mxu0 0
    %2063 = vmatpush1.bf16.msra.mxu0 0
    %2064 = vmatprep.mubr.bf16.mxu0 0
    %2065 = vmatmul.mubr.bf16.gmra.mrb[0].mxu0 %v2026
    %v2066 = vpop.f32.mrb[0].mxu0
    %v2067 = vadd.f32 0.0, %v2066
    %v2068 = vpop.f32.mrb[0].mxu0
    %v2069 = vpop.f32.mrb[0].mxu0
    %v2070 = vpop.f32.mrb[0].mxu0
    %2071 = vdwg.mxu0
    %v2073 = vsel %vm2000, %v2024, 0
    %v2076 = vsel %vm2028, %v1894, 0
    %2078 = vmatprep.subr.bf16.mxu0 0
    %2079 = vmatpush1.bf16.msra.mxu0 %v2076
    %2080 = vmatprep.subr.bf16.mxu0 0
    %2081 = vmatpush1.bf16.msra.mxu0 0
    %2082 = vmatprep.subr.bf16.mxu0 0
    %2083 = vmatpush1.bf16.msra.mxu0 0
    %2084 = vmatprep.subr.bf16.mxu0 0
    %2085 = vmatpush1.bf16.msra.mxu0 0
    %2086 = vmatprep.subr.bf16.mxu0 0
    %2087 = vmatpush1.bf16.msra.mxu0 0
    %2088 = vmatprep.subr.bf16.mxu0 0
    %2089 = vmatpush1.bf16.msra.mxu0 0
    %2090 = vmatprep.subr.bf16.mxu0 0
    %2091 = vmatpush1.bf16.msra.mxu0 0
    %2092 = vmatprep.subr.bf16.mxu0 0
    %2093 = vmatpush1.bf16.msra.mxu0 0
    %2094 = vmatprep.subr.bf16.mxu0 0
    %2095 = vmatpush1.bf16.msra.mxu0 0
    %2096 = vmatprep.subr.bf16.mxu0 0
    %2097 = vmatpush1.bf16.msra.mxu0 0
    %2098 = vmatprep.subr.bf16.mxu0 0
    %2099 = vmatpush1.bf16.msra.mxu0 0
    %2100 = vmatprep.subr.bf16.mxu0 0
    %2101 = vmatpush1.bf16.msra.mxu0 0
    %2102 = vmatprep.subr.bf16.mxu0 0
    %2103 = vmatpush1.bf16.msra.mxu0 0
    %2104 = vmatprep.subr.bf16.mxu0 0
    %2105 = vmatpush1.bf16.msra.mxu0 0
    %2106 = vmatprep.subr.bf16.mxu0 0
    %2107 = vmatpush1.bf16.msra.mxu0 0
    %2108 = vmatprep.subr.bf16.mxu0 0
    %2109 = vmatpush1.bf16.msra.mxu0 0
    %2110 = vmatprep.mubr.bf16.mxu0 0
    %2111 = vmatmul.mubr.bf16.gmra.mrb[0].mxu0 %v2073
    %v2112 = vpop.f32.mrb[0].mxu0
    %v2113 = vadd.f32 0.0, %v2112
    %v2114 = vpop.f32.mrb[0].mxu0
    %v2115 = vpop.f32.mrb[0].mxu0
    %v2116 = vpop.f32.mrb[0].mxu0
    %2117 = vdwg.mxu0
    %v2118 = vpack.c.bf16 %v2113, %v2067
    %v2119 = vld [vmem:[#allocation7] sm:$0xff]
    %v2120 = vld [vmem:[#allocation7 + $0x8] sm:$0xf]
    %v2121 = vld [vmem:[#allocation7 + $0xc] sm:$0xff]
    %v2122 = vld [vmem:[#allocation7 + $0x14] sm:$0xf]
    %v2123 = vld [vmem:[#allocation7 + $0x18] sm:$0xff]
    %v2124 = vld [vmem:[#allocation7 + $0x20] sm:$0xf]
    %v2125 = vld [vmem:[#allocation7 + $0x24] sm:$0xff]
    %v2126 = vld [vmem:[#allocation7 + $0x2c] sm:$0xf]
    %v2127 = vld [vmem:[#allocation7 + $0x30] sm:$0xff]
    %v2128 = vld [vmem:[#allocation7 + $0x38] sm:$0xf]
    %v2129 = vld [vmem:[#allocation7 + $0x3c] sm:$0xff]
    %v2130 = vld [vmem:[#allocation7 + $0x44] sm:$0xf]
    %v2131 = vld [vmem:[#allocation7 + $0x48] sm:$0xff]
    %v2132 = vld [vmem:[#allocation7 + $0x50] sm:$0xf]
    %v2133 = vld [vmem:[#allocation7 + $0x54] sm:$0xff]
    %v2134 = vld [vmem:[#allocation7 + $0x5c] sm:$0xf]
    %2135 = vrot.lane.b32.xlu0 %v1887, 64
    %v2136 = vpop.permute.xlu0 %2135
    %v2137 = vrot.slane %v2136, 4
    %v2138 = vpack.c.b16 %v1868, %v1868
    %2139 = vrot.lane.b32.xlu0 %v2138, 64
    %v2140 = vpop.permute.xlu0 %2139
    %v2142 = vsel %vm1902, %v2140, 0
    %v2145 = vsel %vm1902, %v2137, 0
    %2147 = vmatprep.subr.bf16.mxu0 0
    %2148 = vmatpush1.bf16.xpose.msra.mxu0 %v2145
    %2149 = vmatprep.subr.bf16.mxu0 0
    %2150 = vmatpush1.bf16.xpose.msra.mxu0 0
    %2151 = vmatprep.subr.bf16.mxu0 0
    %2152 = vmatpush1.bf16.xpose.msra.mxu0 0
    %2153 = vmatprep.subr.bf16.mxu0 0
    %2154 = vmatpush1.bf16.xpose.msra.mxu0 0
    %2155 = vmatprep.subr.bf16.mxu0 0
    %2156 = vmatpush1.bf16.xpose.msra.mxu0 0
    %2157 = vmatprep.subr.bf16.mxu0 0
    %2158 = vmatpush1.bf16.xpose.msra.mxu0 0
    %2159 = vmatprep.subr.bf16.mxu0 0
    %2160 = vmatpush1.bf16.xpose.msra.mxu0 0
    %2161 = vmatprep.subr.bf16.mxu0 0
    %2162 = vmatpush1.bf16.xpose.msra.mxu0 0
    %2163 = vmatprep.subr.bf16.mxu0 0
    %2164 = vmatpush1.bf16.xpose.msra.mxu0 0
    %2165 = vmatprep.subr.bf16.mxu0 0
    %2166 = vmatpush1.bf16.xpose.msra.mxu0 0
    %2167 = vmatprep.subr.bf16.mxu0 0
    %2168 = vmatpush1.bf16.xpose.msra.mxu0 0
    %2169 = vmatprep.subr.bf16.mxu0 0
    %2170 = vmatpush1.bf16.xpose.msra.mxu0 0
    %2171 = vmatprep.subr.bf16.mxu0 0
    %2172 = vmatpush1.bf16.xpose.msra.mxu0 0
    %2173 = vmatprep.subr.bf16.mxu0 0
    %2174 = vmatpush1.bf16.xpose.msra.mxu0 0
    %2175 = vmatprep.subr.bf16.mxu0 0
    %2176 = vmatpush1.bf16.xpose.msra.mxu0 0
    %2177 = vmatprep.subr.bf16.mxu0 0
    %2178 = vmatpush1.bf16.xpose.msra.mxu0 0
    %2179 = vmatprep.mubr.bf16.mxu0 0
    %2180 = vmatmul.mubr.bf16.gmra.mrb[0].mxu0 %v2142
    %v2181 = vpop.f32.mrb[0].mxu0
    %v2182 = vadd.f32 0.0, %v2181
    %v2183 = vpop.f32.mrb[0].mxu0
    %v2184 = vpop.f32.mrb[0].mxu0
    %v2185 = vpop.f32.mrb[0].mxu0
    %2186 = vdwg.mxu0
    %2187 = vrot.lane.b32.xlu0 %v1892, 64
    %v2188 = vpop.permute.xlu0 %2187
    %v2189 = vrot.slane %v2188, 4
    %v2190 = vpack.c.b16 %v1877, %v1877
    %2191 = vrot.lane.b32.xlu0 %v2190, 64
    %v2192 = vpop.permute.xlu0 %2191
    %v2194 = vsel %vm1902, %v2192, 0
    %v2197 = vsel %vm1902, %v2189, 0
    %2199 = vmatprep.subr.bf16.mxu0 0
    %2200 = vmatpush1.bf16.xpose.msra.mxu0 %v2197
    %2201 = vmatprep.subr.bf16.mxu0 0
    %2202 = vmatpush1.bf16.xpose.msra.mxu0 0
    %2203 = vmatprep.subr.bf16.mxu0 0
    %2204 = vmatpush1.bf16.xpose.msra.mxu0 0
    %2205 = vmatprep.subr.bf16.mxu0 0
    %2206 = vmatpush1.bf16.xpose.msra.mxu0 0
    %2207 = vmatprep.subr.bf16.mxu0 0
    %2208 = vmatpush1.bf16.xpose.msra.mxu0 0
    %2209 = vmatprep.subr.bf16.mxu0 0
    %2210 = vmatpush1.bf16.xpose.msra.mxu0 0
    %2211 = vmatprep.subr.bf16.mxu0 0
    %2212 = vmatpush1.bf16.xpose.msra.mxu0 0
    %2213 = vmatprep.subr.bf16.mxu0 0
    %2214 = vmatpush1.bf16.xpose.msra.mxu0 0
    %2215 = vmatprep.subr.bf16.mxu0 0
    %2216 = vmatpush1.bf16.xpose.msra.mxu0 0
    %2217 = vmatprep.subr.bf16.mxu0 0
    %2218 = vmatpush1.bf16.xpose.msra.mxu0 0
    %2219 = vmatprep.subr.bf16.mxu0 0
    %2220 = vmatpush1.bf16.xpose.msra.mxu0 0
    %2221 = vmatprep.subr.bf16.mxu0 0
    %2222 = vmatpush1.bf16.xpose.msra.mxu0 0
    %2223 = vmatprep.subr.bf16.mxu0 0
    %2224 = vmatpush1.bf16.xpose.msra.mxu0 0
    %2225 = vmatprep.subr.bf16.mxu0 0
    %2226 = vmatpush1.bf16.xpose.msra.mxu0 0
    %2227 = vmatprep.subr.bf16.mxu0 0
    %2228 = vmatpush1.bf16.xpose.msra.mxu0 0
    %2229 = vmatprep.subr.bf16.mxu0 0
    %2230 = vmatpush1.bf16.xpose.msra.mxu0 0
    %2231 = vmatprep.mubr.bf16.mxu0 0
    %2232 = vmatmul.mubr.bf16.gmra.mrb[0].mxu0 %v2194
    %v2233 = vpop.f32.mrb[0].mxu0
    %v2234 = vadd.f32 0.0, %v2233
    %v2235 = vpop.f32.mrb[0].mxu0
    %v2236 = vpop.f32.mrb[0].mxu0
    %v2237 = vpop.f32.mrb[0].mxu0
    %2238 = vdwg.mxu0
    %v2239 = vsel %vm1997, %v2182, -1e+30
    %v2240 = vsel %vm1997, %v2234, -1e+30
    %v2241 = vsel %vm2000, %v2239, -inf
    %2242 = vmax.xlane.f32.xlu0 %v2241
    %v2243 = vpop.xlane.xlu0 %2242
    %v2244 = vsel %vm2000, %v2240, -inf
    %2245 = vmax.xlane.f32.xlu0 %v2244
    %v2246 = vpop.xlane.xlu0 %2245
    %v2247 = vsub.f32 %v2239, %v2243
    %v2248 = vsub.f32 %v2240, %v2246
    %v2249 = vmul.f32 %v2247, 1.442695
    %v2250 = vpow.pop %v2249
    %v2251 = vmul.f32 %v2248, 1.442695
    %v2252 = vpow.pop %v2251
    %v2253 = vsel %vm2000, %v2250, 0.0
    %2254 = vadd.xlane.f32.xlu0 %v2253
    %v2255 = vpop.xlane.xlu0 %2254
    %v2256 = vsel %vm2000, %v2252, 0.0
    %2257 = vadd.xlane.f32.xlu0 %v2256
    %v2258 = vpop.xlane.xlu0 %2257
    %v2259 = vrcp.pop %v2255
    %v2260 = vrcp.pop %v2258
    %v2261 = vmul.f32 %v2250, %v2259
    %v2262 = vmul.f32 %v2252, %v2260
    %v2263 = vpack.c.bf16 %v2261, %v2261
    %v2264 = vpack.c.bf16 %v2262, %v2262
    %v2265 = vpack.c.b16 %v1874, %v1874
    %2266 = vrot.lane.b32.xlu0 %v2265, 64
    %v2267 = vpop.permute.xlu0 %2266
    %v2269 = vsel %vm2000, %v2263, 0
    %v2272 = vsel %vm2028, %v2267, 0
    %2274 = vmatprep.subr.bf16.mxu0 0
    %2275 = vmatpush1.bf16.msra.mxu0 %v2272
    %2276 = vmatprep.subr.bf16.mxu0 0
    %2277 = vmatpush1.bf16.msra.mxu0 0
    %2278 = vmatprep.subr.bf16.mxu0 0
    %2279 = vmatpush1.bf16.msra.mxu0 0
    %2280 = vmatprep.subr.bf16.mxu0 0
    %2281 = vmatpush1.bf16.msra.mxu0 0
    %2282 = vmatprep.subr.bf16.mxu0 0
    %2283 = vmatpush1.bf16.msra.mxu0 0
    %2284 = vmatprep.subr.bf16.mxu0 0
    %2285 = vmatpush1.bf16.msra.mxu0 0
    %2286 = vmatprep.subr.bf16.mxu0 0
    %2287 = vmatpush1.bf16.msra.mxu0 0
    %2288 = vmatprep.subr.bf16.mxu0 0
    %2289 = vmatpush1.bf16.msra.mxu0 0
    %2290 = vmatprep.subr.bf16.mxu0 0
    %2291 = vmatpush1.bf16.msra.mxu0 0
    %2292 = vmatprep.subr.bf16.mxu0 0
    %2293 = vmatpush1.bf16.msra.mxu0 0
    %2294 = vmatprep.subr.bf16.mxu0 0
    %2295 = vmatpush1.bf16.msra.mxu0 0
    %2296 = vmatprep.subr.bf16.mxu0 0
    %2297 = vmatpush1.bf16.msra.mxu0 0
    %2298 = vmatprep.subr.bf16.mxu0 0
    %2299 = vmatpush1.bf16.msra.mxu0 0
    %2300 = vmatprep.subr.bf16.mxu0 0
    %2301 = vmatpush1.bf16.msra.mxu0 0
    %2302 = vmatprep.subr.bf16.mxu0 0
    %2303 = vmatpush1.bf16.msra.mxu0 0
    %2304 = vmatprep.subr.bf16.mxu0 0
    %2305 = vmatpush1.bf16.msra.mxu0 0
    %2306 = vmatprep.mubr.bf16.mxu0 0
    %2307 = vmatmul.mubr.bf16.gmra.mrb[0].mxu0 %v2269
    %v2308 = vpop.f32.mrb[0].mxu0
    %v2309 = vadd.f32 0.0, %v2308
    %v2310 = vpop.f32.mrb[0].mxu0
    %v2311 = vpop.f32.mrb[0].mxu0
    %v2312 = vpop.f32.mrb[0].mxu0
    %2313 = vdwg.mxu0
    %v2314 = vpack.c.b16 %v1883, %v1883
    %2315 = vrot.lane.b32.xlu0 %v2314, 64
    %v2316 = vpop.permute.xlu0 %2315
    %v2318 = vsel %vm2000, %v2264, 0
    %v2321 = vsel %vm2028, %v2316, 0
    %2323 = vmatprep.subr.bf16.mxu0 0
    %2324 = vmatpush1.bf16.msra.mxu0 %v2321
    %2325 = vmatprep.subr.bf16.mxu0 0
    %2326 = vmatpush1.bf16.msra.mxu0 0
    %2327 = vmatprep.subr.bf16.mxu0 0
    %2328 = vmatpush1.bf16.msra.mxu0 0
    %2329 = vmatprep.subr.bf16.mxu0 0
    %2330 = vmatpush1.bf16.msra.mxu0 0
    %2331 = vmatprep.subr.bf16.mxu0 0
    %2332 = vmatpush1.bf16.msra.mxu0 0
    %2333 = vmatprep.subr.bf16.mxu0 0
    %2334 = vmatpush1.bf16.msra.mxu0 0
    %2335 = vmatprep.subr.bf16.mxu0 0
    %2336 = vmatpush1.bf16.msra.mxu0 0
    %2337 = vmatprep.subr.bf16.mxu0 0
    %2338 = vmatpush1.bf16.msra.mxu0 0
    %2339 = vmatprep.subr.bf16.mxu0 0
    %2340 = vmatpush1.bf16.msra.mxu0 0
    %2341 = vmatprep.subr.bf16.mxu0 0
    %2342 = vmatpush1.bf16.msra.mxu0 0
    %2343 = vmatprep.subr.bf16.mxu0 0
    %2344 = vmatpush1.bf16.msra.mxu0 0
    %2345 = vmatprep.subr.bf16.mxu0 0
    %2346 = vmatpush1.bf16.msra.mxu0 0
    %2347 = vmatprep.subr.bf16.mxu0 0
    %2348 = vmatpush1.bf16.msra.mxu0 0
    %2349 = vmatprep.subr.bf16.mxu0 0
    %2350 = vmatpush1.bf16.msra.mxu0 0
    %2351 = vmatprep.subr.bf16.mxu0 0
    %2352 = vmatpush1.bf16.msra.mxu0 0
    %2353 = vmatprep.subr.bf16.mxu0 0
    %2354 = vmatpush1.bf16.msra.mxu0 0
    %2355 = vmatprep.mubr.bf16.mxu0 0
    %2356 = vmatmul.mubr.bf16.gmra.mrb[0].mxu0 %v2318
    %v2357 = vpop.f32.mrb[0].mxu0
    %v2358 = vadd.f32 0.0, %v2357
    %v2359 = vpop.f32.mrb[0].mxu0
    %v2360 = vpop.f32.mrb[0].mxu0
    %v2361 = vpop.f32.mrb[0].mxu0
    %2362 = vdwg.mxu0
    %v2363 = vpack.c.bf16 %v2358, %v2309
    %v2364 = vld [vmem:[#allocation7 + $0x60] sm:$0xff]
    %v2365 = vld [vmem:[#allocation7 + $0x68] sm:$0xf]
    %v2366 = vld [vmem:[#allocation7 + $0x6c] sm:$0xff]
    %v2367 = vld [vmem:[#allocation7 + $0x74] sm:$0xf]
    %v2368 = vld [vmem:[#allocation7 + $0x78] sm:$0xff]
    %v2369 = vld [vmem:[#allocation7 + $0x80] sm:$0xf]
    %v2370 = vld [vmem:[#allocation7 + $0x84] sm:$0xff]
    %v2371 = vld [vmem:[#allocation7 + $0x8c] sm:$0xf]
    %v2372 = vld [vmem:[#allocation7 + $0x90] sm:$0xff]
    %v2373 = vld [vmem:[#allocation7 + $0x98] sm:$0xf]
    %v2374 = vld [vmem:[#allocation7 + $0x9c] sm:$0xff]
    %v2375 = vld [vmem:[#allocation7 + $0xa4] sm:$0xf]
    %v2376 = vld [vmem:[#allocation7 + $0xa8] sm:$0xff]
    %v2377 = vld [vmem:[#allocation7 + $0xb0] sm:$0xf]
    %v2378 = vld [vmem:[#allocation7 + $0xb4] sm:$0xff]
    %v2379 = vld [vmem:[#allocation7 + $0xbc] sm:$0xf]
    %v2396 = vunpack.c.l.b16 %v2364
    %v2397 = vunpack.c.h.b16 %v2364
    %v2398 = vunpack.c.l.b16 %v2365
    %v2399 = vunpack.c.l.b16 %v2366
    %v2400 = vunpack.c.h.b16 %v2366
    %v2401 = vunpack.c.l.b16 %v2367
    %v2402 = vunpack.c.l.b16 %v2368
    %v2403 = vunpack.c.h.b16 %v2368
    %v2404 = vunpack.c.l.b16 %v2369
    %v2405 = vunpack.c.l.b16 %v2370
    %v2406 = vunpack.c.h.b16 %v2370
    %v2407 = vunpack.c.l.b16 %v2371
    %v2408 = vunpack.c.l.b16 %v2372
    %v2409 = vunpack.c.h.b16 %v2372
    %v2410 = vunpack.c.l.b16 %v2373
    %v2411 = vunpack.c.l.b16 %v2374
    %v2412 = vunpack.c.h.b16 %v2374
    %v2413 = vunpack.c.l.b16 %v2375
    %v2414 = vunpack.c.l.b16 %v2376
    %v2415 = vunpack.c.h.b16 %v2376
    %v2416 = vunpack.c.l.b16 %v2377
    %v2417 = vunpack.c.l.b16 %v2378
    %v2418 = vunpack.c.h.b16 %v2378
    %v2419 = vunpack.c.l.b16 %v2379
    %v2420 = vpack.c.b16 %v2399, %v2396
    %v2421 = vpack.c.b16 %v2400, %v2397
    %v2422 = vpack.c.b16 %v2401, %v2398
    %v2423 = vpack.c.b16 %v2405, %v2402
    %v2424 = vpack.c.b16 %v2406, %v2403
    %v2425 = vpack.c.b16 %v2407, %v2404
    %v2426 = vpack.c.b16 %v2411, %v2408
    %v2427 = vpack.c.b16 %v2412, %v2409
    %v2428 = vpack.c.b16 %v2413, %v2410
    %v2429 = vpack.c.b16 %v2417, %v2414
    %v2430 = vpack.c.b16 %v2418, %v2415
    %v2431 = vpack.c.b16 %v2419, %v2416
    %v2445 = vsel %vm1902, %v2363, 0
    %2447 = vmatprep.subr.bf16.mxu0 %v2421
    %2448 = vmatpush1.bf16.msra.mxu0 %v2420
    %2449 = vmatprep.subr.bf16.mxu0 %v2424
    %2450 = vmatpush1.bf16.msra.mxu0 %v2423
    %2451 = vmatprep.subr.bf16.mxu0 %v2427
    %2452 = vmatpush1.bf16.msra.mxu0 %v2426
    %2453 = vmatprep.subr.bf16.mxu0 %v2430
    %2454 = vmatpush1.bf16.msra.mxu0 %v2429
    %2455 = vmatprep.subr.bf16.mxu0 0
    %2456 = vmatpush1.bf16.msra.mxu0 0
    %2457 = vmatprep.subr.bf16.mxu0 0
    %2458 = vmatpush1.bf16.msra.mxu0 0
    %2459 = vmatprep.subr.bf16.mxu0 0
    %2460 = vmatpush1.bf16.msra.mxu0 0
    %2461 = vmatprep.subr.bf16.mxu0 0
    %2462 = vmatpush1.bf16.msra.mxu0 0
    %2463 = vmatprep.subr.bf16.mxu0 0
    %2464 = vmatpush1.bf16.msra.mxu0 0
    %2465 = vmatprep.subr.bf16.mxu0 0
    %2466 = vmatpush1.bf16.msra.mxu0 0
    %2467 = vmatprep.subr.bf16.mxu0 0
    %2468 = vmatpush1.bf16.msra.mxu0 0
    %2469 = vmatprep.subr.bf16.mxu0 0
    %2470 = vmatpush1.bf16.msra.mxu0 0
    %2471 = vmatprep.subr.bf16.mxu0 0
    %2472 = vmatpush1.bf16.msra.mxu0 0
    %2473 = vmatprep.subr.bf16.mxu0 0
    %2474 = vmatpush1.bf16.msra.mxu0 0
    %2475 = vmatprep.subr.bf16.mxu0 0
    %2476 = vmatpush1.bf16.msra.mxu0 0
    %2477 = vmatprep.subr.bf16.mxu0 0
    %2478 = vmatpush1.bf16.msra.mxu0 0
    %2479 = vmatprep.mubr.bf16.mxu0 0
    %2480 = vmatmul.mubr.bf16.gmra.mrb[0].mxu0 %v2445
    %v2481 = vpop.f32.mrb[0].mxu0
    %v2482 = vadd.f32 0.0, %v2481
    %v2483 = vpop.f32.mrb[0].mxu0
    %v2484 = vadd.f32 0.0, %v2483
    %v2485 = vpop.f32.mrb[0].mxu0
    %v2486 = vadd.f32 0.0, %v2485
    %v2487 = vpop.f32.mrb[0].mxu0
    %v2488 = vadd.f32 0.0, %v2487
    %2489 = vdwg.mxu0
    %2490 = vmatprep.subr.bf16.mxu0 0
    %2491 = vmatpush1.bf16.msra.mxu0 %v2422
    %2492 = vmatprep.subr.bf16.mxu0 0
    %2493 = vmatpush1.bf16.msra.mxu0 %v2425
    %2494 = vmatprep.subr.bf16.mxu0 0
    %2495 = vmatpush1.bf16.msra.mxu0 %v2428
    %2496 = vmatprep.subr.bf16.mxu0 0
    %2497 = vmatpush1.bf16.msra.mxu0 %v2431
    %2498 = vmatprep.subr.bf16.mxu0 0
    %2499 = vmatpush1.bf16.msra.mxu0 0
    %2500 = vmatprep.subr.bf16.mxu0 0
    %2501 = vmatpush1.bf16.msra.mxu0 0
    %2502 = vmatprep.subr.bf16.mxu0 0
    %2503 = vmatpush1.bf16.msra.mxu0 0
    %2504 = vmatprep.subr.bf16.mxu0 0
    %2505 = vmatpush1.bf16.msra.mxu0 0
    %2506 = vmatprep.subr.bf16.mxu0 0
    %2507 = vmatpush1.bf16.msra.mxu0 0
    %2508 = vmatprep.subr.bf16.mxu0 0
    %2509 = vmatpush1.bf16.msra.mxu0 0
    %2510 = vmatprep.subr.bf16.mxu0 0
    %2511 = vmatpush1.bf16.msra.mxu0 0
    %2512 = vmatprep.subr.bf16.mxu0 0
    %2513 = vmatpush1.bf16.msra.mxu0 0
    %2514 = vmatprep.subr.bf16.mxu0 0
    %2515 = vmatpush1.bf16.msra.mxu0 0
    %2516 = vmatprep.subr.bf16.mxu0 0
    %2517 = vmatpush1.bf16.msra.mxu0 0
    %2518 = vmatprep.subr.bf16.mxu0 0
    %2519 = vmatpush1.bf16.msra.mxu0 0
    %2520 = vmatprep.subr.bf16.mxu0 0
    %2521 = vmatpush1.bf16.msra.mxu0 0
    %2522 = vmatprep.mubr.bf16.mxu0 0
    %2523 = vmatmul.mubr.bf16.gmra.mrb[0].mxu0 %v2445
    %v2524 = vpop.f32.mrb[0].mxu0
    %v2525 = vadd.f32 0.0, %v2524
    %v2526 = vpop.f32.mrb[0].mxu0
    %v2527 = vpop.f32.mrb[0].mxu0
    %v2528 = vadd.f32 0.0, %v2527
    %v2529 = vpop.f32.mrb[0].mxu0
    %2530 = vdwg.mxu0
    %v2547 = vunpack.c.l.b16 %v2119
    %v2548 = vunpack.c.h.b16 %v2119
    %v2549 = vunpack.c.l.b16 %v2120
    %v2550 = vunpack.c.l.b16 %v2121
    %v2551 = vunpack.c.h.b16 %v2121
    %v2552 = vunpack.c.l.b16 %v2122
    %v2553 = vunpack.c.l.b16 %v2123
    %v2554 = vunpack.c.h.b16 %v2123
    %v2555 = vunpack.c.l.b16 %v2124
    %v2556 = vunpack.c.l.b16 %v2125
    %v2557 = vunpack.c.h.b16 %v2125
    %v2558 = vunpack.c.l.b16 %v2126
    %v2559 = vunpack.c.l.b16 %v2127
    %v2560 = vunpack.c.h.b16 %v2127
    %v2561 = vunpack.c.l.b16 %v2128
    %v2562 = vunpack.c.l.b16 %v2129
    %v2563 = vunpack.c.h.b16 %v2129
    %v2564 = vunpack.c.l.b16 %v2130
    %v2565 = vunpack.c.l.b16 %v2131
    %v2566 = vunpack.c.h.b16 %v2131
    %v2567 = vunpack.c.l.b16 %v2132
    %v2568 = vunpack.c.l.b16 %v2133
    %v2569 = vunpack.c.h.b16 %v2133
    %v2570 = vunpack.c.l.b16 %v2134
    %v2571 = vpack.c.b16 %v2550, %v2547
    %v2572 = vpack.c.b16 %v2551, %v2548
    %v2573 = vpack.c.b16 %v2552, %v2549
    %v2574 = vpack.c.b16 %v2556, %v2553
    %v2575 = vpack.c.b16 %v2557, %v2554
    %v2576 = vpack.c.b16 %v2558, %v2555
    %v2577 = vpack.c.b16 %v2562, %v2559
    %v2578 = vpack.c.b16 %v2563, %v2560
    %v2579 = vpack.c.b16 %v2564, %v2561
    %v2580 = vpack.c.b16 %v2568, %v2565
    %v2581 = vpack.c.b16 %v2569, %v2566
    %v2582 = vpack.c.b16 %v2570, %v2567
    %v2596 = vsel %vm1902, %v2118, 0
    %2598 = vmatprep.subr.bf16.mxu0 %v2572
    %2599 = vmatpush1.bf16.msra.mxu0 %v2571
    %2600 = vmatprep.subr.bf16.mxu0 %v2575
    %2601 = vmatpush1.bf16.msra.mxu0 %v2574
    %2602 = vmatprep.subr.bf16.mxu0 %v2578
    %2603 = vmatpush1.bf16.msra.mxu0 %v2577
    %2604 = vmatprep.subr.bf16.mxu0 %v2581
    %2605 = vmatpush1.bf16.msra.mxu0 %v2580
    %2606 = vmatprep.subr.bf16.mxu0 0
    %2607 = vmatpush1.bf16.msra.mxu0 0
    %2608 = vmatprep.subr.bf16.mxu0 0
    %2609 = vmatpush1.bf16.msra.mxu0 0
    %2610 = vmatprep.subr.bf16.mxu0 0
    %2611 = vmatpush1.bf16.msra.mxu0 0
    %2612 = vmatprep.subr.bf16.mxu0 0
    %2613 = vmatpush1.bf16.msra.mxu0 0
    %2614 = vmatprep.subr.bf16.mxu0 0
    %2615 = vmatpush1.bf16.msra.mxu0 0
    %2616 = vmatprep.subr.bf16.mxu0 0
    %2617 = vmatpush1.bf16.msra.mxu0 0
    %2618 = vmatprep.subr.bf16.mxu0 0
    %2619 = vmatpush1.bf16.msra.mxu0 0
    %2620 = vmatprep.subr.bf16.mxu0 0
    %2621 = vmatpush1.bf16.msra.mxu0 0
    %2622 = vmatprep.subr.bf16.mxu0 0
    %2623 = vmatpush1.bf16.msra.mxu0 0
    %2624 = vmatprep.subr.bf16.mxu0 0
    %2625 = vmatpush1.bf16.msra.mxu0 0
    %2626 = vmatprep.subr.bf16.mxu0 0
    %2627 = vmatpush1.bf16.msra.mxu0 0
    %2628 = vmatprep.subr.bf16.mxu0 0
    %2629 = vmatpush1.bf16.msra.mxu0 0
    %2630 = vmatprep.mubr.bf16.mxu0 0
    %2631 = vmatmul.mubr.bf16.gmra.mrb[0].mxu0 %v2596
    %v2632 = vpop.f32.mrb[0].mxu0
    %v2633 = vadd.f32 %v2482, %v2632
    %v2634 = vpop.f32.mrb[0].mxu0
    %v2635 = vadd.f32 %v2484, %v2634
    %v2636 = vpop.f32.mrb[0].mxu0
    %v2637 = vadd.f32 %v2486, %v2636
    %v2638 = vpop.f32.mrb[0].mxu0
    %v2639 = vadd.f32 %v2488, %v2638
    %2640 = vdwg.mxu0
    %2641 = vmatprep.subr.bf16.mxu0 0
    %2642 = vmatpush1.bf16.msra.mxu0 %v2573
    %2643 = vmatprep.subr.bf16.mxu0 0
    %2644 = vmatpush1.bf16.msra.mxu0 %v2576
    %2645 = vmatprep.subr.bf16.mxu0 0
    %2646 = vmatpush1.bf16.msra.mxu0 %v2579
    %2647 = vmatprep.subr.bf16.mxu0 0
    %2648 = vmatpush1.bf16.msra.mxu0 %v2582
    %2649 = vmatprep.subr.bf16.mxu0 0
    %2650 = vmatpush1.bf16.msra.mxu0 0
    %2651 = vmatprep.subr.bf16.mxu0 0
    %2652 = vmatpush1.bf16.msra.mxu0 0
    %2653 = vmatprep.subr.bf16.mxu0 0
    %2654 = vmatpush1.bf16.msra.mxu0 0
    %2655 = vmatprep.subr.bf16.mxu0 0
    %2656 = vmatpush1.bf16.msra.mxu0 0
    %2657 = vmatprep.subr.bf16.mxu0 0
    %2658 = vmatpush1.bf16.msra.mxu0 0
    %2659 = vmatprep.subr.bf16.mxu0 0
    %2660 = vmatpush1.bf16.msra.mxu0 0
    %2661 = vmatprep.subr.bf16.mxu0 0
    %2662 = vmatpush1.bf16.msra.mxu0 0
    %2663 = vmatprep.subr.bf16.mxu0 0
    %2664 = vmatpush1.bf16.msra.mxu0 0
    %2665 = vmatprep.subr.bf16.mxu0 0
    %2666 = vmatpush1.bf16.msra.mxu0 0
    %2667 = vmatprep.subr.bf16.mxu0 0
    %2668 = vmatpush1.bf16.msra.mxu0 0
    %2669 = vmatprep.subr.bf16.mxu0 0
    %2670 = vmatpush1.bf16.msra.mxu0 0
    %2671 = vmatprep.subr.bf16.mxu0 0
    %2672 = vmatpush1.bf16.msra.mxu0 0
    %2673 = vmatprep.mubr.bf16.mxu0 0
    %2674 = vmatmul.mubr.bf16.gmra.mrb[0].mxu0 %v2596
    %v2675 = vpop.f32.mrb[0].mxu0
    %v2676 = vadd.f32 %v2525, %v2675
    %v2677 = vpop.f32.mrb[0].mxu0
    %v2678 = vpop.f32.mrb[0].mxu0
    %v2679 = vadd.f32 %v2528, %v2678
    %v2680 = vpop.f32.mrb[0].mxu0
    %2681 = vdwg.mxu0
    %v2682 = vrot.slane %v1886, 4
    %v2684 = vsel %vm1902, %v2682, 0
    %v2687 = vsel %vm1902, %v1888, 0
    %2689 = vmatprep.subr.bf16.mxu0 0
    %2690 = vmatpush1.bf16.xpose.msra.mxu0 %v2687
    %2691 = vmatprep.subr.bf16.mxu0 0
    %2692 = vmatpush1.bf16.xpose.msra.mxu0 0
    %2693 = vmatprep.subr.bf16.mxu0 0
    %2694 = vmatpush1.bf16.xpose.msra.mxu0 0
    %2695 = vmatprep.subr.bf16.mxu0 0
    %2696 = vmatpush1.bf16.xpose.msra.mxu0 0
    %2697 = vmatprep.subr.bf16.mxu0 0
    %2698 = vmatpush1.bf16.xpose.msra.mxu0 0
    %2699 = vmatprep.subr.bf16.mxu0 0
    %2700 = vmatpush1.bf16.xpose.msra.mxu0 0
    %2701 = vmatprep.subr.bf16.mxu0 0
    %2702 = vmatpush1.bf16.xpose.msra.mxu0 0
    %2703 = vmatprep.subr.bf16.mxu0 0
    %2704 = vmatpush1.bf16.xpose.msra.mxu0 0
    %2705 = vmatprep.subr.bf16.mxu0 0
    %2706 = vmatpush1.bf16.xpose.msra.mxu0 0
    %2707 = vmatprep.subr.bf16.mxu0 0
    %2708 = vmatpush1.bf16.xpose.msra.mxu0 0
    %2709 = vmatprep.subr.bf16.mxu0 0
    %2710 = vmatpush1.bf16.xpose.msra.mxu0 0
    %2711 = vmatprep.subr.bf16.mxu0 0
    %2712 = vmatpush1.bf16.xpose.msra.mxu0 0
    %2713 = vmatprep.subr.bf16.mxu0 0
    %2714 = vmatpush1.bf16.xpose.msra.mxu0 0
    %2715 = vmatprep.subr.bf16.mxu0 0
    %2716 = vmatpush1.bf16.xpose.msra.mxu0 0
    %2717 = vmatprep.subr.bf16.mxu0 0
    %2718 = vmatpush1.bf16.xpose.msra.mxu0 0
    %2719 = vmatprep.subr.bf16.mxu0 0
    %2720 = vmatpush1.bf16.xpose.msra.mxu0 0
    %2721 = vmatprep.mubr.bf16.mxu0 0
    %2722 = vmatmul.mubr.bf16.gmra.mrb[0].mxu0 %v2684
    %v2723 = vpop.f32.mrb[0].mxu0
    %v2724 = vadd.f32 0.0, %v2723
    %v2725 = vpop.f32.mrb[0].mxu0
    %v2726 = vpop.f32.mrb[0].mxu0
    %v2727 = vpop.f32.mrb[0].mxu0
    %2728 = vdwg.mxu0
    %v2729 = vrot.slane %v1891, 4
    %v2731 = vsel %vm1902, %v2729, 0
    %v2734 = vsel %vm1902, %v1893, 0
    %2736 = vmatprep.subr.bf16.mxu0 0
    %2737 = vmatpush1.bf16.xpose.msra.mxu0 %v2734
    %2738 = vmatprep.subr.bf16.mxu0 0
    %2739 = vmatpush1.bf16.xpose.msra.mxu0 0
    %2740 = vmatprep.subr.bf16.mxu0 0
    %2741 = vmatpush1.bf16.xpose.msra.mxu0 0
    %2742 = vmatprep.subr.bf16.mxu0 0
    %2743 = vmatpush1.bf16.xpose.msra.mxu0 0
    %2744 = vmatprep.subr.bf16.mxu0 0
    %2745 = vmatpush1.bf16.xpose.msra.mxu0 0
    %2746 = vmatprep.subr.bf16.mxu0 0
    %2747 = vmatpush1.bf16.xpose.msra.mxu0 0
    %2748 = vmatprep.subr.bf16.mxu0 0
    %2749 = vmatpush1.bf16.xpose.msra.mxu0 0
    %2750 = vmatprep.subr.bf16.mxu0 0
    %2751 = vmatpush1.bf16.xpose.msra.mxu0 0
    %2752 = vmatprep.subr.bf16.mxu0 0
    %2753 = vmatpush1.bf16.xpose.msra.mxu0 0
    %2754 = vmatprep.subr.bf16.mxu0 0
    %2755 = vmatpush1.bf16.xpose.msra.mxu0 0
    %2756 = vmatprep.subr.bf16.mxu0 0
    %2757 = vmatpush1.bf16.xpose.msra.mxu0 0
    %2758 = vmatprep.subr.bf16.mxu0 0
    %2759 = vmatpush1.bf16.xpose.msra.mxu0 0
    %2760 = vmatprep.subr.bf16.mxu0 0
    %2761 = vmatpush1.bf16.xpose.msra.mxu0 0
    %2762 = vmatprep.subr.bf16.mxu0 0
    %2763 = vmatpush1.bf16.xpose.msra.mxu0 0
    %2764 = vmatprep.subr.bf16.mxu0 0
    %2765 = vmatpush1.bf16.xpose.msra.mxu0 0
    %2766 = vmatprep.subr.bf16.mxu0 0
    %2767 = vmatpush1.bf16.xpose.msra.mxu0 0
    %2768 = vmatprep.mubr.bf16.mxu0 0
    %2769 = vmatmul.mubr.bf16.gmra.mrb[0].mxu0 %v2731
    %v2770 = vpop.f32.mrb[0].mxu0
    %v2771 = vadd.f32 0.0, %v2770
    %v2772 = vpop.f32.mrb[0].mxu0
    %v2773 = vpop.f32.mrb[0].mxu0
    %v2774 = vpop.f32.mrb[0].mxu0
    %2775 = vdwg.mxu0
    %v2776 = vsel %vm1997, %v2724, -1e+30
    %v2777 = vsel %vm1997, %v2771, -1e+30
    %v2778 = vsel %vm2000, %v2776, -inf
    %2779 = vmax.xlane.f32.xlu0 %v2778
    %v2780 = vpop.xlane.xlu0 %2779
    %v2781 = vsel %vm2000, %v2777, -inf
    %2782 = vmax.xlane.f32.xlu0 %v2781
    %v2783 = vpop.xlane.xlu0 %2782
    %v2784 = vsub.f32 %v2776, %v2780
    %v2785 = vsub.f32 %v2777, %v2783
    %v2786 = vmul.f32 %v2784, 1.442695
    %v2787 = vpow.pop %v2786
    %v2788 = vmul.f32 %v2785, 1.442695
    %v2789 = vpow.pop %v2788
    %v2790 = vsel %vm2000, %v2787, 0.0
    %2791 = vadd.xlane.f32.xlu0 %v2790
    %v2792 = vpop.xlane.xlu0 %2791
    %v2793 = vsel %vm2000, %v2789, 0.0
    %2794 = vadd.xlane.f32.xlu0 %v2793
    %v2795 = vpop.xlane.xlu0 %2794
    %v2796 = vrcp.pop %v2792
    %v2797 = vrcp.pop %v2795
    %v2798 = vmul.f32 %v2787, %v2796
    %v2799 = vmul.f32 %v2789, %v2797
    %v2800 = vpack.c.bf16 %v2798, %v2798
    %v2801 = vpack.c.bf16 %v2799, %v2799
    %v2802 = vrot.slane %v1889, 4
    %v2804 = vsel %vm2000, %v2800, 0
    %v2807 = vsel %vm2028, %v2802, 0
    %2809 = vmatprep.subr.bf16.mxu0 0
    %2810 = vmatpush1.bf16.msra.mxu0 %v2807
    %2811 = vmatprep.subr.bf16.mxu0 0
    %2812 = vmatpush1.bf16.msra.mxu0 0
    %2813 = vmatprep.subr.bf16.mxu0 0
    %2814 = vmatpush1.bf16.msra.mxu0 0
    %2815 = vmatprep.subr.bf16.mxu0 0
    %2816 = vmatpush1.bf16.msra.mxu0 0
    %2817 = vmatprep.subr.bf16.mxu0 0
    %2818 = vmatpush1.bf16.msra.mxu0 0
    %2819 = vmatprep.subr.bf16.mxu0 0
    %2820 = vmatpush1.bf16.msra.mxu0 0
    %2821 = vmatprep.subr.bf16.mxu0 0
    %2822 = vmatpush1.bf16.msra.mxu0 0
    %2823 = vmatprep.subr.bf16.mxu0 0
    %2824 = vmatpush1.bf16.msra.mxu0 0
    %2825 = vmatprep.subr.bf16.mxu0 0
    %2826 = vmatpush1.bf16.msra.mxu0 0
    %2827 = vmatprep.subr.bf16.mxu0 0
    %2828 = vmatpush1.bf16.msra.mxu0 0
    %2829 = vmatprep.subr.bf16.mxu0 0
    %2830 = vmatpush1.bf16.msra.mxu0 0
    %2831 = vmatprep.subr.bf16.mxu0 0
    %2832 = vmatpush1.bf16.msra.mxu0 0
    %2833 = vmatprep.subr.bf16.mxu0 0
    %2834 = vmatpush1.bf16.msra.mxu0 0
    %2835 = vmatprep.subr.bf16.mxu0 0
    %2836 = vmatpush1.bf16.msra.mxu0 0
    %2837 = vmatprep.subr.bf16.mxu0 0
    %2838 = vmatpush1.bf16.msra.mxu0 0
    %2839 = vmatprep.subr.bf16.mxu0 0
    %2840 = vmatpush1.bf16.msra.mxu0 0
    %2841 = vmatprep.mubr.bf16.mxu0 0
    %2842 = vmatmul.mubr.bf16.gmra.mrb[0].mxu0 %v2804
    %v2843 = vpop.f32.mrb[0].mxu0
    %v2844 = vadd.f32 0.0, %v2843
    %v2845 = vpop.f32.mrb[0].mxu0
    %v2846 = vpop.f32.mrb[0].mxu0
    %v2847 = vpop.f32.mrb[0].mxu0
    %2848 = vdwg.mxu0
    %v2849 = vrot.slane %v1894, 4
    %v2851 = vsel %vm2000, %v2801, 0
    %v2854 = vsel %vm2028, %v2849, 0
    %2856 = vmatprep.subr.bf16.mxu0 0
    %2857 = vmatpush1.bf16.msra.mxu0 %v2854
    %2858 = vmatprep.subr.bf16.mxu0 0
    %2859 = vmatpush1.bf16.msra.mxu0 0
    %2860 = vmatprep.subr.bf16.mxu0 0
    %2861 = vmatpush1.bf16.msra.mxu0 0
    %2862 = vmatprep.subr.bf16.mxu0 0
    %2863 = vmatpush1.bf16.msra.mxu0 0
    %2864 = vmatprep.subr.bf16.mxu0 0
    %2865 = vmatpush1.bf16.msra.mxu0 0
    %2866 = vmatprep.subr.bf16.mxu0 0
    %2867 = vmatpush1.bf16.msra.mxu0 0
    %2868 = vmatprep.subr.bf16.mxu0 0
    %2869 = vmatpush1.bf16.msra.mxu0 0
    %2870 = vmatprep.subr.bf16.mxu0 0
    %2871 = vmatpush1.bf16.msra.mxu0 0
    %2872 = vmatprep.subr.bf16.mxu0 0
    %2873 = vmatpush1.bf16.msra.mxu0 0
    %2874 = vmatprep.subr.bf16.mxu0 0
    %2875 = vmatpush1.bf16.msra.mxu0 0
    %2876 = vmatprep.subr.bf16.mxu0 0
    %2877 = vmatpush1.bf16.msra.mxu0 0
    %2878 = vmatprep.subr.bf16.mxu0 0
    %2879 = vmatpush1.bf16.msra.mxu0 0
    %2880 = vmatprep.subr.bf16.mxu0 0
    %2881 = vmatpush1.bf16.msra.mxu0 0
    %2882 = vmatprep.subr.bf16.mxu0 0
    %2883 = vmatpush1.bf16.msra.mxu0 0
    %2884 = vmatprep.subr.bf16.mxu0 0
    %2885 = vmatpush1.bf16.msra.mxu0 0
    %2886 = vmatprep.subr.bf16.mxu0 0
    %2887 = vmatpush1.bf16.msra.mxu0 0
    %2888 = vmatprep.mubr.bf16.mxu0 0
    %2889 = vmatmul.mubr.bf16.gmra.mrb[0].mxu0 %v2851
    %v2890 = vpop.f32.mrb[0].mxu0
    %v2891 = vadd.f32 0.0, %v2890
    %v2892 = vpop.f32.mrb[0].mxu0
    %v2893 = vpop.f32.mrb[0].mxu0
    %v2894 = vpop.f32.mrb[0].mxu0
    %2895 = vdwg.mxu0
    %v2896 = vpack.c.bf16 %v2891, %v2844
    %v2897 = vld [vmem:[#allocation7 + $0xc0] sm:$0xff]
    %v2898 = vld [vmem:[#allocation7 + $0xc8] sm:$0xf]
    %v2899 = vld [vmem:[#allocation7 + $0xcc] sm:$0xff]
    %v2900 = vld [vmem:[#allocation7 + $0xd4] sm:$0xf]
    %v2901 = vld [vmem:[#allocation7 + $0xd8] sm:$0xff]
    %v2902 = vld [vmem:[#allocation7 + $0xe0] sm:$0xf]
    %v2903 = vld [vmem:[#allocation7 + $0xe4] sm:$0xff]
    %v2904 = vld [vmem:[#allocation7 + $0xec] sm:$0xf]
    %v2905 = vld [vmem:[#allocation7 + $0xf0] sm:$0xff]
    %v2906 = vld [vmem:[#allocation7 + $0xf8] sm:$0xf]
    %v2907 = vld [vmem:[#allocation7 + $0xfc] sm:$0xff]
    %v2908 = vld [vmem:[#allocation7 + $0x104] sm:$0xf]
    %v2909 = vld [vmem:[#allocation7 + $0x108] sm:$0xff]
    %v2910 = vld [vmem:[#allocation7 + $0x110] sm:$0xf]
    %v2911 = vld [vmem:[#allocation7 + $0x114] sm:$0xff]
    %v2912 = vld [vmem:[#allocation7 + $0x11c] sm:$0xf]
    %v2929 = vunpack.c.l.b16 %v2897
    %v2930 = vunpack.c.h.b16 %v2897
    %v2931 = vunpack.c.l.b16 %v2898
    %v2932 = vunpack.c.l.b16 %v2899
    %v2933 = vunpack.c.h.b16 %v2899
    %v2934 = vunpack.c.l.b16 %v2900
    %v2935 = vunpack.c.l.b16 %v2901
    %v2936 = vunpack.c.h.b16 %v2901
    %v2937 = vunpack.c.l.b16 %v2902
    %v2938 = vunpack.c.l.b16 %v2903
    %v2939 = vunpack.c.h.b16 %v2903
    %v2940 = vunpack.c.l.b16 %v2904
    %v2941 = vunpack.c.l.b16 %v2905
    %v2942 = vunpack.c.h.b16 %v2905
    %v2943 = vunpack.c.l.b16 %v2906
    %v2944 = vunpack.c.l.b16 %v2907
    %v2945 = vunpack.c.h.b16 %v2907
    %v2946 = vunpack.c.l.b16 %v2908
    %v2947 = vunpack.c.l.b16 %v2909
    %v2948 = vunpack.c.h.b16 %v2909
    %v2949 = vunpack.c.l.b16 %v2910
    %v2950 = vunpack.c.l.b16 %v2911
    %v2951 = vunpack.c.h.b16 %v2911
    %v2952 = vunpack.c.l.b16 %v2912
    %v2953 = vpack.c.b16 %v2932, %v2929
    %v2954 = vpack.c.b16 %v2933, %v2930
    %v2955 = vpack.c.b16 %v2934, %v2931
    %v2956 = vpack.c.b16 %v2938, %v2935
    %v2957 = vpack.c.b16 %v2939, %v2936
    %v2958 = vpack.c.b16 %v2940, %v2937
    %v2959 = vpack.c.b16 %v2944, %v2941
    %v2960 = vpack.c.b16 %v2945, %v2942
    %v2961 = vpack.c.b16 %v2946, %v2943
    %v2962 = vpack.c.b16 %v2950, %v2947
    %v2963 = vpack.c.b16 %v2951, %v2948
    %v2964 = vpack.c.b16 %v2952, %v2949
    %v2978 = vsel %vm1902, %v2896, 0
    %2980 = vmatprep.subr.bf16.mxu0 %v2954
    %2981 = vmatpush1.bf16.msra.mxu0 %v2953
    %2982 = vmatprep.subr.bf16.mxu0 %v2957
    %2983 = vmatpush1.bf16.msra.mxu0 %v2956
    %2984 = vmatprep.subr.bf16.mxu0 %v2960
    %2985 = vmatpush1.bf16.msra.mxu0 %v2959
    %2986 = vmatprep.subr.bf16.mxu0 %v2963
    %2987 = vmatpush1.bf16.msra.mxu0 %v2962
    %2988 = vmatprep.subr.bf16.mxu0 0
    %2989 = vmatpush1.bf16.msra.mxu0 0
    %2990 = vmatprep.subr.bf16.mxu0 0
    %2991 = vmatpush1.bf16.msra.mxu0 0
    %2992 = vmatprep.subr.bf16.mxu0 0
    %2993 = vmatpush1.bf16.msra.mxu0 0
    %2994 = vmatprep.subr.bf16.mxu0 0
    %2995 = vmatpush1.bf16.msra.mxu0 0
    %2996 = vmatprep.subr.bf16.mxu0 0
    %2997 = vmatpush1.bf16.msra.mxu0 0
    %2998 = vmatprep.subr.bf16.mxu0 0
    %2999 = vmatpush1.bf16.msra.mxu0 0
    %3000 = vmatprep.subr.bf16.mxu0 0
    %3001 = vmatpush1.bf16.msra.mxu0 0
    %3002 = vmatprep.subr.bf16.mxu0 0
    %3003 = vmatpush1.bf16.msra.mxu0 0
    %3004 = vmatprep.subr.bf16.mxu0 0
    %3005 = vmatpush1.bf16.msra.mxu0 0
    %3006 = vmatprep.subr.bf16.mxu0 0
    %3007 = vmatpush1.bf16.msra.mxu0 0
    %3008 = vmatprep.subr.bf16.mxu0 0
    %3009 = vmatpush1.bf16.msra.mxu0 0
    %3010 = vmatprep.subr.bf16.mxu0 0
    %3011 = vmatpush1.bf16.msra.mxu0 0
    %3012 = vmatprep.mubr.bf16.mxu0 0
    %3013 = vmatmul.mubr.bf16.gmra.mrb[0].mxu0 %v2978
    %v3014 = vpop.f32.mrb[0].mxu0
    %v3015 = vadd.f32 0.0, %v3014
    %v3016 = vpop.f32.mrb[0].mxu0
    %v3017 = vadd.f32 0.0, %v3016
    %v3018 = vpop.f32.mrb[0].mxu0
    %v3019 = vadd.f32 0.0, %v3018
    %v3020 = vpop.f32.mrb[0].mxu0
    %v3021 = vadd.f32 0.0, %v3020
    %3022 = vdwg.mxu0
    %3023 = vmatprep.subr.bf16.mxu0 0
    %3024 = vmatpush1.bf16.msra.mxu0 %v2955
    %3025 = vmatprep.subr.bf16.mxu0 0
    %3026 = vmatpush1.bf16.msra.mxu0 %v2958
    %3027 = vmatprep.subr.bf16.mxu0 0
    %3028 = vmatpush1.bf16.msra.mxu0 %v2961
    %3029 = vmatprep.subr.bf16.mxu0 0
    %3030 = vmatpush1.bf16.msra.mxu0 %v2964
    %3031 = vmatprep.subr.bf16.mxu0 0
    %3032 = vmatpush1.bf16.msra.mxu0 0
    %3033 = vmatprep.subr.bf16.mxu0 0
    %3034 = vmatpush1.bf16.msra.mxu0 0
    %3035 = vmatprep.subr.bf16.mxu0 0
    %3036 = vmatpush1.bf16.msra.mxu0 0
    %3037 = vmatprep.subr.bf16.mxu0 0
    %3038 = vmatpush1.bf16.msra.mxu0 0
    %3039 = vmatprep.subr.bf16.mxu0 0
    %3040 = vmatpush1.bf16.msra.mxu0 0
    %3041 = vmatprep.subr.bf16.mxu0 0
    %3042 = vmatpush1.bf16.msra.mxu0 0
    %3043 = vmatprep.subr.bf16.mxu0 0
    %3044 = vmatpush1.bf16.msra.mxu0 0
    %3045 = vmatprep.subr.bf16.mxu0 0
    %3046 = vmatpush1.bf16.msra.mxu0 0
    %3047 = vmatprep.subr.bf16.mxu0 0
    %3048 = vmatpush1.bf16.msra.mxu0 0
    %3049 = vmatprep.subr.bf16.mxu0 0
    %3050 = vmatpush1.bf16.msra.mxu0 0
    %3051 = vmatprep.subr.bf16.mxu0 0
    %3052 = vmatpush1.bf16.msra.mxu0 0
    %3053 = vmatprep.subr.bf16.mxu0 0
    %3054 = vmatpush1.bf16.msra.mxu0 0
    %3055 = vmatprep.mubr.bf16.mxu0 0
    %3056 = vmatmul.mubr.bf16.gmra.mrb[0].mxu0 %v2978
    %v3057 = vpop.f32.mrb[0].mxu0
    %v3058 = vadd.f32 0.0, %v3057
    %v3059 = vpop.f32.mrb[0].mxu0
    %v3060 = vpop.f32.mrb[0].mxu0
    %v3061 = vadd.f32 0.0, %v3060
    %v3062 = vpop.f32.mrb[0].mxu0
    %3063 = vdwg.mxu0
    %v3064 = vadd.f32 %v2633, %v3015
    %v3065 = vadd.f32 %v2635, %v3017
    %v3066 = vadd.f32 %v2676, %v3058
    %v3067 = vadd.f32 %v2637, %v3019
    %v3068 = vadd.f32 %v2639, %v3021
    %v3069 = vadd.f32 %v2679, %v3061
    %3070 = vrot.lane.b32.xlu0 %v1886, 64
    %v3071 = vpop.permute.xlu0 %3070
    %v3072 = vrot.slane %v3071, 4
    %v3073 = vpack.c.b16 %v1872, %v1872
    %3074 = vrot.lane.b32.xlu0 %v3073, 64
    %v3075 = vpop.permute.xlu0 %3074
    %v3077 = vsel %vm1902, %v3072, 0
    %v3080 = vsel %vm1902, %v3075, 0
    %3082 = vmatprep.subr.bf16.mxu0 0
    %3083 = vmatpush1.bf16.xpose.msra.mxu0 %v3080
    %3084 = vmatprep.subr.bf16.mxu0 0
    %3085 = vmatpush1.bf16.xpose.msra.mxu0 0
    %3086 = vmatprep.subr.bf16.mxu0 0
    %3087 = vmatpush1.bf16.xpose.msra.mxu0 0
    %3088 = vmatprep.subr.bf16.mxu0 0
    %3089 = vmatpush1.bf16.xpose.msra.mxu0 0
    %3090 = vmatprep.subr.bf16.mxu0 0
    %3091 = vmatpush1.bf16.xpose.msra.mxu0 0
    %3092 = vmatprep.subr.bf16.mxu0 0
    %3093 = vmatpush1.bf16.xpose.msra.mxu0 0
    %3094 = vmatprep.subr.bf16.mxu0 0
    %3095 = vmatpush1.bf16.xpose.msra.mxu0 0
    %3096 = vmatprep.subr.bf16.mxu0 0
    %3097 = vmatpush1.bf16.xpose.msra.mxu0 0
    %3098 = vmatprep.subr.bf16.mxu0 0
    %3099 = vmatpush1.bf16.xpose.msra.mxu0 0
    %3100 = vmatprep.subr.bf16.mxu0 0
    %3101 = vmatpush1.bf16.xpose.msra.mxu0 0
    %3102 = vmatprep.subr.bf16.mxu0 0
    %3103 = vmatpush1.bf16.xpose.msra.mxu0 0
    %3104 = vmatprep.subr.bf16.mxu0 0
    %3105 = vmatpush1.bf16.xpose.msra.mxu0 0
    %3106 = vmatprep.subr.bf16.mxu0 0
    %3107 = vmatpush1.bf16.xpose.msra.mxu0 0
    %3108 = vmatprep.subr.bf16.mxu0 0
    %3109 = vmatpush1.bf16.xpose.msra.mxu0 0
    %3110 = vmatprep.subr.bf16.mxu0 0
    %3111 = vmatpush1.bf16.xpose.msra.mxu0 0
    %3112 = vmatprep.subr.bf16.mxu0 0
    %3113 = vmatpush1.bf16.xpose.msra.mxu0 0
    %3114 = vmatprep.mubr.bf16.mxu0 0
    %3115 = vmatmul.mubr.bf16.gmra.mrb[0].mxu0 %v3077
    %v3116 = vpop.f32.mrb[0].mxu0
    %v3117 = vadd.f32 0.0, %v3116
    %v3118 = vpop.f32.mrb[0].mxu0
    %v3119 = vpop.f32.mrb[0].mxu0
    %v3120 = vpop.f32.mrb[0].mxu0
    %3121 = vdwg.mxu0
    %3122 = vrot.lane.b32.xlu0 %v1891, 64
    %v3123 = vpop.permute.xlu0 %3122
    %v3124 = vrot.slane %v3123, 4
    %v3125 = vpack.c.b16 %v1881, %v1881
    %3126 = vrot.lane.b32.xlu0 %v3125, 64
    %v3127 = vpop.permute.xlu0 %3126
    %v3129 = vsel %vm1902, %v3124, 0
    %v3132 = vsel %vm1902, %v3127, 0
    %3134 = vmatprep.subr.bf16.mxu0 0
    %3135 = vmatpush1.bf16.xpose.msra.mxu0 %v3132
    %3136 = vmatprep.subr.bf16.mxu0 0
    %3137 = vmatpush1.bf16.xpose.msra.mxu0 0
    %3138 = vmatprep.subr.bf16.mxu0 0
    %3139 = vmatpush1.bf16.xpose.msra.mxu0 0
    %3140 = vmatprep.subr.bf16.mxu0 0
    %3141 = vmatpush1.bf16.xpose.msra.mxu0 0
    %3142 = vmatprep.subr.bf16.mxu0 0
    %3143 = vmatpush1.bf16.xpose.msra.mxu0 0
    %3144 = vmatprep.subr.bf16.mxu0 0
    %3145 = vmatpush1.bf16.xpose.msra.mxu0 0
    %3146 = vmatprep.subr.bf16.mxu0 0
    %3147 = vmatpush1.bf16.xpose.msra.mxu0 0
    %3148 = vmatprep.subr.bf16.mxu0 0
    %3149 = vmatpush1.bf16.xpose.msra.mxu0 0
    %3150 = vmatprep.subr.bf16.mxu0 0
    %3151 = vmatpush1.bf16.xpose.msra.mxu0 0
    %3152 = vmatprep.subr.bf16.mxu0 0
    %3153 = vmatpush1.bf16.xpose.msra.mxu0 0
    %3154 = vmatprep.subr.bf16.mxu0 0
    %3155 = vmatpush1.bf16.xpose.msra.mxu0 0
    %3156 = vmatprep.subr.bf16.mxu0 0
    %3157 = vmatpush1.bf16.xpose.msra.mxu0 0
    %3158 = vmatprep.subr.bf16.mxu0 0
    %3159 = vmatpush1.bf16.xpose.msra.mxu0 0
    %3160 = vmatprep.subr.bf16.mxu0 0
    %3161 = vmatpush1.bf16.xpose.msra.mxu0 0
    %3162 = vmatprep.subr.bf16.mxu0 0
    %3163 = vmatpush1.bf16.xpose.msra.mxu0 0
    %3164 = vmatprep.subr.bf16.mxu0 0
    %3165 = vmatpush1.bf16.xpose.msra.mxu0 0
    %3166 = vmatprep.mubr.bf16.mxu0 0
    %3167 = vmatmul.mubr.bf16.gmra.mrb[0].mxu0 %v3129
    %v3168 = vpop.f32.mrb[0].mxu0
    %v3169 = vadd.f32 0.0, %v3168
    %v3170 = vpop.f32.mrb[0].mxu0
    %v3171 = vpop.f32.mrb[0].mxu0
    %v3172 = vpop.f32.mrb[0].mxu0
    %3173 = vdwg.mxu0
    %v3174 = vsel %vm1997, %v3117, -1e+30
    %v3175 = vsel %vm1997, %v3169, -1e+30
    %v3176 = vsel %vm2000, %v3174, -inf
    %3177 = vmax.xlane.f32.xlu0 %v3176
    %v3178 = vpop.xlane.xlu0 %3177
    %v3179 = vsel %vm2000, %v3175, -inf
    %3180 = vmax.xlane.f32.xlu0 %v3179
    %v3181 = vpop.xlane.xlu0 %3180
    %v3182 = vsub.f32 %v3174, %v3178
    %v3183 = vsub.f32 %v3175, %v3181
    %v3184 = vmul.f32 %v3182, 1.442695
    %v3185 = vpow.pop %v3184
    %v3186 = vmul.f32 %v3183, 1.442695
    %v3187 = vpow.pop %v3186
    %v3188 = vsel %vm2000, %v3185, 0.0
    %3189 = vadd.xlane.f32.xlu0 %v3188
    %v3190 = vpop.xlane.xlu0 %3189
    %v3191 = vsel %vm2000, %v3187, 0.0
    %3192 = vadd.xlane.f32.xlu0 %v3191
    %v3193 = vpop.xlane.xlu0 %3192
    %v3194 = vrcp.pop %v3190
    %v3195 = vrcp.pop %v3193
    %v3196 = vmul.f32 %v3185, %v3194
    %v3197 = vmul.f32 %v3187, %v3195
    %v3198 = vpack.c.bf16 %v3196, %v3196
    %v3199 = vpack.c.bf16 %v3197, %v3197
    %3200 = vrot.lane.b32.xlu0 %v1889, 64
    %v3201 = vpop.permute.xlu0 %3200
    %v3202 = vrot.slane %v3201, 4
    %v3204 = vsel %vm2000, %v3198, 0
    %v3207 = vsel %vm2028, %v3202, 0
    %3209 = vmatprep.subr.bf16.mxu0 0
    %3210 = vmatpush1.bf16.msra.mxu0 %v3207
    %3211 = vmatprep.subr.bf16.mxu0 0
    %3212 = vmatpush1.bf16.msra.mxu0 0
    %3213 = vmatprep.subr.bf16.mxu0 0
    %3214 = vmatpush1.bf16.msra.mxu0 0
    %3215 = vmatprep.subr.bf16.mxu0 0
    %3216 = vmatpush1.bf16.msra.mxu0 0
    %3217 = vmatprep.subr.bf16.mxu0 0
    %3218 = vmatpush1.bf16.msra.mxu0 0
    %3219 = vmatprep.subr.bf16.mxu0 0
    %3220 = vmatpush1.bf16.msra.mxu0 0
    %3221 = vmatprep.subr.bf16.mxu0 0
    %3222 = vmatpush1.bf16.msra.mxu0 0
    %3223 = vmatprep.subr.bf16.mxu0 0
    %3224 = vmatpush1.bf16.msra.mxu0 0
    %3225 = vmatprep.subr.bf16.mxu0 0
    %3226 = vmatpush1.bf16.msra.mxu0 0
    %3227 = vmatprep.subr.bf16.mxu0 0
    %3228 = vmatpush1.bf16.msra.mxu0 0
    %3229 = vmatprep.subr.bf16.mxu0 0
    %3230 = vmatpush1.bf16.msra.mxu0 0
    %3231 = vmatprep.subr.bf16.mxu0 0
    %3232 = vmatpush1.bf16.msra.mxu0 0
    %3233 = vmatprep.subr.bf16.mxu0 0
    %3234 = vmatpush1.bf16.msra.mxu0 0
    %3235 = vmatprep.subr.bf16.mxu0 0
    %3236 = vmatpush1.bf16.msra.mxu0 0
    %3237 = vmatprep.subr.bf16.mxu0 0
    %3238 = vmatpush1.bf16.msra.mxu0 0
    %3239 = vmatprep.subr.bf16.mxu0 0
    %3240 = vmatpush1.bf16.msra.mxu0 0
    %3241 = vmatprep.mubr.bf16.mxu0 0
    %3242 = vmatmul.mubr.bf16.gmra.mrb[0].mxu0 %v3204
    %v3243 = vpop.f32.mrb[0].mxu0
    %v3244 = vadd.f32 0.0, %v3243
    %v3245 = vpop.f32.mrb[0].mxu0
    %v3246 = vpop.f32.mrb[0].mxu0
    %v3247 = vpop.f32.mrb[0].mxu0
    %3248 = vdwg.mxu0
    %3249 = vrot.lane.b32.xlu0 %v1894, 64
    %v3250 = vpop.permute.xlu0 %3249
    %v3251 = vrot.slane %v3250, 4
    %v3253 = vsel %vm2000, %v3199, 0
    %v3256 = vsel %vm2028, %v3251, 0
    %3258 = vmatprep.subr.bf16.mxu0 0
    %3259 = vmatpush1.bf16.msra.mxu0 %v3256
    %3260 = vmatprep.subr.bf16.mxu0 0
    %3261 = vmatpush1.bf16.msra.mxu0 0
    %3262 = vmatprep.subr.bf16.mxu0 0
    %3263 = vmatpush1.bf16.msra.mxu0 0
    %3264 = vmatprep.subr.bf16.mxu0 0
    %3265 = vmatpush1.bf16.msra.mxu0 0
    %3266 = vmatprep.subr.bf16.mxu0 0
    %3267 = vmatpush1.bf16.msra.mxu0 0
    %3268 = vmatprep.subr.bf16.mxu0 0
    %3269 = vmatpush1.bf16.msra.mxu0 0
    %3270 = vmatprep.subr.bf16.mxu0 0
    %3271 = vmatpush1.bf16.msra.mxu0 0
    %3272 = vmatprep.subr.bf16.mxu0 0
    %3273 = vmatpush1.bf16.msra.mxu0 0
    %3274 = vmatprep.subr.bf16.mxu0 0
    %3275 = vmatpush1.bf16.msra.mxu0 0
    %3276 = vmatprep.subr.bf16.mxu0 0
    %3277 = vmatpush1.bf16.msra.mxu0 0
    %3278 = vmatprep.subr.bf16.mxu0 0
    %3279 = vmatpush1.bf16.msra.mxu0 0
    %3280 = vmatprep.subr.bf16.mxu0 0
    %3281 = vmatpush1.bf16.msra.mxu0 0
    %3282 = vmatprep.subr.bf16.mxu0 0
    %3283 = vmatpush1.bf16.msra.mxu0 0
    %3284 = vmatprep.subr.bf16.mxu0 0
    %3285 = vmatpush1.bf16.msra.mxu0 0
    %3286 = vmatprep.subr.bf16.mxu0 0
    %3287 = vmatpush1.bf16.msra.mxu0 0
    %3288 = vmatprep.subr.bf16.mxu0 0
    %3289 = vmatpush1.bf16.msra.mxu0 0
    %3290 = vmatprep.mubr.bf16.mxu0 0
    %3291 = vmatmul.mubr.bf16.gmra.mrb[0].mxu0 %v3253
    %v3292 = vpop.f32.mrb[0].mxu0
    %v3293 = vadd.f32 0.0, %v3292
    %v3294 = vpop.f32.mrb[0].mxu0
    %v3295 = vpop.f32.mrb[0].mxu0
    %v3296 = vpop.f32.mrb[0].mxu0
    %3297 = vdwg.mxu0
    %v3298 = vpack.c.bf16 %v3293, %v3244
    %v3299 = vld [vmem:[#allocation7 + $0x120] sm:$0xff]
    %v3300 = vld [vmem:[#allocation7 + $0x128] sm:$0xf]
    %v3301 = vld [vmem:[#allocation7 + $0x12c] sm:$0xff]
    %v3302 = vld [vmem:[#allocation7 + $0x134] sm:$0xf]
    %v3303 = vld [vmem:[#allocation7 + $0x138] sm:$0xff]
    %v3304 = vld [vmem:[#allocation7 + $0x140] sm:$0xf]
    %v3305 = vld [vmem:[#allocation7 + $0x144] sm:$0xff]
    %v3306 = vld [vmem:[#allocation7 + $0x14c] sm:$0xf]
    %v3307 = vld [vmem:[#allocation7 + $0x150] sm:$0xff]
    %v3308 = vld [vmem:[#allocation7 + $0x158] sm:$0xf]
    %v3309 = vld [vmem:[#allocation7 + $0x15c] sm:$0xff]
    %v3310 = vld [vmem:[#allocation7 + $0x164] sm:$0xf]
    %v3311 = vld [vmem:[#allocation7 + $0x168] sm:$0xff]
    %v3312 = vld [vmem:[#allocation7 + $0x170] sm:$0xf]
    %v3313 = vld [vmem:[#allocation7 + $0x174] sm:$0xff]
    %v3314 = vld [vmem:[#allocation7 + $0x17c] sm:$0xf]
    %v3331 = vunpack.c.l.b16 %v3299
    %v3332 = vunpack.c.h.b16 %v3299
    %v3333 = vunpack.c.l.b16 %v3300
    %v3334 = vunpack.c.l.b16 %v3301
    %v3335 = vunpack.c.h.b16 %v3301
    %v3336 = vunpack.c.l.b16 %v3302
    %v3337 = vunpack.c.l.b16 %v3303
    %v3338 = vunpack.c.h.b16 %v3303
    %v3339 = vunpack.c.l.b16 %v3304
    %v3340 = vunpack.c.l.b16 %v3305
    %v3341 = vunpack.c.h.b16 %v3305
    %v3342 = vunpack.c.l.b16 %v3306
    %v3343 = vunpack.c.l.b16 %v3307
    %v3344 = vunpack.c.h.b16 %v3307
    %v3345 = vunpack.c.l.b16 %v3308
    %v3346 = vunpack.c.l.b16 %v3309
    %v3347 = vunpack.c.h.b16 %v3309
    %v3348 = vunpack.c.l.b16 %v3310
    %v3349 = vunpack.c.l.b16 %v3311
    %v3350 = vunpack.c.h.b16 %v3311
    %v3351 = vunpack.c.l.b16 %v3312
    %v3352 = vunpack.c.l.b16 %v3313
    %v3353 = vunpack.c.h.b16 %v3313
    %v3354 = vunpack.c.l.b16 %v3314
    %v3355 = vpack.c.b16 %v3334, %v3331
    %v3356 = vpack.c.b16 %v3335, %v3332
    %v3357 = vpack.c.b16 %v3336, %v3333
    %v3358 = vpack.c.b16 %v3340, %v3337
    %v3359 = vpack.c.b16 %v3341, %v3338
    %v3360 = vpack.c.b16 %v3342, %v3339
    %v3361 = vpack.c.b16 %v3346, %v3343
    %v3362 = vpack.c.b16 %v3347, %v3344
    %v3363 = vpack.c.b16 %v3348, %v3345
    %v3364 = vpack.c.b16 %v3352, %v3349
    %v3365 = vpack.c.b16 %v3353, %v3350
    %v3366 = vpack.c.b16 %v3354, %v3351
    %v3380 = vsel %vm1902, %v3298, 0
    %3382 = vmatprep.subr.bf16.mxu0 %v3356
    %3383 = vmatpush1.bf16.msra.mxu0 %v3355
    %3384 = vmatprep.subr.bf16.mxu0 %v3359
    %3385 = vmatpush1.bf16.msra.mxu0 %v3358
    %3386 = vmatprep.subr.bf16.mxu0 %v3362
    %3387 = vmatpush1.bf16.msra.mxu0 %v3361
    %3388 = vmatprep.subr.bf16.mxu0 %v3365
    %3389 = vmatpush1.bf16.msra.mxu0 %v3364
    %3390 = vmatprep.subr.bf16.mxu0 0
    %3391 = vmatpush1.bf16.msra.mxu0 0
    %3392 = vmatprep.subr.bf16.mxu0 0
    %3393 = vmatpush1.bf16.msra.mxu0 0
    %3394 = vmatprep.subr.bf16.mxu0 0
    %3395 = vmatpush1.bf16.msra.mxu0 0
    %3396 = vmatprep.subr.bf16.mxu0 0
    %3397 = vmatpush1.bf16.msra.mxu0 0
    %3398 = vmatprep.subr.bf16.mxu0 0
    %3399 = vmatpush1.bf16.msra.mxu0 0
    %3400 = vmatprep.subr.bf16.mxu0 0
    %3401 = vmatpush1.bf16.msra.mxu0 0
    %3402 = vmatprep.subr.bf16.mxu0 0
    %3403 = vmatpush1.bf16.msra.mxu0 0
    %3404 = vmatprep.subr.bf16.mxu0 0
    %3405 = vmatpush1.bf16.msra.mxu0 0
    %3406 = vmatprep.subr.bf16.mxu0 0
    %3407 = vmatpush1.bf16.msra.mxu0 0
    %3408 = vmatprep.subr.bf16.mxu0 0
    %3409 = vmatpush1.bf16.msra.mxu0 0
    %3410 = vmatprep.subr.bf16.mxu0 0
    %3411 = vmatpush1.bf16.msra.mxu0 0
    %3412 = vmatprep.subr.bf16.mxu0 0
    %3413 = vmatpush1.bf16.msra.mxu0 0
    %3414 = vmatprep.mubr.bf16.mxu0 0
    %3415 = vmatmul.mubr.bf16.gmra.mrb[0].mxu0 %v3380
    %v3416 = vpop.f32.mrb[0].mxu0
    %v3417 = vadd.f32 0.0, %v3416
    %v3418 = vpop.f32.mrb[0].mxu0
    %v3419 = vadd.f32 0.0, %v3418
    %v3420 = vpop.f32.mrb[0].mxu0
    %v3421 = vadd.f32 0.0, %v3420
    %v3422 = vpop.f32.mrb[0].mxu0
    %v3423 = vadd.f32 0.0, %v3422
    %3424 = vdwg.mxu0
    %3425 = vmatprep.subr.bf16.mxu0 0
    %3426 = vmatpush1.bf16.msra.mxu0 %v3357
    %3427 = vmatprep.subr.bf16.mxu0 0
    %3428 = vmatpush1.bf16.msra.mxu0 %v3360
    %3429 = vmatprep.subr.bf16.mxu0 0
    %3430 = vmatpush1.bf16.msra.mxu0 %v3363
    %3431 = vmatprep.subr.bf16.mxu0 0
    %3432 = vmatpush1.bf16.msra.mxu0 %v3366
    %3433 = vmatprep.subr.bf16.mxu0 0
    %3434 = vmatpush1.bf16.msra.mxu0 0
    %3435 = vmatprep.subr.bf16.mxu0 0
    %3436 = vmatpush1.bf16.msra.mxu0 0
    %3437 = vmatprep.subr.bf16.mxu0 0
    %3438 = vmatpush1.bf16.msra.mxu0 0
    %3439 = vmatprep.subr.bf16.mxu0 0
    %3440 = vmatpush1.bf16.msra.mxu0 0
    %3441 = vmatprep.subr.bf16.mxu0 0
    %3442 = vmatpush1.bf16.msra.mxu0 0
    %3443 = vmatprep.subr.bf16.mxu0 0
    %3444 = vmatpush1.bf16.msra.mxu0 0
    %3445 = vmatprep.subr.bf16.mxu0 0
    %3446 = vmatpush1.bf16.msra.mxu0 0
    %3447 = vmatprep.subr.bf16.mxu0 0
    %3448 = vmatpush1.bf16.msra.mxu0 0
    %3449 = vmatprep.subr.bf16.mxu0 0
    %3450 = vmatpush1.bf16.msra.mxu0 0
    %3451 = vmatprep.subr.bf16.mxu0 0
    %3452 = vmatpush1.bf16.msra.mxu0 0
    %3453 = vmatprep.subr.bf16.mxu0 0
    %3454 = vmatpush1.bf16.msra.mxu0 0
    %3455 = vmatprep.subr.bf16.mxu0 0
    %3456 = vmatpush1.bf16.msra.mxu0 0
    %3457 = vmatprep.mubr.bf16.mxu0 0
    %3458 = vmatmul.mubr.bf16.gmra.mrb[0].mxu0 %v3380
    %v3459 = vpop.f32.mrb[0].mxu0
    %v3460 = vadd.f32 0.0, %v3459
    %v3461 = vpop.f32.mrb[0].mxu0
    %v3462 = vpop.f32.mrb[0].mxu0
    %v3463 = vadd.f32 0.0, %v3462
    %v3464 = vpop.f32.mrb[0].mxu0
    %3465 = vdwg.mxu0
    %v3466 = vadd.f32 %v3064, %v3417
    %v3467 = vadd.f32 %v3065, %v3419
    %v3468 = vadd.f32 %v3066, %v3460
    %v3469 = vadd.f32 %v3067, %v3421
    %v3470 = vadd.f32 %v3068, %v3423
    %v3471 = vadd.f32 %v3069, %v3463
    %v3472 = vrot.slane %v1888, 4
    %v3474 = vsel %vm1902, %v1887, 0
    %v3477 = vsel %vm1902, %v3472, 0
    %3479 = vmatprep.subr.bf16.mxu0 0
    %3480 = vmatpush1.bf16.xpose.msra.mxu0 %v3477
    %3481 = vmatprep.subr.bf16.mxu0 0
    %3482 = vmatpush1.bf16.xpose.msra.mxu0 0
    %3483 = vmatprep.subr.bf16.mxu0 0
    %3484 = vmatpush1.bf16.xpose.msra.mxu0 0
    %3485 = vmatprep.subr.bf16.mxu0 0
    %3486 = vmatpush1.bf16.xpose.msra.mxu0 0
    %3487 = vmatprep.subr.bf16.mxu0 0
    %3488 = vmatpush1.bf16.xpose.msra.mxu0 0
    %3489 = vmatprep.subr.bf16.mxu0 0
    %3490 = vmatpush1.bf16.xpose.msra.mxu0 0
    %3491 = vmatprep.subr.bf16.mxu0 0
    %3492 = vmatpush1.bf16.xpose.msra.mxu0 0
    %3493 = vmatprep.subr.bf16.mxu0 0
    %3494 = vmatpush1.bf16.xpose.msra.mxu0 0
    %3495 = vmatprep.subr.bf16.mxu0 0
    %3496 = vmatpush1.bf16.xpose.msra.mxu0 0
    %3497 = vmatprep.subr.bf16.mxu0 0
    %3498 = vmatpush1.bf16.xpose.msra.mxu0 0
    %3499 = vmatprep.subr.bf16.mxu0 0
    %3500 = vmatpush1.bf16.xpose.msra.mxu0 0
    %3501 = vmatprep.subr.bf16.mxu0 0
    %3502 = vmatpush1.bf16.xpose.msra.mxu0 0
    %3503 = vmatprep.subr.bf16.mxu0 0
    %3504 = vmatpush1.bf16.xpose.msra.mxu0 0
    %3505 = vmatprep.subr.bf16.mxu0 0
    %3506 = vmatpush1.bf16.xpose.msra.mxu0 0
    %3507 = vmatprep.subr.bf16.mxu0 0
    %3508 = vmatpush1.bf16.xpose.msra.mxu0 0
    %3509 = vmatprep.subr.bf16.mxu0 0
    %3510 = vmatpush1.bf16.xpose.msra.mxu0 0
    %3511 = vmatprep.mubr.bf16.mxu0 0
    %3512 = vmatmul.mubr.bf16.gmra.mrb[0].mxu0 %v3474
    %v3513 = vpop.f32.mrb[0].mxu0
    %v3514 = vadd.f32 0.0, %v3513
    %v3515 = vpop.f32.mrb[0].mxu0
    %v3516 = vpop.f32.mrb[0].mxu0
    %v3517 = vpop.f32.mrb[0].mxu0
    %3518 = vdwg.mxu0
    %v3519 = vrot.slane %v1893, 4
    %v3521 = vsel %vm1902, %v1892, 0
    %v3524 = vsel %vm1902, %v3519, 0
    %3526 = vmatprep.subr.bf16.mxu0 0
    %3527 = vmatpush1.bf16.xpose.msra.mxu0 %v3524
    %3528 = vmatprep.subr.bf16.mxu0 0
    %3529 = vmatpush1.bf16.xpose.msra.mxu0 0
    %3530 = vmatprep.subr.bf16.mxu0 0
    %3531 = vmatpush1.bf16.xpose.msra.mxu0 0
    %3532 = vmatprep.subr.bf16.mxu0 0
    %3533 = vmatpush1.bf16.xpose.msra.mxu0 0
    %3534 = vmatprep.subr.bf16.mxu0 0
    %3535 = vmatpush1.bf16.xpose.msra.mxu0 0
    %3536 = vmatprep.subr.bf16.mxu0 0
    %3537 = vmatpush1.bf16.xpose.msra.mxu0 0
    %3538 = vmatprep.subr.bf16.mxu0 0
    %3539 = vmatpush1.bf16.xpose.msra.mxu0 0
    %3540 = vmatprep.subr.bf16.mxu0 0
    %3541 = vmatpush1.bf16.xpose.msra.mxu0 0
    %3542 = vmatprep.subr.bf16.mxu0 0
    %3543 = vmatpush1.bf16.xpose.msra.mxu0 0
    %3544 = vmatprep.subr.bf16.mxu0 0
    %3545 = vmatpush1.bf16.xpose.msra.mxu0 0
    %3546 = vmatprep.subr.bf16.mxu0 0
    %3547 = vmatpush1.bf16.xpose.msra.mxu0 0
    %3548 = vmatprep.subr.bf16.mxu0 0
    %3549 = vmatpush1.bf16.xpose.msra.mxu0 0
    %3550 = vmatprep.subr.bf16.mxu0 0
    %3551 = vmatpush1.bf16.xpose.msra.mxu0 0
    %3552 = vmatprep.subr.bf16.mxu0 0
    %3553 = vmatpush1.bf16.xpose.msra.mxu0 0
    %3554 = vmatprep.subr.bf16.mxu0 0
    %3555 = vmatpush1.bf16.xpose.msra.mxu0 0
    %3556 = vmatprep.subr.bf16.mxu0 0
    %3557 = vmatpush1.bf16.xpose.msra.mxu0 0
    %3558 = vmatprep.mubr.bf16.mxu0 0
    %3559 = vmatmul.mubr.bf16.gmra.mrb[0].mxu0 %v3521
    %v3560 = vpop.f32.mrb[0].mxu0
    %v3561 = vadd.f32 0.0, %v3560
    %v3562 = vpop.f32.mrb[0].mxu0
    %v3563 = vpop.f32.mrb[0].mxu0
    %v3564 = vpop.f32.mrb[0].mxu0
    %3565 = vdwg.mxu0
    %v3566 = vsel %vm1997, %v3514, -1e+30
    %v3567 = vsel %vm1997, %v3561, -1e+30
    %v3568 = vsel %vm2000, %v3566, -inf
    %3569 = vmax.xlane.f32.xlu0 %v3568
    %v3570 = vpop.xlane.xlu0 %3569
    %v3571 = vsel %vm2000, %v3567, -inf
    %3572 = vmax.xlane.f32.xlu0 %v3571
    %v3573 = vpop.xlane.xlu0 %3572
    %v3574 = vsub.f32 %v3566, %v3570
    %v3575 = vsub.f32 %v3567, %v3573
    %v3576 = vmul.f32 %v3574, 1.442695
    %v3577 = vpow.pop %v3576
    %v3578 = vmul.f32 %v3575, 1.442695
    %v3579 = vpow.pop %v3578
    %v3580 = vsel %vm2000, %v3577, 0.0
    %3581 = vadd.xlane.f32.xlu0 %v3580
    %v3582 = vpop.xlane.xlu0 %3581
    %v3583 = vsel %vm2000, %v3579, 0.0
    %3584 = vadd.xlane.f32.xlu0 %v3583
    %v3585 = vpop.xlane.xlu0 %3584
    %v3586 = vrcp.pop %v3582
    %v3587 = vrcp.pop %v3585
    %v3588 = vmul.f32 %v3577, %v3586
    %v3589 = vmul.f32 %v3579, %v3587
    %v3590 = vpack.c.bf16 %v3588, %v3588
    %v3591 = vpack.c.bf16 %v3589, %v3589
    %v3593 = vsel %vm2000, %v3590, 0
    %v3596 = vsel %vm2028, %v1890, 0
    %3598 = vmatprep.subr.bf16.mxu0 0
    %3599 = vmatpush1.bf16.msra.mxu0 %v3596
    %3600 = vmatprep.subr.bf16.mxu0 0
    %3601 = vmatpush1.bf16.msra.mxu0 0
    %3602 = vmatprep.subr.bf16.mxu0 0
    %3603 = vmatpush1.bf16.msra.mxu0 0
    %3604 = vmatprep.subr.bf16.mxu0 0
    %3605 = vmatpush1.bf16.msra.mxu0 0
    %3606 = vmatprep.subr.bf16.mxu0 0
    %3607 = vmatpush1.bf16.msra.mxu0 0
    %3608 = vmatprep.subr.bf16.mxu0 0
    %3609 = vmatpush1.bf16.msra.mxu0 0
    %3610 = vmatprep.subr.bf16.mxu0 0
    %3611 = vmatpush1.bf16.msra.mxu0 0
    %3612 = vmatprep.subr.bf16.mxu0 0
    %3613 = vmatpush1.bf16.msra.mxu0 0
    %3614 = vmatprep.subr.bf16.mxu0 0
    %3615 = vmatpush1.bf16.msra.mxu0 0
    %3616 = vmatprep.subr.bf16.mxu0 0
    %3617 = vmatpush1.bf16.msra.mxu0 0
    %3618 = vmatprep.subr.bf16.mxu0 0
    %3619 = vmatpush1.bf16.msra.mxu0 0
    %3620 = vmatprep.subr.bf16.mxu0 0
    %3621 = vmatpush1.bf16.msra.mxu0 0
    %3622 = vmatprep.subr.bf16.mxu0 0
    %3623 = vmatpush1.bf16.msra.mxu0 0
    %3624 = vmatprep.subr.bf16.mxu0 0
    %3625 = vmatpush1.bf16.msra.mxu0 0
    %3626 = vmatprep.subr.bf16.mxu0 0
    %3627 = vmatpush1.bf16.msra.mxu0 0
    %3628 = vmatprep.subr.bf16.mxu0 0
    %3629 = vmatpush1.bf16.msra.mxu0 0
    %3630 = vmatprep.mubr.bf16.mxu0 0
    %3631 = vmatmul.mubr.bf16.gmra.mrb[0].mxu0 %v3593
    %v3632 = vpop.f32.mrb[0].mxu0
    %v3633 = vadd.f32 0.0, %v3632
    %v3634 = vpop.f32.mrb[0].mxu0
    %v3635 = vpop.f32.mrb[0].mxu0
    %v3636 = vpop.f32.mrb[0].mxu0
    %3637 = vdwg.mxu0
    %v3639 = vsel %vm2000, %v3591, 0
    %v3642 = vsel %vm2028, %v1895, 0
    %3644 = vmatprep.subr.bf16.mxu0 0
    %3645 = vmatpush1.bf16.msra.mxu0 %v3642
    %3646 = vmatprep.subr.bf16.mxu0 0
    %3647 = vmatpush1.bf16.msra.mxu0 0
    %3648 = vmatprep.subr.bf16.mxu0 0
    %3649 = vmatpush1.bf16.msra.mxu0 0
    %3650 = vmatprep.subr.bf16.mxu0 0
    %3651 = vmatpush1.bf16.msra.mxu0 0
    %3652 = vmatprep.subr.bf16.mxu0 0
    %3653 = vmatpush1.bf16.msra.mxu0 0
    %3654 = vmatprep.subr.bf16.mxu0 0
    %3655 = vmatpush1.bf16.msra.mxu0 0
    %3656 = vmatprep.subr.bf16.mxu0 0
    %3657 = vmatpush1.bf16.msra.mxu0 0
    %3658 = vmatprep.subr.bf16.mxu0 0
    %3659 = vmatpush1.bf16.msra.mxu0 0
    %3660 = vmatprep.subr.bf16.mxu0 0
    %3661 = vmatpush1.bf16.msra.mxu0 0
    %3662 = vmatprep.subr.bf16.mxu0 0
    %3663 = vmatpush1.bf16.msra.mxu0 0
    %3664 = vmatprep.subr.bf16.mxu0 0
    %3665 = vmatpush1.bf16.msra.mxu0 0
    %3666 = vmatprep.subr.bf16.mxu0 0
    %3667 = vmatpush1.bf16.msra.mxu0 0
    %3668 = vmatprep.subr.bf16.mxu0 0
    %3669 = vmatpush1.bf16.msra.mxu0 0
    %3670 = vmatprep.subr.bf16.mxu0 0
    %3671 = vmatpush1.bf16.msra.mxu0 0
    %3672 = vmatprep.subr.bf16.mxu0 0
    %3673 = vmatpush1.bf16.msra.mxu0 0
    %3674 = vmatprep.subr.bf16.mxu0 0
    %3675 = vmatpush1.bf16.msra.mxu0 0
    %3676 = vmatprep.mubr.bf16.mxu0 0
    %3677 = vmatmul.mubr.bf16.gmra.mrb[0].mxu0 %v3639
    %v3678 = vpop.f32.mrb[0].mxu0
    %v3679 = vadd.f32 0.0, %v3678
    %v3680 = vpop.f32.mrb[0].mxu0
    %v3681 = vpop.f32.mrb[0].mxu0
    %v3682 = vpop.f32.mrb[0].mxu0
    %3683 = vdwg.mxu0
    %v3684 = vpack.c.bf16 %v3679, %v3633
    %v3685 = vld [vmem:[#allocation7 + $0x180] sm:$0xff]
    %v3686 = vld [vmem:[#allocation7 + $0x188] sm:$0xf]
    %v3687 = vld [vmem:[#allocation7 + $0x18c] sm:$0xff]
    %v3688 = vld [vmem:[#allocation7 + $0x194] sm:$0xf]
    %v3689 = vld [vmem:[#allocation7 + $0x198] sm:$0xff]
    %v3690 = vld [vmem:[#allocation7 + $0x1a0] sm:$0xf]
    %v3691 = vld [vmem:[#allocation7 + $0x1a4] sm:$0xff]
    %v3692 = vld [vmem:[#allocation7 + $0x1ac] sm:$0xf]
    %v3693 = vld [vmem:[#allocation7 + $0x1b0] sm:$0xff]
    %v3694 = vld [vmem:[#allocation7 + $0x1b8] sm:$0xf]
    %v3695 = vld [vmem:[#allocation7 + $0x1bc] sm:$0xff]
    %v3696 = vld [vmem:[#allocation7 + $0x1c4] sm:$0xf]
    %v3697 = vld [vmem:[#allocation7 + $0x1c8] sm:$0xff]
    %v3698 = vld [vmem:[#allocation7 + $0x1d0] sm:$0xf]
    %v3699 = vld [vmem:[#allocation7 + $0x1d4] sm:$0xff]
    %v3700 = vld [vmem:[#allocation7 + $0x1dc] sm:$0xf]
    %v3717 = vunpack.c.l.b16 %v3685
    %v3718 = vunpack.c.h.b16 %v3685
    %v3719 = vunpack.c.l.b16 %v3686
    %v3720 = vunpack.c.l.b16 %v3687
    %v3721 = vunpack.c.h.b16 %v3687
    %v3722 = vunpack.c.l.b16 %v3688
    %v3723 = vunpack.c.l.b16 %v3689
    %v3724 = vunpack.c.h.b16 %v3689
    %v3725 = vunpack.c.l.b16 %v3690
    %v3726 = vunpack.c.l.b16 %v3691
    %v3727 = vunpack.c.h.b16 %v3691
    %v3728 = vunpack.c.l.b16 %v3692
    %v3729 = vunpack.c.l.b16 %v3693
    %v3730 = vunpack.c.h.b16 %v3693
    %v3731 = vunpack.c.l.b16 %v3694
    %v3732 = vunpack.c.l.b16 %v3695
    %v3733 = vunpack.c.h.b16 %v3695
    %v3734 = vunpack.c.l.b16 %v3696
    %v3735 = vunpack.c.l.b16 %v3697
    %v3736 = vunpack.c.h.b16 %v3697
    %v3737 = vunpack.c.l.b16 %v3698
    %v3738 = vunpack.c.l.b16 %v3699
    %v3739 = vunpack.c.h.b16 %v3699
    %v3740 = vunpack.c.l.b16 %v3700
    %v3741 = vpack.c.b16 %v3720, %v3717
    %v3742 = vpack.c.b16 %v3721, %v3718
    %v3743 = vpack.c.b16 %v3722, %v3719
    %v3744 = vpack.c.b16 %v3726, %v3723
    %v3745 = vpack.c.b16 %v3727, %v3724
    %v3746 = vpack.c.b16 %v3728, %v3725
    %v3747 = vpack.c.b16 %v3732, %v3729
    %v3748 = vpack.c.b16 %v3733, %v3730
    %v3749 = vpack.c.b16 %v3734, %v3731
    %v3750 = vpack.c.b16 %v3738, %v3735
    %v3751 = vpack.c.b16 %v3739, %v3736
    %v3752 = vpack.c.b16 %v3740, %v3737
    %v3766 = vsel %vm1902, %v3684, 0
    %3768 = vmatprep.subr.bf16.mxu0 %v3742
    %3769 = vmatpush1.bf16.msra.mxu0 %v3741
    %3770 = vmatprep.subr.bf16.mxu0 %v3745
    %3771 = vmatpush1.bf16.msra.mxu0 %v3744
    %3772 = vmatprep.subr.bf16.mxu0 %v3748
    %3773 = vmatpush1.bf16.msra.mxu0 %v3747
    %3774 = vmatprep.subr.bf16.mxu0 %v3751
    %3775 = vmatpush1.bf16.msra.mxu0 %v3750
    %3776 = vmatprep.subr.bf16.mxu0 0
    %3777 = vmatpush1.bf16.msra.mxu0 0
    %3778 = vmatprep.subr.bf16.mxu0 0
    %3779 = vmatpush1.bf16.msra.mxu0 0
    %3780 = vmatprep.subr.bf16.mxu0 0
    %3781 = vmatpush1.bf16.msra.mxu0 0
    %3782 = vmatprep.subr.bf16.mxu0 0
    %3783 = vmatpush1.bf16.msra.mxu0 0
    %3784 = vmatprep.subr.bf16.mxu0 0
    %3785 = vmatpush1.bf16.msra.mxu0 0
    %3786 = vmatprep.subr.bf16.mxu0 0
    %3787 = vmatpush1.bf16.msra.mxu0 0
    %3788 = vmatprep.subr.bf16.mxu0 0
    %3789 = vmatpush1.bf16.msra.mxu0 0
    %3790 = vmatprep.subr.bf16.mxu0 0
    %3791 = vmatpush1.bf16.msra.mxu0 0
    %3792 = vmatprep.subr.bf16.mxu0 0
    %3793 = vmatpush1.bf16.msra.mxu0 0
    %3794 = vmatprep.subr.bf16.mxu0 0
    %3795 = vmatpush1.bf16.msra.mxu0 0
    %3796 = vmatprep.subr.bf16.mxu0 0
    %3797 = vmatpush1.bf16.msra.mxu0 0
    %3798 = vmatprep.subr.bf16.mxu0 0
    %3799 = vmatpush1.bf16.msra.mxu0 0
    %3800 = vmatprep.mubr.bf16.mxu0 0
    %3801 = vmatmul.mubr.bf16.gmra.mrb[0].mxu0 %v3766
    %v3802 = vpop.f32.mrb[0].mxu0
    %v3803 = vadd.f32 0.0, %v3802
    %v3804 = vpop.f32.mrb[0].mxu0
    %v3805 = vadd.f32 0.0, %v3804
    %v3806 = vpop.f32.mrb[0].mxu0
    %v3807 = vadd.f32 0.0, %v3806
    %v3808 = vpop.f32.mrb[0].mxu0
    %v3809 = vadd.f32 0.0, %v3808
    %3810 = vdwg.mxu0
    %3811 = vmatprep.subr.bf16.mxu0 0
    %3812 = vmatpush1.bf16.msra.mxu0 %v3743
    %3813 = vmatprep.subr.bf16.mxu0 0
    %3814 = vmatpush1.bf16.msra.mxu0 %v3746
    %3815 = vmatprep.subr.bf16.mxu0 0
    %3816 = vmatpush1.bf16.msra.mxu0 %v3749
    %3817 = vmatprep.subr.bf16.mxu0 0
    %3818 = vmatpush1.bf16.msra.mxu0 %v3752
    %3819 = vmatprep.subr.bf16.mxu0 0
    %3820 = vmatpush1.bf16.msra.mxu0 0
    %3821 = vmatprep.subr.bf16.mxu0 0
    %3822 = vmatpush1.bf16.msra.mxu0 0
    %3823 = vmatprep.subr.bf16.mxu0 0
    %3824 = vmatpush1.bf16.msra.mxu0 0
    %3825 = vmatprep.subr.bf16.mxu0 0
    %3826 = vmatpush1.bf16.msra.mxu0 0
    %3827 = vmatprep.subr.bf16.mxu0 0
    %3828 = vmatpush1.bf16.msra.mxu0 0
    %3829 = vmatprep.subr.bf16.mxu0 0
    %3830 = vmatpush1.bf16.msra.mxu0 0
    %3831 = vmatprep.subr.bf16.mxu0 0
    %3832 = vmatpush1.bf16.msra.mxu0 0
    %3833 = vmatprep.subr.bf16.mxu0 0
    %3834 = vmatpush1.bf16.msra.mxu0 0
    %3835 = vmatprep.subr.bf16.mxu0 0
    %3836 = vmatpush1.bf16.msra.mxu0 0
    %3837 = vmatprep.subr.bf16.mxu0 0
    %3838 = vmatpush1.bf16.msra.mxu0 0
    %3839 = vmatprep.subr.bf16.mxu0 0
    %3840 = vmatpush1.bf16.msra.mxu0 0
    %3841 = vmatprep.subr.bf16.mxu0 0
    %3842 = vmatpush1.bf16.msra.mxu0 0
    %3843 = vmatprep.mubr.bf16.mxu0 0
    %3844 = vmatmul.mubr.bf16.gmra.mrb[0].mxu0 %v3766
    %v3845 = vpop.f32.mrb[0].mxu0
    %v3846 = vadd.f32 0.0, %v3845
    %v3847 = vpop.f32.mrb[0].mxu0
    %v3848 = vpop.f32.mrb[0].mxu0
    %v3849 = vadd.f32 0.0, %v3848
    %v3850 = vpop.f32.mrb[0].mxu0
    %3851 = vdwg.mxu0
    %v3852 = vadd.f32 %v3466, %v3803
    %v3853 = vadd.f32 %v3467, %v3805
    %v3854 = vadd.f32 %v3468, %v3846
    %v3855 = vadd.f32 %v3469, %v3807
    %v3856 = vadd.f32 %v3470, %v3809
    %v3857 = vadd.f32 %v3471, %v3849
    %3858 = vrot.lane.b32.xlu0 %v1888, 64
    %v3859 = vpop.permute.xlu0 %3858
    %v3860 = vrot.slane %v3859, 4
    %v3861 = vpack.c.b16 %v1870, %v1870
    %3862 = vrot.lane.b32.xlu0 %v3861, 64
    %v3863 = vpop.permute.xlu0 %3862
    %v3865 = vsel %vm1902, %v3863, 0
    %v3868 = vsel %vm1902, %v3860, 0
    %3870 = vmatprep.subr.bf16.mxu0 0
    %3871 = vmatpush1.bf16.xpose.msra.mxu0 %v3868
    %3872 = vmatprep.subr.bf16.mxu0 0
    %3873 = vmatpush1.bf16.xpose.msra.mxu0 0
    %3874 = vmatprep.subr.bf16.mxu0 0
    %3875 = vmatpush1.bf16.xpose.msra.mxu0 0
    %3876 = vmatprep.subr.bf16.mxu0 0
    %3877 = vmatpush1.bf16.xpose.msra.mxu0 0
    %3878 = vmatprep.subr.bf16.mxu0 0
    %3879 = vmatpush1.bf16.xpose.msra.mxu0 0
    %3880 = vmatprep.subr.bf16.mxu0 0
    %3881 = vmatpush1.bf16.xpose.msra.mxu0 0
    %3882 = vmatprep.subr.bf16.mxu0 0
    %3883 = vmatpush1.bf16.xpose.msra.mxu0 0
    %3884 = vmatprep.subr.bf16.mxu0 0
    %3885 = vmatpush1.bf16.xpose.msra.mxu0 0
    %3886 = vmatprep.subr.bf16.mxu0 0
    %3887 = vmatpush1.bf16.xpose.msra.mxu0 0
    %3888 = vmatprep.subr.bf16.mxu0 0
    %3889 = vmatpush1.bf16.xpose.msra.mxu0 0
    %3890 = vmatprep.subr.bf16.mxu0 0
    %3891 = vmatpush1.bf16.xpose.msra.mxu0 0
    %3892 = vmatprep.subr.bf16.mxu0 0
    %3893 = vmatpush1.bf16.xpose.msra.mxu0 0
    %3894 = vmatprep.subr.bf16.mxu0 0
    %3895 = vmatpush1.bf16.xpose.msra.mxu0 0
    %3896 = vmatprep.subr.bf16.mxu0 0
    %3897 = vmatpush1.bf16.xpose.msra.mxu0 0
    %3898 = vmatprep.subr.bf16.mxu0 0
    %3899 = vmatpush1.bf16.xpose.msra.mxu0 0
    %3900 = vmatprep.subr.bf16.mxu0 0
    %3901 = vmatpush1.bf16.xpose.msra.mxu0 0
    %3902 = vmatprep.mubr.bf16.mxu0 0
    %3903 = vmatmul.mubr.bf16.gmra.mrb[0].mxu0 %v3865
    %v3904 = vpop.f32.mrb[0].mxu0
    %v3905 = vadd.f32 0.0, %v3904
    %v3906 = vpop.f32.mrb[0].mxu0
    %v3907 = vpop.f32.mrb[0].mxu0
    %v3908 = vpop.f32.mrb[0].mxu0
    %3909 = vdwg.mxu0
    %3910 = vrot.lane.b32.xlu0 %v1893, 64
    %v3911 = vpop.permute.xlu0 %3910
    %v3912 = vrot.slane %v3911, 4
    %v3913 = vpack.c.b16 %v1879, %v1879
    %3914 = vrot.lane.b32.xlu0 %v3913, 64
    %v3915 = vpop.permute.xlu0 %3914
    %v3917 = vsel %vm1902, %v3915, 0
    %v3920 = vsel %vm1902, %v3912, 0
    %3922 = vmatprep.subr.bf16.mxu0 0
    %3923 = vmatpush1.bf16.xpose.msra.mxu0 %v3920
    %3924 = vmatprep.subr.bf16.mxu0 0
    %3925 = vmatpush1.bf16.xpose.msra.mxu0 0
    %3926 = vmatprep.subr.bf16.mxu0 0
    %3927 = vmatpush1.bf16.xpose.msra.mxu0 0
    %3928 = vmatprep.subr.bf16.mxu0 0
    %3929 = vmatpush1.bf16.xpose.msra.mxu0 0
    %3930 = vmatprep.subr.bf16.mxu0 0
    %3931 = vmatpush1.bf16.xpose.msra.mxu0 0
    %3932 = vmatprep.subr.bf16.mxu0 0
    %3933 = vmatpush1.bf16.xpose.msra.mxu0 0
    %3934 = vmatprep.subr.bf16.mxu0 0
    %3935 = vmatpush1.bf16.xpose.msra.mxu0 0
    %3936 = vmatprep.subr.bf16.mxu0 0
    %3937 = vmatpush1.bf16.xpose.msra.mxu0 0
    %3938 = vmatprep.subr.bf16.mxu0 0
    %3939 = vmatpush1.bf16.xpose.msra.mxu0 0
    %3940 = vmatprep.subr.bf16.mxu0 0
    %3941 = vmatpush1.bf16.xpose.msra.mxu0 0
    %3942 = vmatprep.subr.bf16.mxu0 0
    %3943 = vmatpush1.bf16.xpose.msra.mxu0 0
    %3944 = vmatprep.subr.bf16.mxu0 0
    %3945 = vmatpush1.bf16.xpose.msra.mxu0 0
    %3946 = vmatprep.subr.bf16.mxu0 0
    %3947 = vmatpush1.bf16.xpose.msra.mxu0 0
    %3948 = vmatprep.subr.bf16.mxu0 0
    %3949 = vmatpush1.bf16.xpose.msra.mxu0 0
    %3950 = vmatprep.subr.bf16.mxu0 0
    %3951 = vmatpush1.bf16.xpose.msra.mxu0 0
    %3952 = vmatprep.subr.bf16.mxu0 0
    %3953 = vmatpush1.bf16.xpose.msra.mxu0 0
    %3954 = vmatprep.mubr.bf16.mxu0 0
    %3955 = vmatmul.mubr.bf16.gmra.mrb[0].mxu0 %v3917
    %v3956 = vpop.f32.mrb[0].mxu0
    %v3957 = vadd.f32 0.0, %v3956
    %v3958 = vpop.f32.mrb[0].mxu0
    %v3959 = vpop.f32.mrb[0].mxu0
    %v3960 = vpop.f32.mrb[0].mxu0
    %3961 = vdwg.mxu0
    %v3962 = vsel %vm1997, %v3905, -1e+30
    %v3963 = vsel %vm1997, %v3957, -1e+30
    %v3964 = vsel %vm2000, %v3962, -inf
    %3965 = vmax.xlane.f32.xlu0 %v3964
    %v3966 = vpop.xlane.xlu0 %3965
    %v3967 = vsel %vm2000, %v3963, -inf
    %3968 = vmax.xlane.f32.xlu0 %v3967
    %v3969 = vpop.xlane.xlu0 %3968
    %v3970 = vsub.f32 %v3962, %v3966
    %v3971 = vsub.f32 %v3963, %v3969
    %v3972 = vmul.f32 %v3970, 1.442695
    %v3973 = vpow.pop %v3972
    %v3974 = vmul.f32 %v3971, 1.442695
    %v3975 = vpow.pop %v3974
    %v3976 = vsel %vm2000, %v3973, 0.0
    %3977 = vadd.xlane.f32.xlu0 %v3976
    %v3978 = vpop.xlane.xlu0 %3977
    %v3979 = vsel %vm2000, %v3975, 0.0
    %3980 = vadd.xlane.f32.xlu0 %v3979
    %v3981 = vpop.xlane.xlu0 %3980
    %v3982 = vrcp.pop %v3978
    %v3983 = vrcp.pop %v3981
    %v3984 = vmul.f32 %v3973, %v3982
    %v3985 = vmul.f32 %v3975, %v3983
    %v3986 = vpack.c.bf16 %v3984, %v3984
    %v3987 = vpack.c.bf16 %v3985, %v3985
    %3988 = vrot.lane.b32.xlu0 %v1890, 64
    %v3989 = vpop.permute.xlu0 %3988
    %v3991 = vsel %vm2000, %v3986, 0
    %v3994 = vsel %vm2028, %v3989, 0
    %3996 = vmatprep.subr.bf16.mxu0 0
    %3997 = vmatpush1.bf16.msra.mxu0 %v3994
    %3998 = vmatprep.subr.bf16.mxu0 0
    %3999 = vmatpush1.bf16.msra.mxu0 0
    %4000 = vmatprep.subr.bf16.mxu0 0
    %4001 = vmatpush1.bf16.msra.mxu0 0
    %4002 = vmatprep.subr.bf16.mxu0 0
    %4003 = vmatpush1.bf16.msra.mxu0 0
    %4004 = vmatprep.subr.bf16.mxu0 0
    %4005 = vmatpush1.bf16.msra.mxu0 0
    %4006 = vmatprep.subr.bf16.mxu0 0
    %4007 = vmatpush1.bf16.msra.mxu0 0
    %4008 = vmatprep.subr.bf16.mxu0 0
    %4009 = vmatpush1.bf16.msra.mxu0 0
    %4010 = vmatprep.subr.bf16.mxu0 0
    %4011 = vmatpush1.bf16.msra.mxu0 0
    %4012 = vmatprep.subr.bf16.mxu0 0
    %4013 = vmatpush1.bf16.msra.mxu0 0
    %4014 = vmatprep.subr.bf16.mxu0 0
    %4015 = vmatpush1.bf16.msra.mxu0 0
    %4016 = vmatprep.subr.bf16.mxu0 0
    %4017 = vmatpush1.bf16.msra.mxu0 0
    %4018 = vmatprep.subr.bf16.mxu0 0
    %4019 = vmatpush1.bf16.msra.mxu0 0
    %4020 = vmatprep.subr.bf16.mxu0 0
    %4021 = vmatpush1.bf16.msra.mxu0 0
    %4022 = vmatprep.subr.bf16.mxu0 0
    %4023 = vmatpush1.bf16.msra.mxu0 0
    %4024 = vmatprep.subr.bf16.mxu0 0
    %4025 = vmatpush1.bf16.msra.mxu0 0
    %4026 = vmatprep.subr.bf16.mxu0 0
    %4027 = vmatpush1.bf16.msra.mxu0 0
    %4028 = vmatprep.mubr.bf16.mxu0 0
    %4029 = vmatmul.mubr.bf16.gmra.mrb[0].mxu0 %v3991
    %v4030 = vpop.f32.mrb[0].mxu0
    %v4031 = vadd.f32 0.0, %v4030
    %v4032 = vpop.f32.mrb[0].mxu0
    %v4033 = vpop.f32.mrb[0].mxu0
    %v4034 = vpop.f32.mrb[0].mxu0
    %4035 = vdwg.mxu0
    %4036 = vrot.lane.b32.xlu0 %v1895, 64
    %v4037 = vpop.permute.xlu0 %4036
    %v4039 = vsel %vm2000, %v3987, 0
    %v4042 = vsel %vm2028, %v4037, 0
    %4044 = vmatprep.subr.bf16.mxu0 0
    %4045 = vmatpush1.bf16.msra.mxu0 %v4042
    %4046 = vmatprep.subr.bf16.mxu0 0
    %4047 = vmatpush1.bf16.msra.mxu0 0
    %4048 = vmatprep.subr.bf16.mxu0 0
    %4049 = vmatpush1.bf16.msra.mxu0 0
    %4050 = vmatprep.subr.bf16.mxu0 0
    %4051 = vmatpush1.bf16.msra.mxu0 0
    %4052 = vmatprep.subr.bf16.mxu0 0
    %4053 = vmatpush1.bf16.msra.mxu0 0
    %4054 = vmatprep.subr.bf16.mxu0 0
    %4055 = vmatpush1.bf16.msra.mxu0 0
    %4056 = vmatprep.subr.bf16.mxu0 0
    %4057 = vmatpush1.bf16.msra.mxu0 0
    %4058 = vmatprep.subr.bf16.mxu0 0
    %4059 = vmatpush1.bf16.msra.mxu0 0
    %4060 = vmatprep.subr.bf16.mxu0 0
    %4061 = vmatpush1.bf16.msra.mxu0 0
    %4062 = vmatprep.subr.bf16.mxu0 0
    %4063 = vmatpush1.bf16.msra.mxu0 0
    %4064 = vmatprep.subr.bf16.mxu0 0
    %4065 = vmatpush1.bf16.msra.mxu0 0
    %4066 = vmatprep.subr.bf16.mxu0 0
    %4067 = vmatpush1.bf16.msra.mxu0 0
    %4068 = vmatprep.subr.bf16.mxu0 0
    %4069 = vmatpush1.bf16.msra.mxu0 0
    %4070 = vmatprep.subr.bf16.mxu0 0
    %4071 = vmatpush1.bf16.msra.mxu0 0
    %4072 = vmatprep.subr.bf16.mxu0 0
    %4073 = vmatpush1.bf16.msra.mxu0 0
    %4074 = vmatprep.subr.bf16.mxu0 0
    %4075 = vmatpush1.bf16.msra.mxu0 0
    %4076 = vmatprep.mubr.bf16.mxu0 0
    %4077 = vmatmul.mubr.bf16.gmra.mrb[0].mxu0 %v4039
    %v4078 = vpop.f32.mrb[0].mxu0
    %v4079 = vadd.f32 0.0, %v4078
    %v4080 = vpop.f32.mrb[0].mxu0
    %v4081 = vpop.f32.mrb[0].mxu0
    %v4082 = vpop.f32.mrb[0].mxu0
    %4083 = vdwg.mxu0
    %v4084 = vpack.c.bf16 %v4079, %v4031
    %v4085 = vld [vmem:[#allocation7 + $0x1e0] sm:$0xff]
    %v4086 = vld [vmem:[#allocation7 + $0x1e8] sm:$0xf]
    %v4087 = vld [vmem:[#allocation7 + $0x1ec] sm:$0xff]
    %v4088 = vld [vmem:[#allocation7 + $0x1f4] sm:$0xf]
    %v4089 = vld [vmem:[#allocation7 + $0x1f8] sm:$0xff]
    %v4090 = vld [vmem:[#allocation7 + $0x200] sm:$0xf]
    %v4091 = vld [vmem:[#allocation7 + $0x204] sm:$0xff]
    %v4092 = vld [vmem:[#allocation7 + $0x20c] sm:$0xf]
    %v4093 = vld [vmem:[#allocation7 + $0x210] sm:$0xff]
    %v4094 = vld [vmem:[#allocation7 + $0x218] sm:$0xf]
    %v4095 = vld [vmem:[#allocation7 + $0x21c] sm:$0xff]
    %v4096 = vld [vmem:[#allocation7 + $0x224] sm:$0xf]
    %v4097 = vld [vmem:[#allocation7 + $0x228] sm:$0xff]
    %v4098 = vld [vmem:[#allocation7 + $0x230] sm:$0xf]
    %v4099 = vld [vmem:[#allocation7 + $0x234] sm:$0xff]
    %v4100 = vld [vmem:[#allocation7 + $0x23c] sm:$0xf]
    %v4117 = vunpack.c.l.b16 %v4085
    %v4118 = vunpack.c.h.b16 %v4085
    %v4119 = vunpack.c.l.b16 %v4086
    %v4120 = vunpack.c.l.b16 %v4087
    %v4121 = vunpack.c.h.b16 %v4087
    %v4122 = vunpack.c.l.b16 %v4088
    %v4123 = vunpack.c.l.b16 %v4089
    %v4124 = vunpack.c.h.b16 %v4089
    %v4125 = vunpack.c.l.b16 %v4090
    %v4126 = vunpack.c.l.b16 %v4091
    %v4127 = vunpack.c.h.b16 %v4091
    %v4128 = vunpack.c.l.b16 %v4092
    %v4129 = vunpack.c.l.b16 %v4093
    %v4130 = vunpack.c.h.b16 %v4093
    %v4131 = vunpack.c.l.b16 %v4094
    %v4132 = vunpack.c.l.b16 %v4095
    %v4133 = vunpack.c.h.b16 %v4095
    %v4134 = vunpack.c.l.b16 %v4096
    %v4135 = vunpack.c.l.b16 %v4097
    %v4136 = vunpack.c.h.b16 %v4097
    %v4137 = vunpack.c.l.b16 %v4098
    %v4138 = vunpack.c.l.b16 %v4099
    %v4139 = vunpack.c.h.b16 %v4099
    %v4140 = vunpack.c.l.b16 %v4100
    %v4141 = vpack.c.b16 %v4120, %v4117
    %v4142 = vpack.c.b16 %v4121, %v4118
    %v4143 = vpack.c.b16 %v4122, %v4119
    %v4144 = vpack.c.b16 %v4126, %v4123
    %v4145 = vpack.c.b16 %v4127, %v4124
    %v4146 = vpack.c.b16 %v4128, %v4125
    %v4147 = vpack.c.b16 %v4132, %v4129
    %v4148 = vpack.c.b16 %v4133, %v4130
    %v4149 = vpack.c.b16 %v4134, %v4131
    %v4150 = vpack.c.b16 %v4138, %v4135
    %v4151 = vpack.c.b16 %v4139, %v4136
    %v4152 = vpack.c.b16 %v4140, %v4137
    %v4166 = vsel %vm1902, %v4084, 0
    %4168 = vmatprep.subr.bf16.mxu0 %v4142
    %4169 = vmatpush1.bf16.msra.mxu0 %v4141
    %4170 = vmatprep.subr.bf16.mxu0 %v4145
    %4171 = vmatpush1.bf16.msra.mxu0 %v4144
    %4172 = vmatprep.subr.bf16.mxu0 %v4148
    %4173 = vmatpush1.bf16.msra.mxu0 %v4147
    %4174 = vmatprep.subr.bf16.mxu0 %v4151
    %4175 = vmatpush1.bf16.msra.mxu0 %v4150
    %4176 = vmatprep.subr.bf16.mxu0 0
    %4177 = vmatpush1.bf16.msra.mxu0 0
    %4178 = vmatprep.subr.bf16.mxu0 0
    %4179 = vmatpush1.bf16.msra.mxu0 0
    %4180 = vmatprep.subr.bf16.mxu0 0
    %4181 = vmatpush1.bf16.msra.mxu0 0
    %4182 = vmatprep.subr.bf16.mxu0 0
    %4183 = vmatpush1.bf16.msra.mxu0 0
    %4184 = vmatprep.subr.bf16.mxu0 0
    %4185 = vmatpush1.bf16.msra.mxu0 0
    %4186 = vmatprep.subr.bf16.mxu0 0
    %4187 = vmatpush1.bf16.msra.mxu0 0
    %4188 = vmatprep.subr.bf16.mxu0 0
    %4189 = vmatpush1.bf16.msra.mxu0 0
    %4190 = vmatprep.subr.bf16.mxu0 0
    %4191 = vmatpush1.bf16.msra.mxu0 0
    %4192 = vmatprep.subr.bf16.mxu0 0
    %4193 = vmatpush1.bf16.msra.mxu0 0
    %4194 = vmatprep.subr.bf16.mxu0 0
    %4195 = vmatpush1.bf16.msra.mxu0 0
    %4196 = vmatprep.subr.bf16.mxu0 0
    %4197 = vmatpush1.bf16.msra.mxu0 0
    %4198 = vmatprep.subr.bf16.mxu0 0
    %4199 = vmatpush1.bf16.msra.mxu0 0
    %4200 = vmatprep.mubr.bf16.mxu0 0
    %4201 = vmatmul.mubr.bf16.gmra.mrb[0].mxu0 %v4166
    %v4202 = vpop.f32.mrb[0].mxu0
    %v4203 = vadd.f32 0.0, %v4202
    %v4204 = vpop.f32.mrb[0].mxu0
    %v4205 = vadd.f32 0.0, %v4204
    %v4206 = vpop.f32.mrb[0].mxu0
    %v4207 = vadd.f32 0.0, %v4206
    %v4208 = vpop.f32.mrb[0].mxu0
    %v4209 = vadd.f32 0.0, %v4208
    %4210 = vdwg.mxu0
    %4211 = vmatprep.subr.bf16.mxu0 0
    %4212 = vmatpush1.bf16.msra.mxu0 %v4143
    %4213 = vmatprep.subr.bf16.mxu0 0
    %4214 = vmatpush1.bf16.msra.mxu0 %v4146
    %4215 = vmatprep.subr.bf16.mxu0 0
    %4216 = vmatpush1.bf16.msra.mxu0 %v4149
    %4217 = vmatprep.subr.bf16.mxu0 0
    %4218 = vmatpush1.bf16.msra.mxu0 %v4152
    %4219 = vmatprep.subr.bf16.mxu0 0
    %4220 = vmatpush1.bf16.msra.mxu0 0
    %4221 = vmatprep.subr.bf16.mxu0 0
    %4222 = vmatpush1.bf16.msra.mxu0 0
    %4223 = vmatprep.subr.bf16.mxu0 0
    %4224 = vmatpush1.bf16.msra.mxu0 0
    %4225 = vmatprep.subr.bf16.mxu0 0
    %4226 = vmatpush1.bf16.msra.mxu0 0
    %4227 = vmatprep.subr.bf16.mxu0 0
    %4228 = vmatpush1.bf16.msra.mxu0 0
    %4229 = vmatprep.subr.bf16.mxu0 0
    %4230 = vmatpush1.bf16.msra.mxu0 0
    %4231 = vmatprep.subr.bf16.mxu0 0
    %4232 = vmatpush1.bf16.msra.mxu0 0
    %4233 = vmatprep.subr.bf16.mxu0 0
    %4234 = vmatpush1.bf16.msra.mxu0 0
    %4235 = vmatprep.subr.bf16.mxu0 0
    %4236 = vmatpush1.bf16.msra.mxu0 0
    %4237 = vmatprep.subr.bf16.mxu0 0
    %4238 = vmatpush1.bf16.msra.mxu0 0
    %4239 = vmatprep.subr.bf16.mxu0 0
    %4240 = vmatpush1.bf16.msra.mxu0 0
    %4241 = vmatprep.subr.bf16.mxu0 0
    %4242 = vmatpush1.bf16.msra.mxu0 0
    %4243 = vmatprep.mubr.bf16.mxu0 0
    %4244 = vmatmul.mubr.bf16.gmra.mrb[0].mxu0 %v4166
    %v4245 = vpop.f32.mrb[0].mxu0
    %v4246 = vadd.f32 0.0, %v4245
    %v4247 = vpop.f32.mrb[0].mxu0
    %v4248 = vpop.f32.mrb[0].mxu0
    %v4249 = vadd.f32 0.0, %v4248
    %v4250 = vpop.f32.mrb[0].mxu0
    %4251 = vdwg.mxu0
    %v4252 = vadd.f32 %v3852, %v4203
    %v4253 = vadd.f32 %v3853, %v4205
    %v4254 = vadd.f32 %v3854, %v4246
    %v4255 = vadd.f32 %v3855, %v4207
    %v4256 = vadd.f32 %v3856, %v4209
    %v4257 = vadd.f32 %v3857, %v4249
    %v4258 = vld [vmem:[%s3] sm:$0x7]
    %v4260 = vlaneseq
    %v4261 = vshrl.u32 %v4260, 7
    %v4262 = vsub.s32 0, %v4261
    %v4263 = vrot.slane %v4258, %v4262
    %v4264 = vlaneseq
    %v4265 = vshrl.u32 %v4264, 7
    %v4266 = vsub.s32 1, %v4265
    %v4267 = vrot.slane %v4258, %v4266
    %v4268 = vlaneseq
    %v4269 = vshrl.u32 %v4268, 7
    %v4270 = vsub.s32 2, %v4269
    %v4271 = vrot.slane %v4258, %v4270
    %v4275 = vadd.f32 %v4252, %v4263
    %v4276 = vadd.f32 %v4253, %v4267
    %v4277 = vadd.f32 %v4254, %v4271
    %v4278 = vadd.f32 %v4255, %v4263
    %v4279 = vadd.f32 %v4256, %v4267
    %v4280 = vadd.f32 %v4257, %v4271
    %v4281 = vpack.c.bf16 %v4275, %v4275
    %v4282 = vpack.c.bf16 %v4276, %v4276
    %v4283 = vpack.c.bf16 %v4277, %v4277
    %v4284 = vpack.c.bf16 %v4278, %v4278
    %v4285 = vpack.c.bf16 %v4279, %v4279
    %v4286 = vpack.c.bf16 %v4280, %v4280
    %v4293 = vunpack.c.l.b16 %v4281
    %v4294 = vunpack.c.l.b16 %v4282
    %v4295 = vunpack.c.l.b16 %v4283
    %v4296 = vunpack.c.l.b16 %v4284
    %v4297 = vunpack.c.l.b16 %v4285
    %v4298 = vunpack.c.l.b16 %v4286
    %v4299 = vpack.c.b16 %v4294, %v4293
    %v4300 = vpack.c.b16 %v4295, %v4295
    %v4301 = vpack.c.b16 %v4297, %v4296
    %v4302 = vpack.c.b16 %v4298, %v4298
    %4307 = vst [vmem:[#allocation8] sm:$0xff] %v4299
    %4308 = vst [vmem:[#allocation8 + $0x8] sm:$0xf] %v4300
    %4309 = vst [vmem:[#allocation8 + $0xc] sm:$0xff] %v4301
    %4310 = vst [vmem:[#allocation8 + $0x14] sm:$0xf] %v4302
    // Predicated region
    $region30: #{tpu_custom_call.1} parent=1 // pred_check
      _
    $region31: #{tpu_custom_call.1} parent=1 // pred_check_branch
      %4312 = sbr.rel (0) target = $region33
    $region32: #{tpu_custom_call.1} parent=1 // pred_region
      %s4314 = ssub.s32 384, 384
      %4315 = vsyncadd [#allocation4], %s4314
      %s4316 = sshll.u32 [#allocation8], 4
      %s4317 = int_to_ptr.vmem [resolvable:$true] %s4316
      %4322 = dma.vmem_to_hbm [thread:$0]  %s4317, 384, %s4, [#allocation4], 192, 192, 12
    $region33: #{tpu_custom_call.1} parent=1 // pred_fallthru
      _
    // Predicated region
    $region34: #{tpu_custom_call.1} parent=1 // pred_check
      _
    $region35: #{tpu_custom_call.1} parent=1 // pred_check_branch
      %4324 = sbr.rel (0) target = $region37
    $region36: #{tpu_custom_call.1} parent=1 // pred_region
      %4325 = dma.done [#allocation4], 384
    $region37: #{tpu_custom_call.1} parent=1 // pred_fallthru
      _
    %4326 = vsyncpa [#allocation3], 1
    %4327 = vsyncpa [#allocation6], 1
    %4328 = vsyncpa [#allocation4], 1

</llo_original>
